<compile_context>
chip_gen: v7x
topology: tpu7x:2x2x1
jax: 0.10.0
libtpu: 0.0.40
codegen_flags: <defaults>
</compile_context>

<pallas_src>
import math
import numpy as np
import jax
import jax.numpy as jnp
from jax.experimental import pallas as pl
from jax.experimental.pallas import tpu as pltpu

# ----- module defaults (from NGPradianceField.__init__) -----
NUM_DIM = 3
N_LEVELS = 16
F_PER_LEVEL = 2
LOG2_HASHMAP = 19
BASE_RES = 16
PER_LEVEL_SCALE = 1.4472692012786865
GEO_FEAT_DIM = 15
BASE_WIDTH = 64          # mlp_base n_neurons
HEAD_WIDTH = 64          # mlp_head n_neurons
SH_DEGREE = 4
SH_DIM = SH_DEGREE * SH_DEGREE        # 16
RADIANCE_DIM = 3
POS_ENC_DIM = N_LEVELS * F_PER_LEVEL  # 32
PACK_DIM = POS_ENC_DIM + SH_DIM       # 48 packed input lanes
OUT_DIM = RADIANCE_DIM + 1            # 4  ([rgb | density])
TN = 512                              # rows per grid step (>=2 steps for N=1000)

FUSED_W = 2 * BASE_WIDTH              # 128 fused output lanes per matmul

# weight-slab row offsets (bf16 slab, 128 lanes wide)
_W_IN_OFF = 0
_W_MID_OFF = _W_IN_OFF + PACK_DIM       # 48
_W_H1_OFF = _W_MID_OFF + BASE_WIDTH     # 112
_W_H2_OFF = _W_H1_OFF + HEAD_WIDTH      # 176
_W_SLAB_ROWS = _W_H2_OFF + HEAD_WIDTH   # 240


# =====================================================================
# Pallas kernel: fully fused base MLP + density act + head MLP
# =====================================================================
def _ngp_mlp_kernel(x_ref, w_ref, b_ref, o_ref):
    x = x_ref[...]                                   # (TN, 48) bf16: [feat|SH]

    # ---- layer 1 (fused, N=128): lanes 0:64 = feat@w0 (+b0), 64:128 = SH@wh0[:16]
    t = jnp.dot(x, w_ref[_W_IN_OFF:_W_MID_OFF, :],
                preferred_element_type=jnp.float32) + b_ref[0:1, :]
    h = jnp.maximum(t[:, :BASE_WIDTH], 0.0).astype(jnp.bfloat16)   # (TN,64)
    sh_c = t[:, BASE_WIDTH:]                                       # (TN,64) f32

    # ---- layer 2 (fused, N=128): lanes 0:64 = h@W_fe (+b_fe),
    #      lane 64 = density pre-activation h@w_den (+b_den)
    m = jnp.dot(h, w_ref[_W_MID_OFF:_W_H1_OFF, :],
                preferred_element_type=jnp.float32) + b_ref[1:2, :]

    # shifted trunc_exp (shift=1).  NOTE: exp is unclamped, matching
    # _TruncExp.forward semantics.  Stored immediately -> short live range.
    density = jnp.exp(m[:, BASE_WIDTH:BASE_WIDTH + 1] - 1.0)        # (TN,1)
    o_ref[:, RADIANCE_DIM:] = density.astype(o_ref.dtype)

    # head hidden 0 (base output layer already folded into W_fe / b_fe)
    hh = jnp.maximum(m[:, :BASE_WIDTH] + sh_c, 0.0).astype(jnp.bfloat16)

    # ---- layer 3: head hidden 1 (weights padded to 128 lanes; pad cols are 0)
    g = jnp.dot(hh, w_ref[_W_H1_OFF:_W_H2_OFF, :],
                preferred_element_type=jnp.float32) + b_ref[2:3, :]
    hh2 = jnp.maximum(g[:, :HEAD_WIDTH], 0.0).astype(jnp.bfloat16)

    # ---- layer 4: radiance logits (cols 0:3 useful) + sigmoid via EUP
    lg = jnp.dot(hh2, w_ref[_W_H2_OFF:_W_SLAB_ROWS, :],
                 preferred_element_type=jnp.float32) + b_ref[3:4, :]
    rgb = pl.reciprocal(1.0 + jnp.exp(-lg[:, :RADIANCE_DIM]), approx=True)
    o_ref[:, :RADIANCE_DIM] = rgb.astype(o_ref.dtype)


def _mlp_pallas(x_packed, w_slab, b_slab):
    n = x_packed.shape[0]
    pad = (-n) % TN
    if pad:
        x_packed = jnp.pad(x_packed, ((0, pad), (0, 0)))
    n_pad = n + pad
    grid = (n_pad // TN,)

    out = pl.pallas_call(
        _ngp_mlp_kernel,
        out_shape=jax.ShapeDtypeStruct((n_pad, OUT_DIM), jnp.bfloat16),
        grid=grid,
        in_specs=[
            pl.BlockSpec((TN, PACK_DIM), lambda i: (i, 0)),        # activations
            pl.BlockSpec(w_slab.shape, lambda i: (0, 0)),          # weight slab
            pl.BlockSpec(b_slab.shape, lambda i: (0, 0)),          # bias slab
        ],
        out_specs=pl.BlockSpec((TN, OUT_DIM), lambda i: (i, 0)),
        compiler_params=pltpu.CompilerParams(dimension_semantics=("parallel",)),
    )(x_packed, w_slab, b_slab)
    return out[:n, :RADIANCE_DIM], out[:n, RADIANCE_DIM:]


# =====================================================================
# Plain-JAX glue: AABB contraction, SH encoding, hash-grid encoding
# =====================================================================
def _level_geometry():
    levels = []
    for l in range(N_LEVELS):
        scale = 2.0 ** (l * math.log2(PER_LEVEL_SCALE)) * BASE_RES - 1.0
        res = int(math.ceil(scale)) + 1
        size = min(1 << LOG2_HASHMAP, res ** NUM_DIM)
        levels.append((scale, res, size))
    return levels


_LEVELS = _level_geometry()
_PRIMES = (1, 2654435761, 805459861)
_SCALES = np.array([l[0] for l in _LEVELS], np.float32)              # (16,)
_RES = np.array([l[1] for l in _LEVELS], np.int32)                   # (16,)
_SIZES = np.array([l[2] for l in _LEVELS], np.uint32)                # (16,)
_DENSE = np.array([l[1] ** NUM_DIM <= l[2] for l in _LEVELS], bool)  # (16,)
_OFFSETS = np.concatenate([[0], np.cumsum([l[2] for l in _LEVELS])]).astype(np.int32)
_CORNERS = np.array([[(c >> 0) & 1, (c >> 1) & 1, (c >> 2) & 1]
                     for c in range(8)], np.int32)                   # (8, 3)


def contract_aabb(x, aabb):
    aabb_min, aabb_max = aabb[:NUM_DIM], aabb[NUM_DIM:]
    return (x - aabb_min) / (aabb_max - aabb_min)


def sh_encode(d):
    """Spherical-harmonics (degree 4 -> 16 comps) encoding of unit directions."""
    x, y, z = d[:, 0:1], d[:, 1:2], d[:, 2:3]
    xy, xz, yz = x * y, x * z, y * z
    x2, y2, z2 = x * x, y * y, z * z
    one = jnp.ones_like(x)
    cols = [
        0.28209479177387814 * one,
        -0.48860251190291987 * y,
        0.48860251190291987 * z,
        -0.48860251190291987 * x,
        1.0925484305920792 * xy,
        -1.0925484305920792 * yz,
        0.94617469575755997 * z2 - 0.31539156525251999 * one,
        -1.0925484305920792 * xz,
        0.54627421529603959 * (x2 - y2),
        0.59004358992664352 * y * (-3.0 * x2 + y2),
        2.8906114426405538 * xy * z,
        0.45704579946446572 * y * (1.0 - 5.0 * z2),
        0.3731763325901154 * z * (5.0 * z2 - 3.0),
        0.45704579946446572 * x * (1.0 - 5.0 * z2),
        1.4453057213202769 * z * (x2 - y2),
        0.59004358992664352 * x * (x2 - 3.0 * y2),
    ]
    return jnp.concatenate(cols, axis=-1)                            # (N, 16)


def hash_encode(xc, big_table):
    """tcnn-style HashGrid encoding, all 16 levels / 8 corners in ONE gather.

    TODO(synk): give this gather its own Pallas kernel (bf16 table resident in
    VMEM on v5e/v6e, dense levels resident + hashed levels streamed on v7x);
    the 128 random HBM reads per sample dominate the end-to-end cost.
    TODO(synk): out-of-[0,1] inputs use clamped dense indices; tcnn's OOB
    behaviour is unspecified (those points get density == 0 via the selector).
    """
    n = xc.shape[0]
    pos = xc[:, None, :] * _SCALES[None, :, None] + 0.5              # (N,16,3)
    pos_f = jnp.floor(pos)
    frac = pos - pos_f
    pos_i = pos_f.astype(jnp.int32)
    pg = pos_i[:, :, None, :] + _CORNERS[None, None, :, :]           # (N,16,8,3)

    # trilinear corner weights
    w = jnp.prod(jnp.where(_CORNERS[None, None, :, :] == 1,
                           frac[:, :, None, :], 1.0 - frac[:, :, None, :]),
                 axis=-1)                                            # (N,16,8)

    # dense index (clamped)
    res = _RES[None, :, None, None]
    pg_d = jnp.clip(pg, 0, res - 1)
    r = _RES[None, :, None].astype(jnp.int32)
    idx_dense = pg_d[..., 0] + pg_d[..., 1] * r + pg_d[..., 2] * r * r

    # hashed index
    pgu = pg.astype(jnp.uint32)
    idx_hash = (pgu[..., 0] * jnp.uint32(_PRIMES[0])
                ^ pgu[..., 1] * jnp.uint32(_PRIMES[1])
                ^ pgu[..., 2] * jnp.uint32(_PRIMES[2]))
    idx_hash = (idx_hash % _SIZES[None, :, None]).astype(jnp.int32)

    idx = jnp.where(_DENSE[None, :, None], idx_dense, idx_hash)
    idx = idx + _OFFSETS[:-1][None, :, None]                         # (N,16,8)

    vals = big_table[idx]                                            # (N,16,8,2)
    feat = jnp.sum(w[..., None] * vals, axis=2)                      # (N,16,2)
    return feat.reshape(n, N_LEVELS * F_PER_LEVEL)                   # (N,32)


# =====================================================================
# Parameters (deterministic synthetic init; shapes match the module)
# =====================================================================
def init_params(key):
    def linear(k, fi, fo):
        k1, k2 = jax.random.split(k)
        bound = 1.0 / math.sqrt(fi)
        w = jax.random.uniform(k1, (fi, fo), jnp.float32, -bound, bound)
        b = jax.random.uniform(k2, (1, fo), jnp.float32, -bound, bound)
        return w, b

    keys = jax.random.split(key, 6)
    w0, b0 = linear(keys[0], POS_ENC_DIM, BASE_WIDTH)               # base hidden
    w1, b1 = linear(keys[1], BASE_WIDTH, 1 + GEO_FEAT_DIM)          # base output
    wh0, bh0 = linear(keys[2], SH_DIM + GEO_FEAT_DIM, HEAD_WIDTH)   # head hidden 0
    wh1, bh1 = linear(keys[3], HEAD_WIDTH, HEAD_WIDTH)              # head hidden 1
    wh2, bh2 = linear(keys[4], HEAD_WIDTH, RADIANCE_DIM)            # head output

    tables = []
    tkey = keys[5]
    for (_, _, size) in _LEVELS:
        tkey, sub = jax.random.split(tkey)
        tables.append(jax.random.uniform(sub, (size, F_PER_LEVEL),
                                         jnp.float32, -1e-4, 1e-4))
    raw = dict(w0=w0, b0=b0, w1=w1, b1=b1, wh0=wh0, bh0=bh0,
               wh1=wh1, bh1=bh1, wh2=wh2, bh2=bh2)
    return raw, tables


def kernel_params(raw):
    """Pre-fold weights into TWO resident slabs for the fused kernel.

    w_slab (240,128) bf16:
      rows   0: 48  W_in  = [[w0, 0], [0, wh0[:16]]]  (feat-path | SH-path)
      rows  48:112  W_mid = [W_fe | w_den | 0]  (head-emb fuse | density col)
      rows 112:176  wh1 padded to 128 lanes
      rows 176:240  wh2 padded to 128 lanes (cols 0:3 useful)
    b_slab (8,128) f32: rows = [b0|0], [b_fe|b_den|0], [bh1|0], [bh2|0], 0...
    """
    f32, bf16 = jnp.float32, jnp.bfloat16
    w0, b0 = raw["w0"], raw["b0"]
    w1, b1 = raw["w1"], raw["b1"]
    wh0, bh0 = raw["wh0"], raw["bh0"]
    wh1, bh1 = raw["wh1"], raw["bh1"]
    wh2, bh2 = raw["wh2"], raw["bh2"]

    # layer 1 fused weight: packed input X = [feat(32) | SH(16)], K = 48, N = 128
    w_in = jnp.zeros((PACK_DIM, FUSED_W), f32)
    w_in = w_in.at[:POS_ENC_DIM, :BASE_WIDTH].set(w0)
    w_in = w_in.at[POS_ENC_DIM:, BASE_WIDTH:].set(wh0[:SH_DIM])
    b_in = jnp.zeros((1, FUSED_W), f32).at[:, :BASE_WIDTH].set(b0)

    # layer 2 fused weight: base output layer folded into head-embedding path
    # (valid: no nonlinearity between), plus the density column at lane 64.
    w_fe = w1[:, 1:] @ wh0[SH_DIM:]                                  # (64,64)
    b_fe = b1[:, 1:] @ wh0[SH_DIM:] + bh0                            # (1,64)
    w_mid = jnp.zeros((BASE_WIDTH, FUSED_W), f32)
    w_mid = w_mid.at[:, :HEAD_WIDTH].set(w_fe)
    w_mid = w_mid.at[:, HEAD_WIDTH:HEAD_WIDTH + 1].set(w1[:, :1])
    b_mid = jnp.zeros((1, FUSED_W), f32)
    b_mid = b_mid.at[:, :HEAD_WIDTH].set(b_fe)
    b_mid = b_mid.at[:, HEAD_WIDTH:HEAD_WIDTH + 1].set(b1[:, :1])

    # layer 3 / 4, lane-padded to 128 (zero pad cols cost no extra MXU pushes)
    w_h1 = jnp.zeros((HEAD_WIDTH, FUSED_W), f32).at[:, :HEAD_WIDTH].set(wh1)
    b_h1 = jnp.zeros((1, FUSED_W), f32).at[:, :HEAD_WIDTH].set(bh1)
    w_h2 = jnp.zeros((HEAD_WIDTH, FUSED_W), f32).at[:, :RADIANCE_DIM].set(wh2)
    b_h2 = jnp.zeros((1, FUSED_W), f32).at[:, :RADIANCE_DIM].set(bh2)

    w_slab = jnp.concatenate([w_in, w_mid, w_h1, w_h2], axis=0).astype(bf16)
    b_slab = jnp.concatenate([b_in, b_mid, b_h1, b_h2,
                              jnp.zeros((4, FUSED_W), f32)], axis=0)
    assert w_slab.shape == (_W_SLAB_ROWS, FUSED_W)
    return w_slab, b_slab


# =====================================================================
# Full forward (== NGPradianceField.forward): returns (rgb, density)
# =====================================================================
@jax.jit
def ngp_forward(positions, directions, aabb, big_table, w_slab, b_slab):
    xc = contract_aabb(positions, aabb)
    sel = jnp.all((xc > 0.0) & (xc < 1.0), axis=-1, keepdims=True).astype(jnp.float32)
    feat = hash_encode(xc, big_table)                                # (N,32)
    sh = sh_encode(directions)                                       # (N,16)
    x_packed = jnp.concatenate([feat, sh], axis=-1).astype(jnp.bfloat16)
    rgb, den_raw = _mlp_pallas(x_packed, w_slab, b_slab)
    return rgb.astype(jnp.float32), den_raw.astype(jnp.float32) * sel


# ----- pure-JAX reference (unfused, f32) for correctness checking -----
@jax.jit
def reference_forward(positions, directions, aabb, big_table, raw):
    xc = contract_aabb(positions, aabb)
    feat = hash_encode(xc, big_table)
    sel = jnp.all((xc > 0.0) & (xc < 1.0), axis=-1, keepdims=True).astype(jnp.float32)
    h = jax.nn.relu(feat @ raw["w0"] + raw["b0"])
    base_out = h @ raw["w1"] + raw["b1"]
    density = jnp.exp(base_out[:, :1] - 1.0) * sel
    hh = jnp.concatenate([sh_encode(directions), base_out[:, 1:]], axis=-1)
    hh = jax.nn.relu(hh @ raw["wh0"] + raw["bh0"])
    hh = jax.nn.relu(hh @ raw["wh1"] + raw["bh1"])
    rgb = jax.nn.sigmoid(hh @ raw["wh2"] + raw["bh2"])
    return rgb, density


if __name__ == "__main__":
    key = jax.random.PRNGKey(0)
    k_param, k_pos, k_dir = jax.random.split(key, 3)

    aabb = jnp.array([-1.0, -1.0, -1.0, 1.0, 1.0, 1.0], jnp.float32)
    raw, tables = init_params(k_param)
    big_table = jnp.concatenate(tables, axis=0)      # one table + static offsets
    w_slab, b_slab = kernel_params(raw)

    N = 1000                                         # deliberately not a TN multiple
    positions = jax.random.uniform(k_pos, (N, NUM_DIM), jnp.float32, -1.2, 1.2)
    directions = jax.random.normal(k_dir, (N, NUM_DIM), jnp.float32)
    directions = directions / jnp.linalg.norm(directions, axis=-1, keepdims=True)

    rgb, density = ngp_forward(positions, directions, aabb, big_table, w_slab, b_slab)
    jax.block_until_ready((rgb, density))

    assert rgb.shape == (N, RADIANCE_DIM) and density.shape == (N, 1)
    rgb_ref, den_ref = reference_forward(positions, directions, aabb, big_table, raw)
    np.testing.assert_allclose(np.asarray(rgb), np.asarray(rgb_ref),
                               rtol=1e-2, atol=1e-2)
    np.testing.assert_allclose(np.asarray(density), np.asarray(den_ref),
                               rtol=1e-2, atol=1e-2)

    print("KERNEL_OK")
</pallas_src>

<mosaic_0001>
module attributes {stable_mosaic.version = 11 : i64} {
  func.func private @main(%arg0: i32) attributes {dimension_semantics = [#tpu.dimension_semantics<core_parallel>], iteration_bounds = array<i64: 2>, tpu.core_type = #tpu.core_type<sc_scalar_subcore>, window_params = []} {
    return
  }
}

module attributes {stable_mosaic.version = 11 : i64} {
  func.func private @main(%arg0: i32) attributes {dimension_semantics = [#tpu.dimension_semantics<core_parallel>], iteration_bounds = array<i64: 2>, tpu.core_type = #tpu.core_type<sc_scalar_subcore>, window_params = []} {
    return
  }
}

module attributes {stable_mosaic.version = 11 : i64} {
  func.func @_ngp_mlp_kernel(%arg0: i32, %arg1: memref<512x48xbf16, #tpu.memory_space<vmem>>, %arg2: memref<240x128xbf16, #tpu.memory_space<vmem>>, %arg3: memref<8x128xf32, #tpu.memory_space<vmem>>, %arg4: memref<512x4xbf16, #tpu.memory_space<vmem>>) attributes {dimension_semantics = [#tpu.dimension_semantics<parallel>], iteration_bounds = array<i64: 2>, scalar_prefetch = 0 : i64, scratch_operands = 0 : i64, tpu.core_type = #tpu.core_type<tc>, window_params = [{transform_indices = @transform_0, window_bounds = array<i64: 512, 48>}, {pipeline_mode = #tpu.pipeline_mode<synchronous>, transform_indices = @transform_1, window_bounds = array<i64: 240, 128>}, {pipeline_mode = #tpu.pipeline_mode<synchronous>, transform_indices = @transform_2, window_bounds = array<i64: 8, 128>}, {transform_indices = @transform_3, window_bounds = array<i64: 512, 4>}]} {
    %c0 = arith.constant 0 : index
    %c0_0 = arith.constant 0 : index
    %0 = vector.load %arg1[%c0, %c0_0] : memref<512x48xbf16, #tpu.memory_space<vmem>>, vector<512x48xbf16>
    %c0_1 = arith.constant 0 : index
    %c0_2 = arith.constant 0 : index
    %1 = vector.load %arg2[%c0_1, %c0_2] : memref<240x128xbf16, #tpu.memory_space<vmem>>, vector<48x128xbf16>
    %cst = arith.constant dense<0.000000e+00> : vector<512x128xf32>
    %2 = tpu.matmul %0, %1, %cst {dimension_numbers = #tpu.dot_dimension_numbers<[1], [0], [0], [1], [0, 0, 1, 1], [], []>} : vector<512x48xbf16>, vector<48x128xbf16>, vector<512x128xf32> -> vector<512x128xf32>
    %c0_3 = arith.constant 0 : index
    %c0_4 = arith.constant 0 : index
    %3 = vector.load %arg3[%c0_3, %c0_4] : memref<8x128xf32, #tpu.memory_space<vmem>>, vector<1x128xf32>
    %4 = vector.broadcast %3 : vector<1x128xf32> to vector<512x128xf32>
    %5 = arith.addf %2, %4 : vector<512x128xf32>
    %6 = vector.extract_strided_slice %5 {offsets = [0, 0], sizes = [512, 64], strides = [1, 1]} : vector<512x128xf32> to vector<512x64xf32>
    %cst_5 = arith.constant 0.000000e+00 : f32
    %7 = vector.broadcast %cst_5 : f32 to vector<512x64xf32>
    %8 = arith.maximumf %6, %7 : vector<512x64xf32>
    %9 = arith.truncf %8 : vector<512x64xf32> to vector<512x64xbf16>
    %10 = vector.extract_strided_slice %5 {offsets = [0, 64], sizes = [512, 64], strides = [1, 1]} : vector<512x128xf32> to vector<512x64xf32>
    %c48 = arith.constant 48 : index
    %c0_6 = arith.constant 0 : index
    %11 = vector.load %arg2[%c48, %c0_6] : memref<240x128xbf16, #tpu.memory_space<vmem>>, vector<64x128xbf16>
    %cst_7 = arith.constant dense<0.000000e+00> : vector<512x128xf32>
    %12 = tpu.matmul %9, %11, %cst_7 {dimension_numbers = #tpu.dot_dimension_numbers<[1], [0], [0], [1], [0, 0, 1, 1], [], []>} : vector<512x64xbf16>, vector<64x128xbf16>, vector<512x128xf32> -> vector<512x128xf32>
    %c1 = arith.constant 1 : index
    %c0_8 = arith.constant 0 : index
    %13 = vector.load %arg3[%c1, %c0_8] : memref<8x128xf32, #tpu.memory_space<vmem>>, vector<1x128xf32>
    %14 = vector.broadcast %13 : vector<1x128xf32> to vector<512x128xf32>
    %15 = arith.addf %12, %14 : vector<512x128xf32>
    %16 = vector.extract_strided_slice %15 {offsets = [0, 64], sizes = [512, 1], strides = [1, 1]} : vector<512x128xf32> to vector<512x1xf32>
    %cst_9 = arith.constant 1.000000e+00 : f32
    %17 = vector.broadcast %cst_9 : f32 to vector<512x1xf32>
    %18 = arith.subf %16, %17 : vector<512x1xf32>
    %19 = math.exp %18 : vector<512x1xf32>
    %20 = arith.truncf %19 : vector<512x1xf32> to vector<512x1xbf16>
    %c0_10 = arith.constant 0 : index
    %c3 = arith.constant 3 : index
    %21 = vector.load %arg4[%c0_10, %c3] : memref<512x4xbf16, #tpu.memory_space<vmem>>, vector<512x1xbf16>
    tpu.vector_store %arg4[%c0_10, %c3], %20 {strides = array<i32>} : memref<512x4xbf16, #tpu.memory_space<vmem>>, vector<512x1xbf16>,
    %22 = vector.extract_strided_slice %15 {offsets = [0, 0], sizes = [512, 64], strides = [1, 1]} : vector<512x128xf32> to vector<512x64xf32>
    %23 = arith.addf %22, %10 : vector<512x64xf32>
    %cst_11 = arith.constant 0.000000e+00 : f32
    %24 = vector.broadcast %cst_11 : f32 to vector<512x64xf32>
    %25 = arith.maximumf %23, %24 : vector<512x64xf32>
    %26 = arith.truncf %25 : vector<512x64xf32> to vector<512x64xbf16>
    %c112 = arith.constant 112 : index
    %c0_12 = arith.constant 0 : index
    %27 = vector.load %arg2[%c112, %c0_12] : memref<240x128xbf16, #tpu.memory_space<vmem>>, vector<64x128xbf16>
    %cst_13 = arith.constant dense<0.000000e+00> : vector<512x128xf32>
    %28 = tpu.matmul %26, %27, %cst_13 {dimension_numbers = #tpu.dot_dimension_numbers<[1], [0], [0], [1], [0, 0, 1, 1], [], []>} : vector<512x64xbf16>, vector<64x128xbf16>, vector<512x128xf32> -> vector<512x128xf32>
    %c2 = arith.constant 2 : index
    %c0_14 = arith.constant 0 : index
    %29 = vector.load %arg3[%c2, %c0_14] : memref<8x128xf32, #tpu.memory_space<vmem>>, vector<1x128xf32>
    %30 = vector.broadcast %29 : vector<1x128xf32> to vector<512x128xf32>
    %31 = arith.addf %28, %30 : vector<512x128xf32>
    %32 = vector.extract_strided_slice %31 {offsets = [0, 0], sizes = [512, 64], strides = [1, 1]} : vector<512x128xf32> to vector<512x64xf32>
    %cst_15 = arith.constant 0.000000e+00 : f32
    %33 = vector.broadcast %cst_15 : f32 to vector<512x64xf32>
    %34 = arith.maximumf %32, %33 : vector<512x64xf32>
    %35 = arith.truncf %34 : vector<512x64xf32> to vector<512x64xbf16>
    %c176 = arith.constant 176 : index
    %c0_16 = arith.constant 0 : index
    %36 = vector.load %arg2[%c176, %c0_16] : memref<240x128xbf16, #tpu.memory_space<vmem>>, vector<64x128xbf16>
    %cst_17 = arith.constant dense<0.000000e+00> : vector<512x128xf32>
    %37 = tpu.matmul %35, %36, %cst_17 {dimension_numbers = #tpu.dot_dimension_numbers<[1], [0], [0], [1], [0, 0, 1, 1], [], []>} : vector<512x64xbf16>, vector<64x128xbf16>, vector<512x128xf32> -> vector<512x128xf32>
    %c3_18 = arith.constant 3 : index
    %c0_19 = arith.constant 0 : index
    %38 = vector.load %arg3[%c3_18, %c0_19] : memref<8x128xf32, #tpu.memory_space<vmem>>, vector<1x128xf32>
    %39 = vector.broadcast %38 : vector<1x128xf32> to vector<512x128xf32>
    %40 = arith.addf %37, %39 : vector<512x128xf32>
    %41 = vector.extract_strided_slice %40 {offsets = [0, 0], sizes = [512, 3], strides = [1, 1]} : vector<512x128xf32> to vector<512x3xf32>
    %cst_20 = arith.constant 0.000000e+00 : f32
    %42 = vector.broadcast %cst_20 : f32 to vector<512x3xf32>
    %43 = arith.subf %42, %41 : vector<512x3xf32>
    %44 = math.exp %43 : vector<512x3xf32>
    %cst_21 = arith.constant 1.000000e+00 : f32
    %45 = vector.broadcast %cst_21 : f32 to vector<512x3xf32>
    %46 = arith.addf %45, %44 : vector<512x3xf32>
    %47 = tpu.reciprocal %46 {approx = true} : vector<512x3xf32> -> vector<512x3xf32>
    %48 = arith.truncf %47 : vector<512x3xf32> to vector<512x3xbf16>
    %c0_22 = arith.constant 0 : index
    %c0_23 = arith.constant 0 : index
    %49 = vector.load %arg4[%c0_22, %c0_23] : memref<512x4xbf16, #tpu.memory_space<vmem>>, vector<512x3xbf16>
    tpu.vector_store %arg4[%c0_22, %c0_23], %48 {strides = array<i32>} : memref<512x4xbf16, #tpu.memory_space<vmem>>, vector<512x3xbf16>,
    return
  }
  func.func @transform_0(%arg0: i32) -> (i32, i32) {
    %c0_i32 = arith.constant 0 : i32
    %c0_i32_0 = arith.constant 0 : i32
    return %arg0, %c0_i32 : i32, i32
  }
  func.func @transform_1(%arg0: i32) -> (i32, i32) {
    %c0_i32 = arith.constant 0 : i32
    %c0_i32_0 = arith.constant 0 : i32
    %c0_i32_1 = arith.constant 0 : i32
    return %c0_i32, %c0_i32_0 : i32, i32
  }
  func.func @transform_2(%arg0: i32) -> (i32, i32) {
    %c0_i32 = arith.constant 0 : i32
    %c0_i32_0 = arith.constant 0 : i32
    %c0_i32_1 = arith.constant 0 : i32
    return %c0_i32, %c0_i32_0 : i32, i32
  }
  func.func @transform_3(%arg0: i32) -> (i32, i32) {
    %c0_i32 = arith.constant 0 : i32
    %c0_i32_0 = arith.constant 0 : i32
    return %arg0, %c0_i32 : i32, i32
  }
}

</mosaic_0001>

<llo_original>
// kernel: ngp_forward.1
$region0: #{ngp_forward.1}
  #allocation0 [shape = 'u32[]', space=smem, size = 0x4, offset = 0x4, fixed_abs, tag = 'smem constant byte address 0x4 - core index']
  #allocation1 [shape = 'u32[144,128]{1,0:T(1,128)}', space=vmem, size = 0x12000, scoped, tag = 'internal scratch']
  %s0 = inlined_call_operand.vmem [shape: bf16[1024,48], index: 0, kind: input, shape index: {}]
  %s1 = inlined_call_operand.vmem [shape: bf16[240,128], index: 1, kind: input, shape index: {}]
  %s2 = inlined_call_operand.vmem [shape: f32[8,128], index: 2, kind: input, shape index: {}]
  %s3 = inlined_call_operand.vmem [shape: bf16[1024,4], index: 3, kind: output, shape index: {}]
  %s4 = sld [smem:[#allocation0]]
  $region45: #{ngp_forward.1} parent=0
    _
  %s6 = ssub.s32 1, %s4
  %s7 = scalar_select 0, %s6, %s4
  loop: start=0, step=1, limit=4
  $region2: #{ngp_forward.1} parent=0 // loop_pre_header
    _
  $region3: #{ngp_forward.1} parent=0 // loop_header
    %s9 = sphi 0, %s13
    %p10 = scmp.ge.s32.totalorder %s9, 4
    %s19 = sphi 0, %s21
    %s22 = sphi 0, %s19
    %s23 = sphi 0, %s22
    %s39 = sphi 0, %s23
    %s43 = sphi 0, %s43
    %s45 = sphi 0, %s43
    %s46 = sphi 0, %s45
    %s60 = sphi 0, %s46
    %s64 = sphi 0, %s64
    %s66 = sphi 0, %s64
    %s67 = sphi 0, %s66
    %s81 = sphi 0, %s67
    %s87 = sphi 0, %s89
    %s90 = sphi 0, %s87
    %s91 = sphi 0, %s90
    %s107 = sphi 0, %s91
  $region4: #{ngp_forward.1} parent=0 // loop_header_branch
    %12 = sbr.rel (%p10) target = $region8
  $region5: #{ngp_forward.1} parent=0 // loop_body
    %s14 = ssub.s32 %s9, 1
    %s15 = ssub.s32 %s9, 2
    %s16 = sadd.s32 %s9, 1
    %s17 = ssub.s32 %s9, %s16
    %p18 = scmp.eq.s32.totalorder %s17, 0
    %s20 = sadd.s32 %s19, 1
    %s21 = scalar_select %p18, %s19, %s20
    %p24 = pneg %p18
    %p25 = scmp.eq.s32.totalorder %s9, 1
    %p26 = por %p24, %p25
    %p27 = scmp.ne.s32.totalorder %s19, %s22
    %p28 = scmp.eq.s32.totalorder %s9, 0
    %p29 = por %p27, %p28
    %p30 = scmp.ne.s32.totalorder %s19, %s22
    %p31 = scmp.eq.s32.totalorder %s14, 1
    %p32 = por %p30, %p31
    %p33 = scmp.ne.s32.totalorder %s22, %s23
    %p34 = scmp.eq.s32.totalorder %s14, 0
    %p35 = por %p33, %p34
    %p36 = scmp.ne.s32.totalorder %s22, %s23
    %p37 = scmp.eq.s32.totalorder %s15, 1
    %p38 = por %p36, %p37
    %p40 = scmp.ne.s32.totalorder %s23, %s39
    %p41 = scmp.eq.s32.totalorder %s15, 0
    %p42 = por %p40, %p41
    %s44 = sadd.s32 %s43, 1
    %p47 = scmp.eq.s32.totalorder %s9, 1
    %p48 = scmp.ne.s32.totalorder %s43, %s45
    %p49 = scmp.eq.s32.totalorder %s9, 0
    %p50 = por %p48, %p49
    %p51 = scmp.ne.s32.totalorder %s43, %s45
    %p52 = scmp.eq.s32.totalorder %s14, 1
    %p53 = por %p51, %p52
    %p54 = scmp.ne.s32.totalorder %s45, %s46
    %p55 = scmp.eq.s32.totalorder %s14, 0
    %p56 = por %p54, %p55
    %p57 = scmp.ne.s32.totalorder %s45, %s46
    %p58 = scmp.eq.s32.totalorder %s15, 1
    %p59 = por %p57, %p58
    %p61 = scmp.ne.s32.totalorder %s46, %s60
    %p62 = scmp.eq.s32.totalorder %s15, 0
    %p63 = por %p61, %p62
    %s65 = sadd.s32 %s64, 1
    %p68 = scmp.eq.s32.totalorder %s9, 1
    %p69 = scmp.ne.s32.totalorder %s64, %s66
    %p70 = scmp.eq.s32.totalorder %s9, 0
    %p71 = por %p69, %p70
    %p72 = scmp.ne.s32.totalorder %s64, %s66
    %p73 = scmp.eq.s32.totalorder %s14, 1
    %p74 = por %p72, %p73
    %p75 = scmp.ne.s32.totalorder %s66, %s67
    %p76 = scmp.eq.s32.totalorder %s14, 0
    %p77 = por %p75, %p76
    %p78 = scmp.ne.s32.totalorder %s66, %s67
    %p79 = scmp.eq.s32.totalorder %s15, 1
    %p80 = por %p78, %p79
    %p82 = scmp.ne.s32.totalorder %s67, %s81
    %p83 = scmp.eq.s32.totalorder %s15, 0
    %p84 = por %p82, %p83
    %s85 = ssub.s32 %s9, %s16
    %p86 = scmp.eq.s32.totalorder %s85, 0
    %s88 = sadd.s32 %s87, 1
    %s89 = scalar_select %p86, %s87, %s88
    %p92 = pneg %p86
    %p93 = scmp.eq.s32.totalorder %s9, 1
    %p94 = por %p92, %p93
    %p95 = scmp.ne.s32.totalorder %s87, %s90
    %p96 = scmp.eq.s32.totalorder %s9, 0
    %p97 = por %p95, %p96
    %p98 = scmp.ne.s32.totalorder %s87, %s90
    %p99 = scmp.eq.s32.totalorder %s14, 1
    %p100 = por %p98, %p99
    %p101 = scmp.ne.s32.totalorder %s90, %s91
    %p102 = scmp.eq.s32.totalorder %s14, 0
    %p103 = por %p101, %p102
    %p104 = scmp.ne.s32.totalorder %s90, %s91
    %p105 = scmp.eq.s32.totalorder %s15, 1
    %p106 = por %p104, %p105
    %p108 = scmp.ne.s32.totalorder %s91, %s107
    %p109 = scmp.eq.s32.totalorder %s15, 0
    %p110 = por %p108, %p109
    %p111 = scmp.le.s32.totalorder 1, %s9
    %p112 = scmp.lt.s32.totalorder %s9, 3
    %p113 = pnand %p111, %p112
    %p114 = pneg %p113
    // Predicated region
    $region9: #{ngp_forward.1} parent=5 // pred_check
      _
    $region10: #{ngp_forward.1} parent=5 // pred_check_branch
      %116 = sbr.rel (%p113) target = $region12
    $region11: #{ngp_forward.1} parent=5 // pred_region
      %s117 = ssub.s32 %s9, 1
      // Predicated region
      $region13: #{ngp_forward.1} parent=11 // pred_check
        %p118 = pneg %p56
      $region14: #{ngp_forward.1} parent=11 // pred_check_branch
        %120 = sbr.rel (%p118) target = $region16
      $region15: #{ngp_forward.1} parent=11 // pred_region
        _
      $region16: #{ngp_forward.1} parent=11 // pred_fallthru
        _
      // Predicated region
      $region17: #{ngp_forward.1} parent=11 // pred_check
        %p121 = pneg %p77
      $region18: #{ngp_forward.1} parent=11 // pred_check_branch
        %123 = sbr.rel (%p121) target = $region20
      $region19: #{ngp_forward.1} parent=11 // pred_region
        _
      $region20: #{ngp_forward.1} parent=11 // pred_fallthru
        _
    $region12: #{ngp_forward.1} parent=5 // pred_fallthru
      _
    %p124 = scmp.lt.s32.totalorder %s9, 2
    // Predicated region
    $region21: #{ngp_forward.1} parent=5 // pred_check
      %p125 = pneg %p124
    $region22: #{ngp_forward.1} parent=5 // pred_check_branch
      %127 = sbr.rel (%p125) target = $region24
    $region23: #{ngp_forward.1} parent=5 // pred_region
      // Predicated region
      $region25: #{ngp_forward.1} parent=23 // pred_check
        %p128 = pneg %p29
      $region26: #{ngp_forward.1} parent=23 // pred_check_branch
        %130 = sbr.rel (%p128) target = $region28
      $region27: #{ngp_forward.1} parent=23 // pred_region
        %s131 = smul.u32 64, %s9
        %p132 = scmp.lt.s32.totalorder %s131, 127
        %s133 = scalar_select %p132, %s131, 127
        %s134 = smul.addr %s133, 4
        %s135 = scalar_lea.vmem %s0, %s134
        %s136 = smul.u32 64, %s9
      $region28: #{ngp_forward.1} parent=23 // pred_fallthru
        _
    $region24: #{ngp_forward.1} parent=5 // pred_fallthru
      _
    %p137 = scmp.le.s32.totalorder 1, %s9
    %p138 = scmp.lt.s32.totalorder %s9, 3
    %p139 = pnand %p137, %p138
    %p140 = pneg %p139
    // Predicated region
    $region29: #{ngp_forward.1} parent=5 // pred_check
      _
    $region30: #{ngp_forward.1} parent=5 // pred_check_branch
      %142 = sbr.rel (%p139) target = $region32
    $region31: #{ngp_forward.1} parent=5 // pred_region
      %s143 = ssub.s32 %s9, 1
      %s144 = smul.u32 64, %s14
      %p145 = scmp.lt.s32.totalorder %s144, 127
      %s146 = scalar_select %p145, %s144, 127
      %s147 = smul.addr %s146, 4
      %s148 = scalar_lea.vmem %s0, %s147
      %p149 = pneg %p35
      %p150 = pneg %p32
      %p151 = pneg %p56
      %p152 = pneg %p53
      %p153 = pneg %p77
      %p154 = pneg %p74
      %p155 = pneg %p103
      %p156 = pneg %p100
      %s157 = smul.u32 64, %s14
      %p158 = scmp.lt.s32.totalorder %s157, 127
      %s159 = scalar_select %p158, %s157, 127
      %s160 = smul.addr %s159, 4
      %s161 = scalar_lea.vmem %s3, %s160
      %s162 = smul.u32 64, %s14
      %p163 = scmp.lt.s32.totalorder %s162, 127
      %s164 = scalar_select %p163, %s162, 127
      %s165 = smul.addr %s164, 4
      %s166 = scalar_lea.vmem %s0, %s165
      %s167 = smul.u32 64, %s14
      %s168 = smul.u32 64, %s14
      %p169 = scmp.lt.s32.totalorder %s168, 127
      %s170 = scalar_select %p169, %s168, 127
      %s171 = smul.addr %s170, 4
      %s172 = scalar_lea.vmem %s3, %s171
      %s173 = smul.u32 64, %s14
      %v175 = vld [vmem:[%s166] sm:$0xf]
      %v176 = vld [vmem:[%s166 + $0x4] sm:$0xf]
      %v177 = vld [vmem:[%s166 + $0x8] sm:$0xf]
      %v178 = vld [vmem:[%s166 + $0xc] sm:$0xf]
      %v179 = vld [vmem:[%s166 + $0x10] sm:$0xf]
      %v180 = vld [vmem:[%s166 + $0x14] sm:$0xf]
      %v181 = vld [vmem:[%s166 + $0x18] sm:$0xf]
      %v182 = vld [vmem:[%s166 + $0x1c] sm:$0xf]
      %v183 = vld [vmem:[%s166 + $0x20] sm:$0xf]
      %v184 = vld [vmem:[%s166 + $0x24] sm:$0xf]
      %v185 = vld [vmem:[%s166 + $0x28] sm:$0xf]
      %v186 = vld [vmem:[%s166 + $0x2c] sm:$0xf]
      %v187 = vld [vmem:[%s166 + $0x30] sm:$0xf]
      %v188 = vld [vmem:[%s166 + $0x34] sm:$0xf]
      %v189 = vld [vmem:[%s166 + $0x38] sm:$0xf]
      %v190 = vld [vmem:[%s166 + $0x3c] sm:$0xf]
      %v191 = vld [vmem:[%s166 + $0x40] sm:$0xf]
      %v192 = vld [vmem:[%s166 + $0x44] sm:$0xf]
      %v193 = vld [vmem:[%s166 + $0x48] sm:$0xf]
      %v194 = vld [vmem:[%s166 + $0x4c] sm:$0xf]
      %v195 = vld [vmem:[%s166 + $0x50] sm:$0xf]
      %v196 = vld [vmem:[%s166 + $0x54] sm:$0xf]
      %v197 = vld [vmem:[%s166 + $0x58] sm:$0xf]
      %v198 = vld [vmem:[%s166 + $0x5c] sm:$0xf]
      %v199 = vld [vmem:[%s166 + $0x60] sm:$0xf]
      %v200 = vld [vmem:[%s166 + $0x64] sm:$0xf]
      %v201 = vld [vmem:[%s166 + $0x68] sm:$0xf]
      %v202 = vld [vmem:[%s166 + $0x6c] sm:$0xf]
      %v203 = vld [vmem:[%s166 + $0x70] sm:$0xf]
      %v204 = vld [vmem:[%s166 + $0x74] sm:$0xf]
      %v205 = vld [vmem:[%s166 + $0x78] sm:$0xf]
      %v206 = vld [vmem:[%s166 + $0x7c] sm:$0xf]
      %v207 = vld [vmem:[%s166 + $0x80] sm:$0xf]
      %v208 = vld [vmem:[%s166 + $0x84] sm:$0xf]
      %v209 = vld [vmem:[%s166 + $0x88] sm:$0xf]
      %v210 = vld [vmem:[%s166 + $0x8c] sm:$0xf]
      %v211 = vld [vmem:[%s166 + $0x90] sm:$0xf]
      %v212 = vld [vmem:[%s166 + $0x94] sm:$0xf]
      %v213 = vld [vmem:[%s166 + $0x98] sm:$0xf]
      %v214 = vld [vmem:[%s166 + $0x9c] sm:$0xf]
      %v215 = vld [vmem:[%s166 + $0xa0] sm:$0xf]
      %v216 = vld [vmem:[%s166 + $0xa4] sm:$0xf]
      %v217 = vld [vmem:[%s166 + $0xa8] sm:$0xf]
      %v218 = vld [vmem:[%s166 + $0xac] sm:$0xf]
      %v219 = vld [vmem:[%s166 + $0xb0] sm:$0xf]
      %v220 = vld [vmem:[%s166 + $0xb4] sm:$0xf]
      %v221 = vld [vmem:[%s166 + $0xb8] sm:$0xf]
      %v222 = vld [vmem:[%s166 + $0xbc] sm:$0xf]
      %v223 = vld [vmem:[%s166 + $0xc0] sm:$0xf]
      %v224 = vld [vmem:[%s166 + $0xc4] sm:$0xf]
      %v225 = vld [vmem:[%s166 + $0xc8] sm:$0xf]
      %v226 = vld [vmem:[%s166 + $0xcc] sm:$0xf]
      %v227 = vld [vmem:[%s166 + $0xd0] sm:$0xf]
      %v228 = vld [vmem:[%s166 + $0xd4] sm:$0xf]
      %v229 = vld [vmem:[%s166 + $0xd8] sm:$0xf]
      %v230 = vld [vmem:[%s166 + $0xdc] sm:$0xf]
      %v231 = vld [vmem:[%s166 + $0xe0] sm:$0xf]
      %v232 = vld [vmem:[%s166 + $0xe4] sm:$0xf]
      %v233 = vld [vmem:[%s166 + $0xe8] sm:$0xf]
      %v234 = vld [vmem:[%s166 + $0xec] sm:$0xf]
      %v235 = vld [vmem:[%s166 + $0xf0] sm:$0xf]
      %v236 = vld [vmem:[%s166 + $0xf4] sm:$0xf]
      %v237 = vld [vmem:[%s166 + $0xf8] sm:$0xf]
      %v238 = vld [vmem:[%s166 + $0xfc] sm:$0xf]
      %v239 = vld [vmem:[%s1] sm:$0xf]
      %v240 = vld [vmem:[%s1 + $0x4] sm:$0xf]
      %v241 = vld [vmem:[%s1 + $0x8] sm:$0xf]
      %v242 = vld [vmem:[%s1 + $0xc] sm:$0xf]
      %v243 = vld [vmem:[%s1 + $0x10] sm:$0xf]
      %v244 = vld [vmem:[%s1 + $0x14] sm:$0xf]
      %v245 = vld [vmem:[%s2] sm:$0x1]
      %v246 = vlaneseq
      %v247 = vshrl.u32 %v246, 7
      %v248 = vsub.s32 0, %v247
      %v249 = vrot.slane %v245, %v248
      %v314 = vunpack.c.l.b16 %v175
      %v315 = vunpack.c.l.b16 %v176
      %v316 = vunpack.c.l.b16 %v177
      %v317 = vunpack.c.l.b16 %v178
      %v318 = vunpack.c.l.b16 %v179
      %v319 = vunpack.c.l.b16 %v180
      %v320 = vunpack.c.l.b16 %v181
      %v321 = vunpack.c.l.b16 %v182
      %v322 = vunpack.c.l.b16 %v183
      %v323 = vunpack.c.l.b16 %v184
      %v324 = vunpack.c.l.b16 %v185
      %v325 = vunpack.c.l.b16 %v186
      %v326 = vunpack.c.l.b16 %v187
      %v327 = vunpack.c.l.b16 %v188
      %v328 = vunpack.c.l.b16 %v189
      %v329 = vunpack.c.l.b16 %v190
      %v330 = vunpack.c.l.b16 %v191
      %v331 = vunpack.c.l.b16 %v192
      %v332 = vunpack.c.l.b16 %v193
      %v333 = vunpack.c.l.b16 %v194
      %v334 = vunpack.c.l.b16 %v195
      %v335 = vunpack.c.l.b16 %v196
      %v336 = vunpack.c.l.b16 %v197
      %v337 = vunpack.c.l.b16 %v198
      %v338 = vunpack.c.l.b16 %v199
      %v339 = vunpack.c.l.b16 %v200
      %v340 = vunpack.c.l.b16 %v201
      %v341 = vunpack.c.l.b16 %v202
      %v342 = vunpack.c.l.b16 %v203
      %v343 = vunpack.c.l.b16 %v204
      %v344 = vunpack.c.l.b16 %v205
      %v345 = vunpack.c.l.b16 %v206
      %v346 = vunpack.c.l.b16 %v207
      %v347 = vunpack.c.l.b16 %v208
      %v348 = vunpack.c.l.b16 %v209
      %v349 = vunpack.c.l.b16 %v210
      %v350 = vunpack.c.l.b16 %v211
      %v351 = vunpack.c.l.b16 %v212
      %v352 = vunpack.c.l.b16 %v213
      %v353 = vunpack.c.l.b16 %v214
      %v354 = vunpack.c.l.b16 %v215
      %v355 = vunpack.c.l.b16 %v216
      %v356 = vunpack.c.l.b16 %v217
      %v357 = vunpack.c.l.b16 %v218
      %v358 = vunpack.c.l.b16 %v219
      %v359 = vunpack.c.l.b16 %v220
      %v360 = vunpack.c.l.b16 %v221
      %v361 = vunpack.c.l.b16 %v222
      %v362 = vunpack.c.l.b16 %v223
      %v363 = vunpack.c.l.b16 %v224
      %v364 = vunpack.c.l.b16 %v225
      %v365 = vunpack.c.l.b16 %v226
      %v366 = vunpack.c.l.b16 %v227
      %v367 = vunpack.c.l.b16 %v228
      %v368 = vunpack.c.l.b16 %v229
      %v369 = vunpack.c.l.b16 %v230
      %v370 = vunpack.c.l.b16 %v231
      %v371 = vunpack.c.l.b16 %v232
      %v372 = vunpack.c.l.b16 %v233
      %v373 = vunpack.c.l.b16 %v234
      %v374 = vunpack.c.l.b16 %v235
      %v375 = vunpack.c.l.b16 %v236
      %v376 = vunpack.c.l.b16 %v237
      %v377 = vunpack.c.l.b16 %v238
      %v378 = vpack.c.b16 %v315, %v314
      %v379 = vpack.c.b16 %v317, %v316
      %v380 = vpack.c.b16 %v319, %v318
      %v381 = vpack.c.b16 %v321, %v320
      %v382 = vpack.c.b16 %v323, %v322
      %v383 = vpack.c.b16 %v325, %v324
      %v384 = vpack.c.b16 %v327, %v326
      %v385 = vpack.c.b16 %v329, %v328
      %v386 = vpack.c.b16 %v331, %v330
      %v387 = vpack.c.b16 %v333, %v332
      %v388 = vpack.c.b16 %v335, %v334
      %v389 = vpack.c.b16 %v337, %v336
      %v390 = vpack.c.b16 %v339, %v338
      %v391 = vpack.c.b16 %v341, %v340
      %v392 = vpack.c.b16 %v343, %v342
      %v393 = vpack.c.b16 %v345, %v344
      %v394 = vpack.c.b16 %v347, %v346
      %v395 = vpack.c.b16 %v349, %v348
      %v396 = vpack.c.b16 %v351, %v350
      %v397 = vpack.c.b16 %v353, %v352
      %v398 = vpack.c.b16 %v355, %v354
      %v399 = vpack.c.b16 %v357, %v356
      %v400 = vpack.c.b16 %v359, %v358
      %v401 = vpack.c.b16 %v361, %v360
      %v402 = vpack.c.b16 %v363, %v362
      %v403 = vpack.c.b16 %v365, %v364
      %v404 = vpack.c.b16 %v367, %v366
      %v405 = vpack.c.b16 %v369, %v368
      %v406 = vpack.c.b16 %v371, %v370
      %v407 = vpack.c.b16 %v373, %v372
      %v408 = vpack.c.b16 %v375, %v374
      %v409 = vpack.c.b16 %v377, %v376
      %v416 = vunpack.c.l.b16 %v239
      %v417 = vunpack.c.l.b16 %v240
      %v418 = vunpack.c.l.b16 %v241
      %v419 = vunpack.c.l.b16 %v242
      %v420 = vunpack.c.l.b16 %v243
      %v421 = vunpack.c.l.b16 %v244
      %v422 = vpack.c.b16 %v417, %v416
      %v423 = vpack.c.b16 %v419, %v418
      %v424 = vpack.c.b16 %v421, %v420
      %vm428 = vcmask 392192
      %v430 = vsel %vm428, %v378, 0
      %v433 = vsel %vm428, %v379, 0
      %v436 = vsel %vm428, %v380, 0
      %v439 = vsel %vm428, %v381, 0
      %v442 = vsel %vm428, %v382, 0
      %v445 = vsel %vm428, %v383, 0
      %v448 = vsel %vm428, %v384, 0
      %v451 = vsel %vm428, %v385, 0
      %v454 = vsel %vm428, %v386, 0
      %v457 = vsel %vm428, %v387, 0
      %v460 = vsel %vm428, %v388, 0
      %v463 = vsel %vm428, %v389, 0
      %v466 = vsel %vm428, %v390, 0
      %v469 = vsel %vm428, %v391, 0
      %v472 = vsel %vm428, %v392, 0
      %v475 = vsel %vm428, %v393, 0
      %v478 = vsel %vm428, %v394, 0
      %v481 = vsel %vm428, %v395, 0
      %v484 = vsel %vm428, %v396, 0
      %v487 = vsel %vm428, %v397, 0
      %v490 = vsel %vm428, %v398, 0
      %v493 = vsel %vm428, %v399, 0
      %v496 = vsel %vm428, %v400, 0
      %v499 = vsel %vm428, %v401, 0
      %v502 = vsel %vm428, %v402, 0
      %v505 = vsel %vm428, %v403, 0
      %v508 = vsel %vm428, %v404, 0
      %v511 = vsel %vm428, %v405, 0
      %v514 = vsel %vm428, %v406, 0
      %v517 = vsel %vm428, %v407, 0
      %v520 = vsel %vm428, %v408, 0
      %v523 = vsel %vm428, %v409, 0
      %525 = vmatprep.subr.bf16.mxu0 0
      %526 = vmatpush1.bf16.msra.mxu0 %v422
      %527 = vmatprep.subr.bf16.mxu0 0
      %528 = vmatpush1.bf16.msra.mxu0 %v423
      %529 = vmatprep.subr.bf16.mxu0 0
      %530 = vmatpush1.bf16.msra.mxu0 %v424
      %531 = vmatprep.subr.bf16.mxu0 0
      %532 = vmatpush1.bf16.msra.mxu0 0
      %533 = vmatprep.subr.bf16.mxu0 0
      %534 = vmatpush1.bf16.msra.mxu0 0
      %535 = vmatprep.subr.bf16.mxu0 0
      %536 = vmatpush1.bf16.msra.mxu0 0
      %537 = vmatprep.subr.bf16.mxu0 0
      %538 = vmatpush1.bf16.msra.mxu0 0
      %539 = vmatprep.subr.bf16.mxu0 0
      %540 = vmatpush1.bf16.msra.mxu0 0
      %541 = vmatprep.subr.bf16.mxu0 0
      %542 = vmatpush1.bf16.msra.mxu0 0
      %543 = vmatprep.subr.bf16.mxu0 0
      %544 = vmatpush1.bf16.msra.mxu0 0
      %545 = vmatprep.subr.bf16.mxu0 0
      %546 = vmatpush1.bf16.msra.mxu0 0
      %547 = vmatprep.subr.bf16.mxu0 0
      %548 = vmatpush1.bf16.msra.mxu0 0
      %549 = vmatprep.subr.bf16.mxu0 0
      %550 = vmatpush1.bf16.msra.mxu0 0
      %551 = vmatprep.subr.bf16.mxu0 0
      %552 = vmatpush1.bf16.msra.mxu0 0
      %553 = vmatprep.subr.bf16.mxu0 0
      %554 = vmatpush1.bf16.msra.mxu0 0
      %555 = vmatprep.subr.bf16.mxu0 0
      %556 = vmatpush1.bf16.msra.mxu0 0
      %557 = vmatprep.mubr.bf16.mxu0 0
      %558 = vmatmul.mubr.bf16.gmra.mrb[0].mxu0 %v430
      %v559 = vpop.f32.mrb[0].mxu0
      %v560 = vadd.f32 %v249, %v559
      %v561 = vpop.f32.mrb[0].mxu0
      %v562 = vpop.f32.mrb[0].mxu0
      %v563 = vadd.f32 %v249, %v562
      %v564 = vpop.f32.mrb[0].mxu0
      %565 = vmatprep.mubr.bf16.mxu0 0
      %566 = vmatmul.mubr.bf16.gmra.mrb[0].mxu0 %v433
      %v567 = vpop.f32.mrb[0].mxu0
      %v568 = vadd.f32 %v249, %v567
      %v569 = vpop.f32.mrb[0].mxu0
      %v570 = vpop.f32.mrb[0].mxu0
      %v571 = vadd.f32 %v249, %v570
      %v572 = vpop.f32.mrb[0].mxu0
      %573 = vmatprep.mubr.bf16.mxu0 0
      %574 = vmatmul.mubr.bf16.gmra.mrb[0].mxu0 %v436
      %v575 = vpop.f32.mrb[0].mxu0
      %v576 = vadd.f32 %v249, %v575
      %v577 = vpop.f32.mrb[0].mxu0
      %v578 = vpop.f32.mrb[0].mxu0
      %v579 = vadd.f32 %v249, %v578
      %v580 = vpop.f32.mrb[0].mxu0
      %581 = vmatprep.mubr.bf16.mxu0 0
      %582 = vmatmul.mubr.bf16.gmra.mrb[0].mxu0 %v439
      %v583 = vpop.f32.mrb[0].mxu0
      %v584 = vadd.f32 %v249, %v583
      %v585 = vpop.f32.mrb[0].mxu0
      %v586 = vpop.f32.mrb[0].mxu0
      %v587 = vadd.f32 %v249, %v586
      %v588 = vpop.f32.mrb[0].mxu0
      %589 = vmatprep.mubr.bf16.mxu0 0
      %590 = vmatmul.mubr.bf16.gmra.mrb[0].mxu0 %v442
      %v591 = vpop.f32.mrb[0].mxu0
      %v592 = vadd.f32 %v249, %v591
      %v593 = vpop.f32.mrb[0].mxu0
      %v594 = vpop.f32.mrb[0].mxu0
      %v595 = vadd.f32 %v249, %v594
      %v596 = vpop.f32.mrb[0].mxu0
      %597 = vmatprep.mubr.bf16.mxu0 0
      %598 = vmatmul.mubr.bf16.gmra.mrb[0].mxu0 %v445
      %v599 = vpop.f32.mrb[0].mxu0
      %v600 = vadd.f32 %v249, %v599
      %v601 = vpop.f32.mrb[0].mxu0
      %v602 = vpop.f32.mrb[0].mxu0
      %v603 = vadd.f32 %v249, %v602
      %v604 = vpop.f32.mrb[0].mxu0
      %605 = vmatprep.mubr.bf16.mxu0 0
      %606 = vmatmul.mubr.bf16.gmra.mrb[0].mxu0 %v448
      %v607 = vpop.f32.mrb[0].mxu0
      %v608 = vadd.f32 %v249, %v607
      %v609 = vpop.f32.mrb[0].mxu0
      %v610 = vpop.f32.mrb[0].mxu0
      %v611 = vadd.f32 %v249, %v610
      %v612 = vpop.f32.mrb[0].mxu0
      %613 = vmatprep.mubr.bf16.mxu0 0
      %614 = vmatmul.mubr.bf16.gmra.mrb[0].mxu0 %v451
      %v615 = vpop.f32.mrb[0].mxu0
      %v616 = vadd.f32 %v249, %v615
      %v617 = vpop.f32.mrb[0].mxu0
      %v618 = vpop.f32.mrb[0].mxu0
      %v619 = vadd.f32 %v249, %v618
      %v620 = vpop.f32.mrb[0].mxu0
      %621 = vmatprep.mubr.bf16.mxu0 0
      %622 = vmatmul.mubr.bf16.gmra.mrb[0].mxu0 %v454
      %v623 = vpop.f32.mrb[0].mxu0
      %v624 = vadd.f32 %v249, %v623
      %v625 = vpop.f32.mrb[0].mxu0
      %v626 = vpop.f32.mrb[0].mxu0
      %v627 = vadd.f32 %v249, %v626
      %v628 = vpop.f32.mrb[0].mxu0
      %629 = vmatprep.mubr.bf16.mxu0 0
      %630 = vmatmul.mubr.bf16.gmra.mrb[0].mxu0 %v457
      %v631 = vpop.f32.mrb[0].mxu0
      %v632 = vadd.f32 %v249, %v631
      %v633 = vpop.f32.mrb[0].mxu0
      %v634 = vpop.f32.mrb[0].mxu0
      %v635 = vadd.f32 %v249, %v634
      %v636 = vpop.f32.mrb[0].mxu0
      %637 = vmatprep.mubr.bf16.mxu0 0
      %638 = vmatmul.mubr.bf16.gmra.mrb[0].mxu0 %v460
      %v639 = vpop.f32.mrb[0].mxu0
      %v640 = vadd.f32 %v249, %v639
      %v641 = vpop.f32.mrb[0].mxu0
      %v642 = vpop.f32.mrb[0].mxu0
      %v643 = vadd.f32 %v249, %v642
      %v644 = vpop.f32.mrb[0].mxu0
      %645 = vmatprep.mubr.bf16.mxu0 0
      %646 = vmatmul.mubr.bf16.gmra.mrb[0].mxu0 %v463
      %v647 = vpop.f32.mrb[0].mxu0
      %v648 = vadd.f32 %v249, %v647
      %v649 = vpop.f32.mrb[0].mxu0
      %v650 = vpop.f32.mrb[0].mxu0
      %v651 = vadd.f32 %v249, %v650
      %v652 = vpop.f32.mrb[0].mxu0
      %653 = vmatprep.mubr.bf16.mxu0 0
      %654 = vmatmul.mubr.bf16.gmra.mrb[0].mxu0 %v466
      %v655 = vpop.f32.mrb[0].mxu0
      %v656 = vadd.f32 %v249, %v655
      %v657 = vpop.f32.mrb[0].mxu0
      %v658 = vpop.f32.mrb[0].mxu0
      %v659 = vadd.f32 %v249, %v658
      %v660 = vpop.f32.mrb[0].mxu0
      %661 = vmatprep.mubr.bf16.mxu0 0
      %662 = vmatmul.mubr.bf16.gmra.mrb[0].mxu0 %v469
      %v663 = vpop.f32.mrb[0].mxu0
      %v664 = vadd.f32 %v249, %v663
      %v665 = vpop.f32.mrb[0].mxu0
      %v666 = vpop.f32.mrb[0].mxu0
      %v667 = vadd.f32 %v249, %v666
      %v668 = vpop.f32.mrb[0].mxu0
      %669 = vmatprep.mubr.bf16.mxu0 0
      %670 = vmatmul.mubr.bf16.gmra.mrb[0].mxu0 %v472
      %v671 = vpop.f32.mrb[0].mxu0
      %v672 = vadd.f32 %v249, %v671
      %v673 = vpop.f32.mrb[0].mxu0
      %v674 = vpop.f32.mrb[0].mxu0
      %v675 = vadd.f32 %v249, %v674
      %v676 = vpop.f32.mrb[0].mxu0
      %677 = vmatprep.mubr.bf16.mxu0 0
      %678 = vmatmul.mubr.bf16.gmra.mrb[0].mxu0 %v475
      %v679 = vpop.f32.mrb[0].mxu0
      %v680 = vadd.f32 %v249, %v679
      %v681 = vpop.f32.mrb[0].mxu0
      %v682 = vpop.f32.mrb[0].mxu0
      %v683 = vadd.f32 %v249, %v682
      %v684 = vpop.f32.mrb[0].mxu0
      %685 = vmatprep.mubr.bf16.mxu0 0
      %686 = vmatmul.mubr.bf16.gmra.mrb[0].mxu0 %v478
      %v687 = vpop.f32.mrb[0].mxu0
      %v688 = vadd.f32 %v249, %v687
      %v689 = vpop.f32.mrb[0].mxu0
      %v690 = vpop.f32.mrb[0].mxu0
      %v691 = vadd.f32 %v249, %v690
      %v692 = vpop.f32.mrb[0].mxu0
      %693 = vmatprep.mubr.bf16.mxu0 0
      %694 = vmatmul.mubr.bf16.gmra.mrb[0].mxu0 %v481
      %v695 = vpop.f32.mrb[0].mxu0
      %v696 = vadd.f32 %v249, %v695
      %v697 = vpop.f32.mrb[0].mxu0
      %v698 = vpop.f32.mrb[0].mxu0
      %v699 = vadd.f32 %v249, %v698
      %v700 = vpop.f32.mrb[0].mxu0
      %701 = vmatprep.mubr.bf16.mxu0 0
      %702 = vmatmul.mubr.bf16.gmra.mrb[0].mxu0 %v484
      %v703 = vpop.f32.mrb[0].mxu0
      %v704 = vadd.f32 %v249, %v703
      %v705 = vpop.f32.mrb[0].mxu0
      %v706 = vpop.f32.mrb[0].mxu0
      %v707 = vadd.f32 %v249, %v706
      %v708 = vpop.f32.mrb[0].mxu0
      %709 = vmatprep.mubr.bf16.mxu0 0
      %710 = vmatmul.mubr.bf16.gmra.mrb[0].mxu0 %v487
      %v711 = vpop.f32.mrb[0].mxu0
      %v712 = vadd.f32 %v249, %v711
      %v713 = vpop.f32.mrb[0].mxu0
      %v714 = vpop.f32.mrb[0].mxu0
      %v715 = vadd.f32 %v249, %v714
      %v716 = vpop.f32.mrb[0].mxu0
      %717 = vmatprep.mubr.bf16.mxu0 0
      %718 = vmatmul.mubr.bf16.gmra.mrb[0].mxu0 %v490
      %v719 = vpop.f32.mrb[0].mxu0
      %v720 = vadd.f32 %v249, %v719
      %v721 = vpop.f32.mrb[0].mxu0
      %v722 = vpop.f32.mrb[0].mxu0
      %v723 = vadd.f32 %v249, %v722
      %v724 = vpop.f32.mrb[0].mxu0
      %725 = vmatprep.mubr.bf16.mxu0 0
      %726 = vmatmul.mubr.bf16.gmra.mrb[0].mxu0 %v493
      %v727 = vpop.f32.mrb[0].mxu0
      %v728 = vadd.f32 %v249, %v727
      %v729 = vpop.f32.mrb[0].mxu0
      %v730 = vpop.f32.mrb[0].mxu0
      %v731 = vadd.f32 %v249, %v730
      %v732 = vpop.f32.mrb[0].mxu0
      %733 = vmatprep.mubr.bf16.mxu0 0
      %734 = vmatmul.mubr.bf16.gmra.mrb[0].mxu0 %v496
      %v735 = vpop.f32.mrb[0].mxu0
      %v736 = vadd.f32 %v249, %v735
      %v737 = vpop.f32.mrb[0].mxu0
      %v738 = vpop.f32.mrb[0].mxu0
      %v739 = vadd.f32 %v249, %v738
      %v740 = vpop.f32.mrb[0].mxu0
      %741 = vmatprep.mubr.bf16.mxu0 0
      %742 = vmatmul.mubr.bf16.gmra.mrb[0].mxu0 %v499
      %v743 = vpop.f32.mrb[0].mxu0
      %v744 = vadd.f32 %v249, %v743
      %v745 = vpop.f32.mrb[0].mxu0
      %v746 = vpop.f32.mrb[0].mxu0
      %v747 = vadd.f32 %v249, %v746
      %v748 = vpop.f32.mrb[0].mxu0
      %749 = vmatprep.mubr.bf16.mxu0 0
      %750 = vmatmul.mubr.bf16.gmra.mrb[0].mxu0 %v502
      %v751 = vpop.f32.mrb[0].mxu0
      %v752 = vadd.f32 %v249, %v751
      %v753 = vpop.f32.mrb[0].mxu0
      %v754 = vpop.f32.mrb[0].mxu0
      %v755 = vadd.f32 %v249, %v754
      %v756 = vpop.f32.mrb[0].mxu0
      %757 = vmatprep.mubr.bf16.mxu0 0
      %758 = vmatmul.mubr.bf16.gmra.mrb[0].mxu0 %v505
      %v759 = vpop.f32.mrb[0].mxu0
      %v760 = vadd.f32 %v249, %v759
      %v761 = vpop.f32.mrb[0].mxu0
      %v762 = vpop.f32.mrb[0].mxu0
      %v763 = vadd.f32 %v249, %v762
      %v764 = vpop.f32.mrb[0].mxu0
      %765 = vmatprep.mubr.bf16.mxu0 0
      %766 = vmatmul.mubr.bf16.gmra.mrb[0].mxu0 %v508
      %v767 = vpop.f32.mrb[0].mxu0
      %v768 = vadd.f32 %v249, %v767
      %v769 = vpop.f32.mrb[0].mxu0
      %v770 = vpop.f32.mrb[0].mxu0
      %v771 = vadd.f32 %v249, %v770
      %v772 = vpop.f32.mrb[0].mxu0
      %773 = vmatprep.mubr.bf16.mxu0 0
      %774 = vmatmul.mubr.bf16.gmra.mrb[0].mxu0 %v511
      %v775 = vpop.f32.mrb[0].mxu0
      %v776 = vadd.f32 %v249, %v775
      %v777 = vpop.f32.mrb[0].mxu0
      %v778 = vpop.f32.mrb[0].mxu0
      %v779 = vadd.f32 %v249, %v778
      %v780 = vpop.f32.mrb[0].mxu0
      %781 = vmatprep.mubr.bf16.mxu0 0
      %782 = vmatmul.mubr.bf16.gmra.mrb[0].mxu0 %v514
      %v783 = vpop.f32.mrb[0].mxu0
      %v784 = vadd.f32 %v249, %v783
      %v785 = vpop.f32.mrb[0].mxu0
      %v786 = vpop.f32.mrb[0].mxu0
      %v787 = vadd.f32 %v249, %v786
      %v788 = vpop.f32.mrb[0].mxu0
      %789 = vmatprep.mubr.bf16.mxu0 0
      %790 = vmatmul.mubr.bf16.gmra.mrb[0].mxu0 %v517
      %v791 = vpop.f32.mrb[0].mxu0
      %v792 = vadd.f32 %v249, %v791
      %v793 = vpop.f32.mrb[0].mxu0
      %v794 = vpop.f32.mrb[0].mxu0
      %v795 = vadd.f32 %v249, %v794
      %v796 = vpop.f32.mrb[0].mxu0
      %797 = vmatprep.mubr.bf16.mxu0 0
      %798 = vmatmul.mubr.bf16.gmra.mrb[0].mxu0 %v520
      %v799 = vpop.f32.mrb[0].mxu0
      %v800 = vadd.f32 %v249, %v799
      %v801 = vpop.f32.mrb[0].mxu0
      %v802 = vpop.f32.mrb[0].mxu0
      %v803 = vadd.f32 %v249, %v802
      %v804 = vpop.f32.mrb[0].mxu0
      %805 = vmatprep.mubr.bf16.mxu0 0
      %806 = vmatmul.mubr.bf16.gmra.mrb[0].mxu0 %v523
      %v807 = vpop.f32.mrb[0].mxu0
      %v808 = vadd.f32 %v249, %v807
      %v809 = vpop.f32.mrb[0].mxu0
      %v810 = vpop.f32.mrb[0].mxu0
      %v811 = vadd.f32 %v249, %v810
      %v812 = vpop.f32.mrb[0].mxu0
      %813 = vdwg.mxu0
      %v814 = vmax.f32 %v560, 0.0
      %v815 = vmax.f32 %v563, 0.0
      %v816 = vmax.f32 %v568, 0.0
      %v817 = vmax.f32 %v571, 0.0
      %v818 = vmax.f32 %v576, 0.0
      %v819 = vmax.f32 %v579, 0.0
      %v820 = vmax.f32 %v584, 0.0
      %v821 = vmax.f32 %v587, 0.0
      %v822 = vmax.f32 %v592, 0.0
      %v823 = vmax.f32 %v595, 0.0
      %v824 = vmax.f32 %v600, 0.0
      %v825 = vmax.f32 %v603, 0.0
      %v826 = vmax.f32 %v608, 0.0
      %v827 = vmax.f32 %v611, 0.0
      %v828 = vmax.f32 %v616, 0.0
      %v829 = vmax.f32 %v619, 0.0
      %v830 = vmax.f32 %v624, 0.0
      %v831 = vmax.f32 %v627, 0.0
      %v832 = vmax.f32 %v632, 0.0
      %v833 = vmax.f32 %v635, 0.0
      %v834 = vmax.f32 %v640, 0.0
      %v835 = vmax.f32 %v643, 0.0
      %v836 = vmax.f32 %v648, 0.0
      %v837 = vmax.f32 %v651, 0.0
      %v838 = vmax.f32 %v656, 0.0
      %v839 = vmax.f32 %v659, 0.0
      %v840 = vmax.f32 %v664, 0.0
      %v841 = vmax.f32 %v667, 0.0
      %v842 = vmax.f32 %v672, 0.0
      %v843 = vmax.f32 %v675, 0.0
      %v844 = vmax.f32 %v680, 0.0
      %v845 = vmax.f32 %v683, 0.0
      %v846 = vmax.f32 %v688, 0.0
      %v847 = vmax.f32 %v691, 0.0
      %v848 = vmax.f32 %v696, 0.0
      %v849 = vmax.f32 %v699, 0.0
      %v850 = vmax.f32 %v704, 0.0
      %v851 = vmax.f32 %v707, 0.0
      %v852 = vmax.f32 %v712, 0.0
      %v853 = vmax.f32 %v715, 0.0
      %v854 = vmax.f32 %v720, 0.0
      %v855 = vmax.f32 %v723, 0.0
      %v856 = vmax.f32 %v728, 0.0
      %v857 = vmax.f32 %v731, 0.0
      %v858 = vmax.f32 %v736, 0.0
      %v859 = vmax.f32 %v739, 0.0
      %v860 = vmax.f32 %v744, 0.0
      %v861 = vmax.f32 %v747, 0.0
      %v862 = vmax.f32 %v752, 0.0
      %v863 = vmax.f32 %v755, 0.0
      %v864 = vmax.f32 %v760, 0.0
      %v865 = vmax.f32 %v763, 0.0
      %v866 = vmax.f32 %v768, 0.0
      %v867 = vmax.f32 %v771, 0.0
      %v868 = vmax.f32 %v776, 0.0
      %v869 = vmax.f32 %v779, 0.0
      %v870 = vmax.f32 %v784, 0.0
      %v871 = vmax.f32 %v787, 0.0
      %v872 = vmax.f32 %v792, 0.0
      %v873 = vmax.f32 %v795, 0.0
      %v874 = vmax.f32 %v800, 0.0
      %v875 = vmax.f32 %v803, 0.0
      %v876 = vmax.f32 %v808, 0.0
      %v877 = vmax.f32 %v811, 0.0
      %v878 = vpack.c.bf16 %v815, %v814
      %v879 = vpack.c.bf16 %v817, %v816
      %v880 = vpack.c.bf16 %v819, %v818
      %v881 = vpack.c.bf16 %v821, %v820
      %v882 = vpack.c.bf16 %v823, %v822
      %v883 = vpack.c.bf16 %v825, %v824
      %v884 = vpack.c.bf16 %v827, %v826
      %v885 = vpack.c.bf16 %v829, %v828
      %v886 = vpack.c.bf16 %v831, %v830
      %v887 = vpack.c.bf16 %v833, %v832
      %v888 = vpack.c.bf16 %v835, %v834
      %v889 = vpack.c.bf16 %v837, %v836
      %v890 = vpack.c.bf16 %v839, %v838
      %v891 = vpack.c.bf16 %v841, %v840
      %v892 = vpack.c.bf16 %v843, %v842
      %v893 = vpack.c.bf16 %v845, %v844
      %v894 = vpack.c.bf16 %v847, %v846
      %v895 = vpack.c.bf16 %v849, %v848
      %v896 = vpack.c.bf16 %v851, %v850
      %v897 = vpack.c.bf16 %v853, %v852
      %v898 = vpack.c.bf16 %v855, %v854
      %v899 = vpack.c.bf16 %v857, %v856
      %v900 = vpack.c.bf16 %v859, %v858
      %v901 = vpack.c.bf16 %v861, %v860
      %v902 = vpack.c.bf16 %v863, %v862
      %v903 = vpack.c.bf16 %v865, %v864
      %v904 = vpack.c.bf16 %v867, %v866
      %v905 = vpack.c.bf16 %v869, %v868
      %v906 = vpack.c.bf16 %v871, %v870
      %v907 = vpack.c.bf16 %v873, %v872
      %v908 = vpack.c.bf16 %v875, %v874
      %v909 = vpack.c.bf16 %v877, %v876
      %v910 = vld [vmem:[%s1 + $0x18] sm:$0xf]
      %v911 = vld [vmem:[%s1 + $0x1c] sm:$0xf]
      %v912 = vld [vmem:[%s1 + $0x20] sm:$0xf]
      %v913 = vld [vmem:[%s1 + $0x24] sm:$0xf]
      %v914 = vld [vmem:[%s1 + $0x28] sm:$0xf]
      %v915 = vld [vmem:[%s1 + $0x2c] sm:$0xf]
      %v916 = vld [vmem:[%s1 + $0x30] sm:$0xf]
      %v917 = vld [vmem:[%s1 + $0x34] sm:$0xf]
      %v918 = vld [vmem:[%s2 + $0x1] sm:$0x1]
      %v919 = vlaneseq
      %v920 = vshrl.u32 %v919, 7
      %v921 = vsub.s32 0, %v920
      %v922 = vrot.slane %v918, %v921
      %v931 = vunpack.c.l.b16 %v910
      %v932 = vunpack.c.l.b16 %v911
      %v933 = vunpack.c.l.b16 %v912
      %v934 = vunpack.c.l.b16 %v913
      %v935 = vunpack.c.l.b16 %v914
      %v936 = vunpack.c.l.b16 %v915
      %v937 = vunpack.c.l.b16 %v916
      %v938 = vunpack.c.l.b16 %v917
      %v939 = vpack.c.b16 %v932, %v931
      %v940 = vpack.c.b16 %v934, %v933
      %v941 = vpack.c.b16 %v936, %v935
      %v942 = vpack.c.b16 %v938, %v937
      %vm947 = vcmask 523264
      %v949 = vsel %vm947, %v878, 0
      %v952 = vsel %vm947, %v879, 0
      %v955 = vsel %vm947, %v880, 0
      %v958 = vsel %vm947, %v881, 0
      %v961 = vsel %vm947, %v882, 0
      %v964 = vsel %vm947, %v883, 0
      %v967 = vsel %vm947, %v884, 0
      %v970 = vsel %vm947, %v885, 0
      %v973 = vsel %vm947, %v886, 0
      %v976 = vsel %vm947, %v887, 0
      %v979 = vsel %vm947, %v888, 0
      %v982 = vsel %vm947, %v889, 0
      %v985 = vsel %vm947, %v890, 0
      %v988 = vsel %vm947, %v891, 0
      %v991 = vsel %vm947, %v892, 0
      %v994 = vsel %vm947, %v893, 0
      %v997 = vsel %vm947, %v894, 0
      %v1000 = vsel %vm947, %v895, 0
      %v1003 = vsel %vm947, %v896, 0
      %v1006 = vsel %vm947, %v897, 0
      %v1009 = vsel %vm947, %v898, 0
      %v1012 = vsel %vm947, %v899, 0
      %v1015 = vsel %vm947, %v900, 0
      %v1018 = vsel %vm947, %v901, 0
      %v1021 = vsel %vm947, %v902, 0
      %v1024 = vsel %vm947, %v903, 0
      %v1027 = vsel %vm947, %v904, 0
      %v1030 = vsel %vm947, %v905, 0
      %v1033 = vsel %vm947, %v906, 0
      %v1036 = vsel %vm947, %v907, 0
      %v1039 = vsel %vm947, %v908, 0
      %v1042 = vsel %vm947, %v909, 0
      %1044 = vmatprep.subr.bf16.mxu0 0
      %1045 = vmatpush1.bf16.msra.mxu0 %v939
      %1046 = vmatprep.subr.bf16.mxu0 0
      %1047 = vmatpush1.bf16.msra.mxu0 %v940
      %1048 = vmatprep.subr.bf16.mxu0 0
      %1049 = vmatpush1.bf16.msra.mxu0 %v941
      %1050 = vmatprep.subr.bf16.mxu0 0
      %1051 = vmatpush1.bf16.msra.mxu0 %v942
      %1052 = vmatprep.subr.bf16.mxu0 0
      %1053 = vmatpush1.bf16.msra.mxu0 0
      %1054 = vmatprep.subr.bf16.mxu0 0
      %1055 = vmatpush1.bf16.msra.mxu0 0
      %1056 = vmatprep.subr.bf16.mxu0 0
      %1057 = vmatpush1.bf16.msra.mxu0 0
      %1058 = vmatprep.subr.bf16.mxu0 0
      %1059 = vmatpush1.bf16.msra.mxu0 0
      %1060 = vmatprep.subr.bf16.mxu0 0
      %1061 = vmatpush1.bf16.msra.mxu0 0
      %1062 = vmatprep.subr.bf16.mxu0 0
      %1063 = vmatpush1.bf16.msra.mxu0 0
      %1064 = vmatprep.subr.bf16.mxu0 0
      %1065 = vmatpush1.bf16.msra.mxu0 0
      %1066 = vmatprep.subr.bf16.mxu0 0
      %1067 = vmatpush1.bf16.msra.mxu0 0
      %1068 = vmatprep.subr.bf16.mxu0 0
      %1069 = vmatpush1.bf16.msra.mxu0 0
      %1070 = vmatprep.subr.bf16.mxu0 0
      %1071 = vmatpush1.bf16.msra.mxu0 0
      %1072 = vmatprep.subr.bf16.mxu0 0
      %1073 = vmatpush1.bf16.msra.mxu0 0
      %1074 = vmatprep.subr.bf16.mxu0 0
      %1075 = vmatpush1.bf16.msra.mxu0 0
      %1076 = vmatprep.mubr.bf16.mxu0 0
      %1077 = vmatmul.mubr.bf16.gmra.mrb[0].mxu0 %v949
      %v1078 = vpop.f32.mrb[0].mxu0
      %v1079 = vadd.f32 %v922, %v1078
      %v1080 = vpop.f32.mrb[0].mxu0
      %v1081 = vpop.f32.mrb[0].mxu0
      %v1082 = vadd.f32 %v922, %v1081
      %v1083 = vpop.f32.mrb[0].mxu0
      %1084 = vmatprep.mubr.bf16.mxu0 0
      %1085 = vmatmul.mubr.bf16.gmra.mrb[0].mxu0 %v952
      %v1086 = vpop.f32.mrb[0].mxu0
      %v1087 = vadd.f32 %v922, %v1086
      %v1088 = vpop.f32.mrb[0].mxu0
      %v1089 = vpop.f32.mrb[0].mxu0
      %v1090 = vadd.f32 %v922, %v1089
      %v1091 = vpop.f32.mrb[0].mxu0
      %1092 = vmatprep.mubr.bf16.mxu0 0
      %1093 = vmatmul.mubr.bf16.gmra.mrb[0].mxu0 %v955
      %v1094 = vpop.f32.mrb[0].mxu0
      %v1095 = vadd.f32 %v922, %v1094
      %v1096 = vpop.f32.mrb[0].mxu0
      %v1097 = vpop.f32.mrb[0].mxu0
      %v1098 = vadd.f32 %v922, %v1097
      %v1099 = vpop.f32.mrb[0].mxu0
      %1100 = vmatprep.mubr.bf16.mxu0 0
      %1101 = vmatmul.mubr.bf16.gmra.mrb[0].mxu0 %v958
      %v1102 = vpop.f32.mrb[0].mxu0
      %v1103 = vadd.f32 %v922, %v1102
      %v1104 = vpop.f32.mrb[0].mxu0
      %v1105 = vpop.f32.mrb[0].mxu0
      %v1106 = vadd.f32 %v922, %v1105
      %v1107 = vpop.f32.mrb[0].mxu0
      %1108 = vmatprep.mubr.bf16.mxu0 0
      %1109 = vmatmul.mubr.bf16.gmra.mrb[0].mxu0 %v961
      %v1110 = vpop.f32.mrb[0].mxu0
      %v1111 = vadd.f32 %v922, %v1110
      %v1112 = vpop.f32.mrb[0].mxu0
      %v1113 = vpop.f32.mrb[0].mxu0
      %v1114 = vadd.f32 %v922, %v1113
      %v1115 = vpop.f32.mrb[0].mxu0
      %1116 = vmatprep.mubr.bf16.mxu0 0
      %1117 = vmatmul.mubr.bf16.gmra.mrb[0].mxu0 %v964
      %v1118 = vpop.f32.mrb[0].mxu0
      %v1119 = vadd.f32 %v922, %v1118
      %v1120 = vpop.f32.mrb[0].mxu0
      %v1121 = vpop.f32.mrb[0].mxu0
      %v1122 = vadd.f32 %v922, %v1121
      %v1123 = vpop.f32.mrb[0].mxu0
      %1124 = vmatprep.mubr.bf16.mxu0 0
      %1125 = vmatmul.mubr.bf16.gmra.mrb[0].mxu0 %v967
      %v1126 = vpop.f32.mrb[0].mxu0
      %v1127 = vadd.f32 %v922, %v1126
      %v1128 = vpop.f32.mrb[0].mxu0
      %v1129 = vpop.f32.mrb[0].mxu0
      %v1130 = vadd.f32 %v922, %v1129
      %v1131 = vpop.f32.mrb[0].mxu0
      %1132 = vmatprep.mubr.bf16.mxu0 0
      %1133 = vmatmul.mubr.bf16.gmra.mrb[0].mxu0 %v970
      %v1134 = vpop.f32.mrb[0].mxu0
      %v1135 = vadd.f32 %v922, %v1134
      %v1136 = vpop.f32.mrb[0].mxu0
      %v1137 = vpop.f32.mrb[0].mxu0
      %v1138 = vadd.f32 %v922, %v1137
      %v1139 = vpop.f32.mrb[0].mxu0
      %1140 = vmatprep.mubr.bf16.mxu0 0
      %1141 = vmatmul.mubr.bf16.gmra.mrb[0].mxu0 %v973
      %v1142 = vpop.f32.mrb[0].mxu0
      %v1143 = vadd.f32 %v922, %v1142
      %v1144 = vpop.f32.mrb[0].mxu0
      %v1145 = vpop.f32.mrb[0].mxu0
      %v1146 = vadd.f32 %v922, %v1145
      %v1147 = vpop.f32.mrb[0].mxu0
      %1148 = vmatprep.mubr.bf16.mxu0 0
      %1149 = vmatmul.mubr.bf16.gmra.mrb[0].mxu0 %v976
      %v1150 = vpop.f32.mrb[0].mxu0
      %v1151 = vadd.f32 %v922, %v1150
      %v1152 = vpop.f32.mrb[0].mxu0
      %v1153 = vpop.f32.mrb[0].mxu0
      %v1154 = vadd.f32 %v922, %v1153
      %v1155 = vpop.f32.mrb[0].mxu0
      %1156 = vmatprep.mubr.bf16.mxu0 0
      %1157 = vmatmul.mubr.bf16.gmra.mrb[0].mxu0 %v979
      %v1158 = vpop.f32.mrb[0].mxu0
      %v1159 = vadd.f32 %v922, %v1158
      %v1160 = vpop.f32.mrb[0].mxu0
      %v1161 = vpop.f32.mrb[0].mxu0
      %v1162 = vadd.f32 %v922, %v1161
      %v1163 = vpop.f32.mrb[0].mxu0
      %1164 = vmatprep.mubr.bf16.mxu0 0
      %1165 = vmatmul.mubr.bf16.gmra.mrb[0].mxu0 %v982
      %v1166 = vpop.f32.mrb[0].mxu0
      %v1167 = vadd.f32 %v922, %v1166
      %v1168 = vpop.f32.mrb[0].mxu0
      %v1169 = vpop.f32.mrb[0].mxu0
      %v1170 = vadd.f32 %v922, %v1169
      %v1171 = vpop.f32.mrb[0].mxu0
      %1172 = vmatprep.mubr.bf16.mxu0 0
      %1173 = vmatmul.mubr.bf16.gmra.mrb[0].mxu0 %v985
      %v1174 = vpop.f32.mrb[0].mxu0
      %v1175 = vadd.f32 %v922, %v1174
      %v1176 = vpop.f32.mrb[0].mxu0
      %v1177 = vpop.f32.mrb[0].mxu0
      %v1178 = vadd.f32 %v922, %v1177
      %v1179 = vpop.f32.mrb[0].mxu0
      %1180 = vmatprep.mubr.bf16.mxu0 0
      %1181 = vmatmul.mubr.bf16.gmra.mrb[0].mxu0 %v988
      %v1182 = vpop.f32.mrb[0].mxu0
      %v1183 = vadd.f32 %v922, %v1182
      %v1184 = vpop.f32.mrb[0].mxu0
      %v1185 = vpop.f32.mrb[0].mxu0
      %v1186 = vadd.f32 %v922, %v1185
      %v1187 = vpop.f32.mrb[0].mxu0
      %1188 = vmatprep.mubr.bf16.mxu0 0
      %1189 = vmatmul.mubr.bf16.gmra.mrb[0].mxu0 %v991
      %v1190 = vpop.f32.mrb[0].mxu0
      %v1191 = vadd.f32 %v922, %v1190
      %v1192 = vpop.f32.mrb[0].mxu0
      %v1193 = vpop.f32.mrb[0].mxu0
      %v1194 = vadd.f32 %v922, %v1193
      %v1195 = vpop.f32.mrb[0].mxu0
      %1196 = vmatprep.mubr.bf16.mxu0 0
      %1197 = vmatmul.mubr.bf16.gmra.mrb[0].mxu0 %v994
      %v1198 = vpop.f32.mrb[0].mxu0
      %v1199 = vadd.f32 %v922, %v1198
      %v1200 = vpop.f32.mrb[0].mxu0
      %v1201 = vpop.f32.mrb[0].mxu0
      %v1202 = vadd.f32 %v922, %v1201
      %v1203 = vpop.f32.mrb[0].mxu0
      %1204 = vmatprep.mubr.bf16.mxu0 0
      %1205 = vmatmul.mubr.bf16.gmra.mrb[0].mxu0 %v997
      %v1206 = vpop.f32.mrb[0].mxu0
      %v1207 = vadd.f32 %v922, %v1206
      %v1208 = vpop.f32.mrb[0].mxu0
      %v1209 = vpop.f32.mrb[0].mxu0
      %v1210 = vadd.f32 %v922, %v1209
      %v1211 = vpop.f32.mrb[0].mxu0
      %1212 = vmatprep.mubr.bf16.mxu0 0
      %1213 = vmatmul.mubr.bf16.gmra.mrb[0].mxu0 %v1000
      %v1214 = vpop.f32.mrb[0].mxu0
      %v1215 = vadd.f32 %v922, %v1214
      %v1216 = vpop.f32.mrb[0].mxu0
      %v1217 = vpop.f32.mrb[0].mxu0
      %v1218 = vadd.f32 %v922, %v1217
      %v1219 = vpop.f32.mrb[0].mxu0
      %1220 = vmatprep.mubr.bf16.mxu0 0
      %1221 = vmatmul.mubr.bf16.gmra.mrb[0].mxu0 %v1003
      %v1222 = vpop.f32.mrb[0].mxu0
      %v1223 = vadd.f32 %v922, %v1222
      %v1224 = vpop.f32.mrb[0].mxu0
      %v1225 = vpop.f32.mrb[0].mxu0
      %v1226 = vadd.f32 %v922, %v1225
      %v1227 = vpop.f32.mrb[0].mxu0
      %1228 = vmatprep.mubr.bf16.mxu0 0
      %1229 = vmatmul.mubr.bf16.gmra.mrb[0].mxu0 %v1006
      %v1230 = vpop.f32.mrb[0].mxu0
      %v1231 = vadd.f32 %v922, %v1230
      %v1232 = vpop.f32.mrb[0].mxu0
      %v1233 = vpop.f32.mrb[0].mxu0
      %v1234 = vadd.f32 %v922, %v1233
      %v1235 = vpop.f32.mrb[0].mxu0
      %1236 = vmatprep.mubr.bf16.mxu0 0
      %1237 = vmatmul.mubr.bf16.gmra.mrb[0].mxu0 %v1009
      %v1238 = vpop.f32.mrb[0].mxu0
      %v1239 = vadd.f32 %v922, %v1238
      %v1240 = vpop.f32.mrb[0].mxu0
      %v1241 = vpop.f32.mrb[0].mxu0
      %v1242 = vadd.f32 %v922, %v1241
      %v1243 = vpop.f32.mrb[0].mxu0
      %1244 = vmatprep.mubr.bf16.mxu0 0
      %1245 = vmatmul.mubr.bf16.gmra.mrb[0].mxu0 %v1012
      %v1246 = vpop.f32.mrb[0].mxu0
      %v1247 = vadd.f32 %v922, %v1246
      %v1248 = vpop.f32.mrb[0].mxu0
      %v1249 = vpop.f32.mrb[0].mxu0
      %v1250 = vadd.f32 %v922, %v1249
      %v1251 = vpop.f32.mrb[0].mxu0
      %1252 = vmatprep.mubr.bf16.mxu0 0
      %1253 = vmatmul.mubr.bf16.gmra.mrb[0].mxu0 %v1015
      %v1254 = vpop.f32.mrb[0].mxu0
      %v1255 = vadd.f32 %v922, %v1254
      %v1256 = vpop.f32.mrb[0].mxu0
      %v1257 = vpop.f32.mrb[0].mxu0
      %v1258 = vadd.f32 %v922, %v1257
      %v1259 = vpop.f32.mrb[0].mxu0
      %1260 = vmatprep.mubr.bf16.mxu0 0
      %1261 = vmatmul.mubr.bf16.gmra.mrb[0].mxu0 %v1018
      %v1262 = vpop.f32.mrb[0].mxu0
      %v1263 = vadd.f32 %v922, %v1262
      %v1264 = vpop.f32.mrb[0].mxu0
      %v1265 = vpop.f32.mrb[0].mxu0
      %v1266 = vadd.f32 %v922, %v1265
      %v1267 = vpop.f32.mrb[0].mxu0
      %1268 = vmatprep.mubr.bf16.mxu0 0
      %1269 = vmatmul.mubr.bf16.gmra.mrb[0].mxu0 %v1021
      %v1270 = vpop.f32.mrb[0].mxu0
      %v1271 = vadd.f32 %v922, %v1270
      %v1272 = vpop.f32.mrb[0].mxu0
      %v1273 = vpop.f32.mrb[0].mxu0
      %v1274 = vadd.f32 %v922, %v1273
      %v1275 = vpop.f32.mrb[0].mxu0
      %1276 = vmatprep.mubr.bf16.mxu0 0
      %1277 = vmatmul.mubr.bf16.gmra.mrb[0].mxu0 %v1024
      %v1278 = vpop.f32.mrb[0].mxu0
      %v1279 = vadd.f32 %v922, %v1278
      %v1280 = vpop.f32.mrb[0].mxu0
      %v1281 = vpop.f32.mrb[0].mxu0
      %v1282 = vadd.f32 %v922, %v1281
      %v1283 = vpop.f32.mrb[0].mxu0
      %1284 = vmatprep.mubr.bf16.mxu0 0
      %1285 = vmatmul.mubr.bf16.gmra.mrb[0].mxu0 %v1027
      %v1286 = vpop.f32.mrb[0].mxu0
      %v1287 = vadd.f32 %v922, %v1286
      %v1288 = vpop.f32.mrb[0].mxu0
      %v1289 = vpop.f32.mrb[0].mxu0
      %v1290 = vadd.f32 %v922, %v1289
      %v1291 = vpop.f32.mrb[0].mxu0
      %1292 = vmatprep.mubr.bf16.mxu0 0
      %1293 = vmatmul.mubr.bf16.gmra.mrb[0].mxu0 %v1030
      %v1294 = vpop.f32.mrb[0].mxu0
      %v1295 = vadd.f32 %v922, %v1294
      %v1296 = vpop.f32.mrb[0].mxu0
      %v1297 = vpop.f32.mrb[0].mxu0
      %v1298 = vadd.f32 %v922, %v1297
      %v1299 = vpop.f32.mrb[0].mxu0
      %1300 = vmatprep.mubr.bf16.mxu0 0
      %1301 = vmatmul.mubr.bf16.gmra.mrb[0].mxu0 %v1033
      %v1302 = vpop.f32.mrb[0].mxu0
      %v1303 = vadd.f32 %v922, %v1302
      %v1304 = vpop.f32.mrb[0].mxu0
      %v1305 = vpop.f32.mrb[0].mxu0
      %v1306 = vadd.f32 %v922, %v1305
      %v1307 = vpop.f32.mrb[0].mxu0
      %1308 = vmatprep.mubr.bf16.mxu0 0
      %1309 = vmatmul.mubr.bf16.gmra.mrb[0].mxu0 %v1036
      %v1310 = vpop.f32.mrb[0].mxu0
      %v1311 = vadd.f32 %v922, %v1310
      %v1312 = vpop.f32.mrb[0].mxu0
      %v1313 = vpop.f32.mrb[0].mxu0
      %v1314 = vadd.f32 %v922, %v1313
      %v1315 = vpop.f32.mrb[0].mxu0
      %1316 = vmatprep.mubr.bf16.mxu0 0
      %1317 = vmatmul.mubr.bf16.gmra.mrb[0].mxu0 %v1039
      %v1318 = vpop.f32.mrb[0].mxu0
      %v1319 = vadd.f32 %v922, %v1318
      %v1320 = vpop.f32.mrb[0].mxu0
      %v1321 = vpop.f32.mrb[0].mxu0
      %v1322 = vadd.f32 %v922, %v1321
      %v1323 = vpop.f32.mrb[0].mxu0
      %1324 = vmatprep.mubr.bf16.mxu0 0
      %1325 = vmatmul.mubr.bf16.gmra.mrb[0].mxu0 %v1042
      %v1326 = vpop.f32.mrb[0].mxu0
      %v1327 = vadd.f32 %v922, %v1326
      %v1328 = vpop.f32.mrb[0].mxu0
      %v1329 = vpop.f32.mrb[0].mxu0
      %v1330 = vadd.f32 %v922, %v1329
      %v1331 = vpop.f32.mrb[0].mxu0
      %1332 = vdwg.mxu0
      %v1333 = vsub.f32 %v1079, 1.0
      %v1334 = vsub.f32 %v1082, 1.0
      %v1335 = vsub.f32 %v1087, 1.0
      %v1336 = vsub.f32 %v1090, 1.0
      %v1337 = vsub.f32 %v1095, 1.0
      %v1338 = vsub.f32 %v1098, 1.0
      %v1339 = vsub.f32 %v1103, 1.0
      %v1340 = vsub.f32 %v1106, 1.0
      %v1341 = vsub.f32 %v1111, 1.0
      %v1342 = vsub.f32 %v1114, 1.0
      %v1343 = vsub.f32 %v1119, 1.0
      %v1344 = vsub.f32 %v1122, 1.0
      %v1345 = vsub.f32 %v1127, 1.0
      %v1346 = vsub.f32 %v1130, 1.0
      %v1347 = vsub.f32 %v1135, 1.0
      %v1348 = vsub.f32 %v1138, 1.0
      %v1349 = vsub.f32 %v1143, 1.0
      %v1350 = vsub.f32 %v1146, 1.0
      %v1351 = vsub.f32 %v1151, 1.0
      %v1352 = vsub.f32 %v1154, 1.0
      %v1353 = vsub.f32 %v1159, 1.0
      %v1354 = vsub.f32 %v1162, 1.0
      %v1355 = vsub.f32 %v1167, 1.0
      %v1356 = vsub.f32 %v1170, 1.0
      %v1357 = vsub.f32 %v1175, 1.0
      %v1358 = vsub.f32 %v1178, 1.0
      %v1359 = vsub.f32 %v1183, 1.0
      %v1360 = vsub.f32 %v1186, 1.0
      %v1361 = vsub.f32 %v1191, 1.0
      %v1362 = vsub.f32 %v1194, 1.0
      %v1363 = vsub.f32 %v1199, 1.0
      %v1364 = vsub.f32 %v1202, 1.0
      %v1365 = vsub.f32 %v1207, 1.0
      %v1366 = vsub.f32 %v1210, 1.0
      %v1367 = vsub.f32 %v1215, 1.0
      %v1368 = vsub.f32 %v1218, 1.0
      %v1369 = vsub.f32 %v1223, 1.0
      %v1370 = vsub.f32 %v1226, 1.0
      %v1371 = vsub.f32 %v1231, 1.0
      %v1372 = vsub.f32 %v1234, 1.0
      %v1373 = vsub.f32 %v1239, 1.0
      %v1374 = vsub.f32 %v1242, 1.0
      %v1375 = vsub.f32 %v1247, 1.0
      %v1376 = vsub.f32 %v1250, 1.0
      %v1377 = vsub.f32 %v1255, 1.0
      %v1378 = vsub.f32 %v1258, 1.0
      %v1379 = vsub.f32 %v1263, 1.0
      %v1380 = vsub.f32 %v1266, 1.0
      %v1381 = vsub.f32 %v1271, 1.0
      %v1382 = vsub.f32 %v1274, 1.0
      %v1383 = vsub.f32 %v1279, 1.0
      %v1384 = vsub.f32 %v1282, 1.0
      %v1385 = vsub.f32 %v1287, 1.0
      %v1386 = vsub.f32 %v1290, 1.0
      %v1387 = vsub.f32 %v1295, 1.0
      %v1388 = vsub.f32 %v1298, 1.0
      %v1389 = vsub.f32 %v1303, 1.0
      %v1390 = vsub.f32 %v1306, 1.0
      %v1391 = vsub.f32 %v1311, 1.0
      %v1392 = vsub.f32 %v1314, 1.0
      %v1393 = vsub.f32 %v1319, 1.0
      %v1394 = vsub.f32 %v1322, 1.0
      %v1395 = vsub.f32 %v1327, 1.0
      %v1396 = vsub.f32 %v1330, 1.0
      %v1397 = vmul.f32 %v1333, 1.442695
      %v1398 = vpow.pop %v1397
      %v1399 = vmul.f32 %v1334, 1.442695
      %v1400 = vpow.pop %v1399
      %v1401 = vmul.f32 %v1335, 1.442695
      %v1402 = vpow.pop %v1401
      %v1403 = vmul.f32 %v1336, 1.442695
      %v1404 = vpow.pop %v1403
      %v1405 = vmul.f32 %v1337, 1.442695
      %v1406 = vpow.pop %v1405
      %v1407 = vmul.f32 %v1338, 1.442695
      %v1408 = vpow.pop %v1407
      %v1409 = vmul.f32 %v1339, 1.442695
      %v1410 = vpow.pop %v1409
      %v1411 = vmul.f32 %v1340, 1.442695
      %v1412 = vpow.pop %v1411
      %v1413 = vmul.f32 %v1341, 1.442695
      %v1414 = vpow.pop %v1413
      %v1415 = vmul.f32 %v1342, 1.442695
      %v1416 = vpow.pop %v1415
      %v1417 = vmul.f32 %v1343, 1.442695
      %v1418 = vpow.pop %v1417
      %v1419 = vmul.f32 %v1344, 1.442695
      %v1420 = vpow.pop %v1419
      %v1421 = vmul.f32 %v1345, 1.442695
      %v1422 = vpow.pop %v1421
      %v1423 = vmul.f32 %v1346, 1.442695
      %v1424 = vpow.pop %v1423
      %v1425 = vmul.f32 %v1347, 1.442695
      %v1426 = vpow.pop %v1425
      %v1427 = vmul.f32 %v1348, 1.442695
      %v1428 = vpow.pop %v1427
      %v1429 = vmul.f32 %v1349, 1.442695
      %v1430 = vpow.pop %v1429
      %v1431 = vmul.f32 %v1350, 1.442695
      %v1432 = vpow.pop %v1431
      %v1433 = vmul.f32 %v1351, 1.442695
      %v1434 = vpow.pop %v1433
      %v1435 = vmul.f32 %v1352, 1.442695
      %v1436 = vpow.pop %v1435
      %v1437 = vmul.f32 %v1353, 1.442695
      %v1438 = vpow.pop %v1437
      %v1439 = vmul.f32 %v1354, 1.442695
      %v1440 = vpow.pop %v1439
      %v1441 = vmul.f32 %v1355, 1.442695
      %v1442 = vpow.pop %v1441
      %v1443 = vmul.f32 %v1356, 1.442695
      %v1444 = vpow.pop %v1443
      %v1445 = vmul.f32 %v1357, 1.442695
      %v1446 = vpow.pop %v1445
      %v1447 = vmul.f32 %v1358, 1.442695
      %v1448 = vpow.pop %v1447
      %v1449 = vmul.f32 %v1359, 1.442695
      %v1450 = vpow.pop %v1449
      %v1451 = vmul.f32 %v1360, 1.442695
      %v1452 = vpow.pop %v1451
      %v1453 = vmul.f32 %v1361, 1.442695
      %v1454 = vpow.pop %v1453
      %v1455 = vmul.f32 %v1362, 1.442695
      %v1456 = vpow.pop %v1455
      %v1457 = vmul.f32 %v1363, 1.442695
      %v1458 = vpow.pop %v1457
      %v1459 = vmul.f32 %v1364, 1.442695
      %v1460 = vpow.pop %v1459
      %v1461 = vmul.f32 %v1365, 1.442695
      %v1462 = vpow.pop %v1461
      %v1463 = vmul.f32 %v1366, 1.442695
      %v1464 = vpow.pop %v1463
      %v1465 = vmul.f32 %v1367, 1.442695
      %v1466 = vpow.pop %v1465
      %v1467 = vmul.f32 %v1368, 1.442695
      %v1468 = vpow.pop %v1467
      %v1469 = vmul.f32 %v1369, 1.442695
      %v1470 = vpow.pop %v1469
      %v1471 = vmul.f32 %v1370, 1.442695
      %v1472 = vpow.pop %v1471
      %v1473 = vmul.f32 %v1371, 1.442695
      %v1474 = vpow.pop %v1473
      %v1475 = vmul.f32 %v1372, 1.442695
      %v1476 = vpow.pop %v1475
      %v1477 = vmul.f32 %v1373, 1.442695
      %v1478 = vpow.pop %v1477
      %v1479 = vmul.f32 %v1374, 1.442695
      %v1480 = vpow.pop %v1479
      %v1481 = vmul.f32 %v1375, 1.442695
      %v1482 = vpow.pop %v1481
      %v1483 = vmul.f32 %v1376, 1.442695
      %v1484 = vpow.pop %v1483
      %v1485 = vmul.f32 %v1377, 1.442695
      %v1486 = vpow.pop %v1485
      %v1487 = vmul.f32 %v1378, 1.442695
      %v1488 = vpow.pop %v1487
      %v1489 = vmul.f32 %v1379, 1.442695
      %v1490 = vpow.pop %v1489
      %v1491 = vmul.f32 %v1380, 1.442695
      %v1492 = vpow.pop %v1491
      %v1493 = vmul.f32 %v1381, 1.442695
      %v1494 = vpow.pop %v1493
      %v1495 = vmul.f32 %v1382, 1.442695
      %v1496 = vpow.pop %v1495
      %v1497 = vmul.f32 %v1383, 1.442695
      %v1498 = vpow.pop %v1497
      %v1499 = vmul.f32 %v1384, 1.442695
      %v1500 = vpow.pop %v1499
      %v1501 = vmul.f32 %v1385, 1.442695
      %v1502 = vpow.pop %v1501
      %v1503 = vmul.f32 %v1386, 1.442695
      %v1504 = vpow.pop %v1503
      %v1505 = vmul.f32 %v1387, 1.442695
      %v1506 = vpow.pop %v1505
      %v1507 = vmul.f32 %v1388, 1.442695
      %v1508 = vpow.pop %v1507
      %v1509 = vmul.f32 %v1389, 1.442695
      %v1510 = vpow.pop %v1509
      %v1511 = vmul.f32 %v1390, 1.442695
      %v1512 = vpow.pop %v1511
      %v1513 = vmul.f32 %v1391, 1.442695
      %v1514 = vpow.pop %v1513
      %v1515 = vmul.f32 %v1392, 1.442695
      %v1516 = vpow.pop %v1515
      %v1517 = vmul.f32 %v1393, 1.442695
      %v1518 = vpow.pop %v1517
      %v1519 = vmul.f32 %v1394, 1.442695
      %v1520 = vpow.pop %v1519
      %v1521 = vmul.f32 %v1395, 1.442695
      %v1522 = vpow.pop %v1521
      %v1523 = vmul.f32 %v1396, 1.442695
      %v1524 = vpow.pop %v1523
      %v1525 = vpack.c.bf16 %v1400, %v1398
      %v1526 = vpack.c.bf16 %v1404, %v1402
      %v1527 = vpack.c.bf16 %v1408, %v1406
      %v1528 = vpack.c.bf16 %v1412, %v1410
      %v1529 = vpack.c.bf16 %v1416, %v1414
      %v1530 = vpack.c.bf16 %v1420, %v1418
      %v1531 = vpack.c.bf16 %v1424, %v1422
      %v1532 = vpack.c.bf16 %v1428, %v1426
      %v1533 = vpack.c.bf16 %v1432, %v1430
      %v1534 = vpack.c.bf16 %v1436, %v1434
      %v1535 = vpack.c.bf16 %v1440, %v1438
      %v1536 = vpack.c.bf16 %v1444, %v1442
      %v1537 = vpack.c.bf16 %v1448, %v1446
      %v1538 = vpack.c.bf16 %v1452, %v1450
      %v1539 = vpack.c.bf16 %v1456, %v1454
      %v1540 = vpack.c.bf16 %v1460, %v1458
      %v1541 = vpack.c.bf16 %v1464, %v1462
      %v1542 = vpack.c.bf16 %v1468, %v1466
      %v1543 = vpack.c.bf16 %v1472, %v1470
      %v1544 = vpack.c.bf16 %v1476, %v1474
      %v1545 = vpack.c.bf16 %v1480, %v1478
      %v1546 = vpack.c.bf16 %v1484, %v1482
      %v1547 = vpack.c.bf16 %v1488, %v1486
      %v1548 = vpack.c.bf16 %v1492, %v1490
      %v1549 = vpack.c.bf16 %v1496, %v1494
      %v1550 = vpack.c.bf16 %v1500, %v1498
      %v1551 = vpack.c.bf16 %v1504, %v1502
      %v1552 = vpack.c.bf16 %v1508, %v1506
      %v1553 = vpack.c.bf16 %v1512, %v1510
      %v1554 = vpack.c.bf16 %v1516, %v1514
      %v1555 = vpack.c.bf16 %v1520, %v1518
      %v1556 = vpack.c.bf16 %v1524, %v1522
      %v1589 = vunpack.c.l.b16 %v1525
      %v1590 = vunpack.c.h.b16 %v1525
      %v1591 = vunpack.c.l.b16 %v1526
      %v1592 = vunpack.c.h.b16 %v1526
      %v1593 = vunpack.c.l.b16 %v1527
      %v1594 = vunpack.c.h.b16 %v1527
      %v1595 = vunpack.c.l.b16 %v1528
      %v1596 = vunpack.c.h.b16 %v1528
      %v1597 = vunpack.c.l.b16 %v1529
      %v1598 = vunpack.c.h.b16 %v1529
      %v1599 = vunpack.c.l.b16 %v1530
      %v1600 = vunpack.c.h.b16 %v1530
      %v1601 = vunpack.c.l.b16 %v1531
      %v1602 = vunpack.c.h.b16 %v1531
      %v1603 = vunpack.c.l.b16 %v1532
      %v1604 = vunpack.c.h.b16 %v1532
      %v1605 = vunpack.c.l.b16 %v1533
      %v1606 = vunpack.c.h.b16 %v1533
      %v1607 = vunpack.c.l.b16 %v1534
      %v1608 = vunpack.c.h.b16 %v1534
      %v1609 = vunpack.c.l.b16 %v1535
      %v1610 = vunpack.c.h.b16 %v1535
      %v1611 = vunpack.c.l.b16 %v1536
      %v1612 = vunpack.c.h.b16 %v1536
      %v1613 = vunpack.c.l.b16 %v1537
      %v1614 = vunpack.c.h.b16 %v1537
      %v1615 = vunpack.c.l.b16 %v1538
      %v1616 = vunpack.c.h.b16 %v1538
      %v1617 = vunpack.c.l.b16 %v1539
      %v1618 = vunpack.c.h.b16 %v1539
      %v1619 = vunpack.c.l.b16 %v1540
      %v1620 = vunpack.c.h.b16 %v1540
      %v1621 = vunpack.c.l.b16 %v1541
      %v1622 = vunpack.c.h.b16 %v1541
      %v1623 = vunpack.c.l.b16 %v1542
      %v1624 = vunpack.c.h.b16 %v1542
      %v1625 = vunpack.c.l.b16 %v1543
      %v1626 = vunpack.c.h.b16 %v1543
      %v1627 = vunpack.c.l.b16 %v1544
      %v1628 = vunpack.c.h.b16 %v1544
      %v1629 = vunpack.c.l.b16 %v1545
      %v1630 = vunpack.c.h.b16 %v1545
      %v1631 = vunpack.c.l.b16 %v1546
      %v1632 = vunpack.c.h.b16 %v1546
      %v1633 = vunpack.c.l.b16 %v1547
      %v1634 = vunpack.c.h.b16 %v1547
      %v1635 = vunpack.c.l.b16 %v1548
      %v1636 = vunpack.c.h.b16 %v1548
      %v1637 = vunpack.c.l.b16 %v1549
      %v1638 = vunpack.c.h.b16 %v1549
      %v1639 = vunpack.c.l.b16 %v1550
      %v1640 = vunpack.c.h.b16 %v1550
      %v1641 = vunpack.c.l.b16 %v1551
      %v1642 = vunpack.c.h.b16 %v1551
      %v1643 = vunpack.c.l.b16 %v1552
      %v1644 = vunpack.c.h.b16 %v1552
      %v1645 = vunpack.c.l.b16 %v1553
      %v1646 = vunpack.c.h.b16 %v1553
      %v1647 = vunpack.c.l.b16 %v1554
      %v1648 = vunpack.c.h.b16 %v1554
      %v1649 = vunpack.c.l.b16 %v1555
      %v1650 = vunpack.c.h.b16 %v1555
      %v1651 = vunpack.c.l.b16 %v1556
      %v1652 = vunpack.c.h.b16 %v1556
      %v1653 = vpack.c.b16 %v1589, %v1589
      %v1654 = vpack.c.b16 %v1590, %v1590
      %v1655 = vpack.c.b16 %v1591, %v1591
      %v1656 = vpack.c.b16 %v1592, %v1592
      %v1657 = vpack.c.b16 %v1593, %v1593
      %v1658 = vpack.c.b16 %v1594, %v1594
      %v1659 = vpack.c.b16 %v1595, %v1595
      %v1660 = vpack.c.b16 %v1596, %v1596
      %v1661 = vpack.c.b16 %v1597, %v1597
      %v1662 = vpack.c.b16 %v1598, %v1598
      %v1663 = vpack.c.b16 %v1599, %v1599
      %v1664 = vpack.c.b16 %v1600, %v1600
      %v1665 = vpack.c.b16 %v1601, %v1601
      %v1666 = vpack.c.b16 %v1602, %v1602
      %v1667 = vpack.c.b16 %v1603, %v1603
      %v1668 = vpack.c.b16 %v1604, %v1604
      %v1669 = vpack.c.b16 %v1605, %v1605
      %v1670 = vpack.c.b16 %v1606, %v1606
      %v1671 = vpack.c.b16 %v1607, %v1607
      %v1672 = vpack.c.b16 %v1608, %v1608
      %v1673 = vpack.c.b16 %v1609, %v1609
      %v1674 = vpack.c.b16 %v1610, %v1610
      %v1675 = vpack.c.b16 %v1611, %v1611
      %v1676 = vpack.c.b16 %v1612, %v1612
      %v1677 = vpack.c.b16 %v1613, %v1613
      %v1678 = vpack.c.b16 %v1614, %v1614
      %v1679 = vpack.c.b16 %v1615, %v1615
      %v1680 = vpack.c.b16 %v1616, %v1616
      %v1681 = vpack.c.b16 %v1617, %v1617
      %v1682 = vpack.c.b16 %v1618, %v1618
      %v1683 = vpack.c.b16 %v1619, %v1619
      %v1684 = vpack.c.b16 %v1620, %v1620
      %v1685 = vpack.c.b16 %v1621, %v1621
      %v1686 = vpack.c.b16 %v1622, %v1622
      %v1687 = vpack.c.b16 %v1623, %v1623
      %v1688 = vpack.c.b16 %v1624, %v1624
      %v1689 = vpack.c.b16 %v1625, %v1625
      %v1690 = vpack.c.b16 %v1626, %v1626
      %v1691 = vpack.c.b16 %v1627, %v1627
      %v1692 = vpack.c.b16 %v1628, %v1628
      %v1693 = vpack.c.b16 %v1629, %v1629
      %v1694 = vpack.c.b16 %v1630, %v1630
      %v1695 = vpack.c.b16 %v1631, %v1631
      %v1696 = vpack.c.b16 %v1632, %v1632
      %v1697 = vpack.c.b16 %v1633, %v1633
      %v1698 = vpack.c.b16 %v1634, %v1634
      %v1699 = vpack.c.b16 %v1635, %v1635
      %v1700 = vpack.c.b16 %v1636, %v1636
      %v1701 = vpack.c.b16 %v1637, %v1637
      %v1702 = vpack.c.b16 %v1638, %v1638
      %v1703 = vpack.c.b16 %v1639, %v1639
      %v1704 = vpack.c.b16 %v1640, %v1640
      %v1705 = vpack.c.b16 %v1641, %v1641
      %v1706 = vpack.c.b16 %v1642, %v1642
      %v1707 = vpack.c.b16 %v1643, %v1643
      %v1708 = vpack.c.b16 %v1644, %v1644
      %v1709 = vpack.c.b16 %v1645, %v1645
      %v1710 = vpack.c.b16 %v1646, %v1646
      %v1711 = vpack.c.b16 %v1647, %v1647
      %v1712 = vpack.c.b16 %v1648, %v1648
      %v1713 = vpack.c.b16 %v1649, %v1649
      %v1714 = vpack.c.b16 %v1650, %v1650
      %v1715 = vpack.c.b16 %v1651, %v1651
      %v1716 = vpack.c.b16 %v1652, %v1652
      %1717 = vrot.lane.b32.xlu0 %v1653, 67
      %v1718 = vpop.permute.xlu0 %1717
      %1719 = vrot.lane.b32.xlu0 %v1654, 67
      %v1720 = vpop.permute.xlu0 %1719
      %1721 = vrot.lane.b32.xlu0 %v1655, 67
      %v1722 = vpop.permute.xlu0 %1721
      %1723 = vrot.lane.b32.xlu0 %v1656, 67
      %v1724 = vpop.permute.xlu0 %1723
      %1725 = vrot.lane.b32.xlu0 %v1657, 67
      %v1726 = vpop.permute.xlu0 %1725
      %1727 = vrot.lane.b32.xlu0 %v1658, 67
      %v1728 = vpop.permute.xlu0 %1727
      %1729 = vrot.lane.b32.xlu0 %v1659, 67
      %v1730 = vpop.permute.xlu0 %1729
      %1731 = vrot.lane.b32.xlu0 %v1660, 67
      %v1732 = vpop.permute.xlu0 %1731
      %1733 = vrot.lane.b32.xlu0 %v1661, 67
      %v1734 = vpop.permute.xlu0 %1733
      %1735 = vrot.lane.b32.xlu0 %v1662, 67
      %v1736 = vpop.permute.xlu0 %1735
      %1737 = vrot.lane.b32.xlu0 %v1663, 67
      %v1738 = vpop.permute.xlu0 %1737
      %1739 = vrot.lane.b32.xlu0 %v1664, 67
      %v1740 = vpop.permute.xlu0 %1739
      %1741 = vrot.lane.b32.xlu0 %v1665, 67
      %v1742 = vpop.permute.xlu0 %1741
      %1743 = vrot.lane.b32.xlu0 %v1666, 67
      %v1744 = vpop.permute.xlu0 %1743
      %1745 = vrot.lane.b32.xlu0 %v1667, 67
      %v1746 = vpop.permute.xlu0 %1745
      %1747 = vrot.lane.b32.xlu0 %v1668, 67
      %v1748 = vpop.permute.xlu0 %1747
      %1749 = vrot.lane.b32.xlu0 %v1669, 67
      %v1750 = vpop.permute.xlu0 %1749
      %1751 = vrot.lane.b32.xlu0 %v1670, 67
      %v1752 = vpop.permute.xlu0 %1751
      %1753 = vrot.lane.b32.xlu0 %v1671, 67
      %v1754 = vpop.permute.xlu0 %1753
      %1755 = vrot.lane.b32.xlu0 %v1672, 67
      %v1756 = vpop.permute.xlu0 %1755
      %1757 = vrot.lane.b32.xlu0 %v1673, 67
      %v1758 = vpop.permute.xlu0 %1757
      %1759 = vrot.lane.b32.xlu0 %v1674, 67
      %v1760 = vpop.permute.xlu0 %1759
      %1761 = vrot.lane.b32.xlu0 %v1675, 67
      %v1762 = vpop.permute.xlu0 %1761
      %1763 = vrot.lane.b32.xlu0 %v1676, 67
      %v1764 = vpop.permute.xlu0 %1763
      %1765 = vrot.lane.b32.xlu0 %v1677, 67
      %v1766 = vpop.permute.xlu0 %1765
      %1767 = vrot.lane.b32.xlu0 %v1678, 67
      %v1768 = vpop.permute.xlu0 %1767
      %1769 = vrot.lane.b32.xlu0 %v1679, 67
      %v1770 = vpop.permute.xlu0 %1769
      %1771 = vrot.lane.b32.xlu0 %v1680, 67
      %v1772 = vpop.permute.xlu0 %1771
      %1773 = vrot.lane.b32.xlu0 %v1681, 67
      %v1774 = vpop.permute.xlu0 %1773
      %1775 = vrot.lane.b32.xlu0 %v1682, 67
      %v1776 = vpop.permute.xlu0 %1775
      %1777 = vrot.lane.b32.xlu0 %v1683, 67
      %v1778 = vpop.permute.xlu0 %1777
      %1779 = vrot.lane.b32.xlu0 %v1684, 67
      %v1780 = vpop.permute.xlu0 %1779
      %1781 = vrot.lane.b32.xlu0 %v1685, 67
      %v1782 = vpop.permute.xlu0 %1781
      %1783 = vrot.lane.b32.xlu0 %v1686, 67
      %v1784 = vpop.permute.xlu0 %1783
      %1785 = vrot.lane.b32.xlu0 %v1687, 67
      %v1786 = vpop.permute.xlu0 %1785
      %1787 = vrot.lane.b32.xlu0 %v1688, 67
      %v1788 = vpop.permute.xlu0 %1787
      %1789 = vrot.lane.b32.xlu0 %v1689, 67
      %v1790 = vpop.permute.xlu0 %1789
      %1791 = vrot.lane.b32.xlu0 %v1690, 67
      %v1792 = vpop.permute.xlu0 %1791
      %1793 = vrot.lane.b32.xlu0 %v1691, 67
      %v1794 = vpop.permute.xlu0 %1793
      %1795 = vrot.lane.b32.xlu0 %v1692, 67
      %v1796 = vpop.permute.xlu0 %1795
      %1797 = vrot.lane.b32.xlu0 %v1693, 67
      %v1798 = vpop.permute.xlu0 %1797
      %1799 = vrot.lane.b32.xlu0 %v1694, 67
      %v1800 = vpop.permute.xlu0 %1799
      %1801 = vrot.lane.b32.xlu0 %v1695, 67
      %v1802 = vpop.permute.xlu0 %1801
      %1803 = vrot.lane.b32.xlu0 %v1696, 67
      %v1804 = vpop.permute.xlu0 %1803
      %1805 = vrot.lane.b32.xlu0 %v1697, 67
      %v1806 = vpop.permute.xlu0 %1805
      %1807 = vrot.lane.b32.xlu0 %v1698, 67
      %v1808 = vpop.permute.xlu0 %1807
      %1809 = vrot.lane.b32.xlu0 %v1699, 67
      %v1810 = vpop.permute.xlu0 %1809
      %1811 = vrot.lane.b32.xlu0 %v1700, 67
      %v1812 = vpop.permute.xlu0 %1811
      %1813 = vrot.lane.b32.xlu0 %v1701, 67
      %v1814 = vpop.permute.xlu0 %1813
      %1815 = vrot.lane.b32.xlu0 %v1702, 67
      %v1816 = vpop.permute.xlu0 %1815
      %1817 = vrot.lane.b32.xlu0 %v1703, 67
      %v1818 = vpop.permute.xlu0 %1817
      %1819 = vrot.lane.b32.xlu0 %v1704, 67
      %v1820 = vpop.permute.xlu0 %1819
      %1821 = vrot.lane.b32.xlu0 %v1705, 67
      %v1822 = vpop.permute.xlu0 %1821
      %1823 = vrot.lane.b32.xlu0 %v1706, 67
      %v1824 = vpop.permute.xlu0 %1823
      %1825 = vrot.lane.b32.xlu0 %v1707, 67
      %v1826 = vpop.permute.xlu0 %1825
      %1827 = vrot.lane.b32.xlu0 %v1708, 67
      %v1828 = vpop.permute.xlu0 %1827
      %1829 = vrot.lane.b32.xlu0 %v1709, 67
      %v1830 = vpop.permute.xlu0 %1829
      %1831 = vrot.lane.b32.xlu0 %v1710, 67
      %v1832 = vpop.permute.xlu0 %1831
      %1833 = vrot.lane.b32.xlu0 %v1711, 67
      %v1834 = vpop.permute.xlu0 %1833
      %1835 = vrot.lane.b32.xlu0 %v1712, 67
      %v1836 = vpop.permute.xlu0 %1835
      %1837 = vrot.lane.b32.xlu0 %v1713, 67
      %v1838 = vpop.permute.xlu0 %1837
      %1839 = vrot.lane.b32.xlu0 %v1714, 67
      %v1840 = vpop.permute.xlu0 %1839
      %1841 = vrot.lane.b32.xlu0 %v1715, 67
      %v1842 = vpop.permute.xlu0 %1841
      %1843 = vrot.lane.b32.xlu0 %v1716, 67
      %v1844 = vpop.permute.xlu0 %1843
      %vm1909 = vcmask 27672
      %1910 = vst.msk [vmem:[%s172] sm:$0xf] %vm1909, %v1718
      %1911 = vst.msk [vmem:[%s172 + $0x4] sm:$0xf] %vm1909, %v1720
      %1912 = vst.msk [vmem:[%s172 + $0x8] sm:$0xf] %vm1909, %v1722
      %1913 = vst.msk [vmem:[%s172 + $0xc] sm:$0xf] %vm1909, %v1724
      %1914 = vst.msk [vmem:[%s172 + $0x10] sm:$0xf] %vm1909, %v1726
      %1915 = vst.msk [vmem:[%s172 + $0x14] sm:$0xf] %vm1909, %v1728
      %1916 = vst.msk [vmem:[%s172 + $0x18] sm:$0xf] %vm1909, %v1730
      %1917 = vst.msk [vmem:[%s172 + $0x1c] sm:$0xf] %vm1909, %v1732
      %1918 = vst.msk [vmem:[%s172 + $0x20] sm:$0xf] %vm1909, %v1734
      %1919 = vst.msk [vmem:[%s172 + $0x24] sm:$0xf] %vm1909, %v1736
      %1920 = vst.msk [vmem:[%s172 + $0x28] sm:$0xf] %vm1909, %v1738
      %1921 = vst.msk [vmem:[%s172 + $0x2c] sm:$0xf] %vm1909, %v1740
      %1922 = vst.msk [vmem:[%s172 + $0x30] sm:$0xf] %vm1909, %v1742
      %1923 = vst.msk [vmem:[%s172 + $0x34] sm:$0xf] %vm1909, %v1744
      %1924 = vst.msk [vmem:[%s172 + $0x38] sm:$0xf] %vm1909, %v1746
      %1925 = vst.msk [vmem:[%s172 + $0x3c] sm:$0xf] %vm1909, %v1748
      %1926 = vst.msk [vmem:[%s172 + $0x40] sm:$0xf] %vm1909, %v1750
      %1927 = vst.msk [vmem:[%s172 + $0x44] sm:$0xf] %vm1909, %v1752
      %1928 = vst.msk [vmem:[%s172 + $0x48] sm:$0xf] %vm1909, %v1754
      %1929 = vst.msk [vmem:[%s172 + $0x4c] sm:$0xf] %vm1909, %v1756
      %1930 = vst.msk [vmem:[%s172 + $0x50] sm:$0xf] %vm1909, %v1758
      %1931 = vst.msk [vmem:[%s172 + $0x54] sm:$0xf] %vm1909, %v1760
      %1932 = vst.msk [vmem:[%s172 + $0x58] sm:$0xf] %vm1909, %v1762
      %1933 = vst.msk [vmem:[%s172 + $0x5c] sm:$0xf] %vm1909, %v1764
      %1934 = vst.msk [vmem:[%s172 + $0x60] sm:$0xf] %vm1909, %v1766
      %1935 = vst.msk [vmem:[%s172 + $0x64] sm:$0xf] %vm1909, %v1768
      %1936 = vst.msk [vmem:[%s172 + $0x68] sm:$0xf] %vm1909, %v1770
      %1937 = vst.msk [vmem:[%s172 + $0x6c] sm:$0xf] %vm1909, %v1772
      %1938 = vst.msk [vmem:[%s172 + $0x70] sm:$0xf] %vm1909, %v1774
      %1939 = vst.msk [vmem:[%s172 + $0x74] sm:$0xf] %vm1909, %v1776
      %1940 = vst.msk [vmem:[%s172 + $0x78] sm:$0xf] %vm1909, %v1778
      %1941 = vst.msk [vmem:[%s172 + $0x7c] sm:$0xf] %vm1909, %v1780
      %1942 = vst.msk [vmem:[%s172 + $0x80] sm:$0xf] %vm1909, %v1782
      %1943 = vst.msk [vmem:[%s172 + $0x84] sm:$0xf] %vm1909, %v1784
      %1944 = vst.msk [vmem:[%s172 + $0x88] sm:$0xf] %vm1909, %v1786
      %1945 = vst.msk [vmem:[%s172 + $0x8c] sm:$0xf] %vm1909, %v1788
      %1946 = vst.msk [vmem:[%s172 + $0x90] sm:$0xf] %vm1909, %v1790
      %1947 = vst.msk [vmem:[%s172 + $0x94] sm:$0xf] %vm1909, %v1792
      %1948 = vst.msk [vmem:[%s172 + $0x98] sm:$0xf] %vm1909, %v1794
      %1949 = vst.msk [vmem:[%s172 + $0x9c] sm:$0xf] %vm1909, %v1796
      %1950 = vst.msk [vmem:[%s172 + $0xa0] sm:$0xf] %vm1909, %v1798
      %1951 = vst.msk [vmem:[%s172 + $0xa4] sm:$0xf] %vm1909, %v1800
      %1952 = vst.msk [vmem:[%s172 + $0xa8] sm:$0xf] %vm1909, %v1802
      %1953 = vst.msk [vmem:[%s172 + $0xac] sm:$0xf] %vm1909, %v1804
      %1954 = vst.msk [vmem:[%s172 + $0xb0] sm:$0xf] %vm1909, %v1806
      %1955 = vst.msk [vmem:[%s172 + $0xb4] sm:$0xf] %vm1909, %v1808
      %1956 = vst.msk [vmem:[%s172 + $0xb8] sm:$0xf] %vm1909, %v1810
      %1957 = vst.msk [vmem:[%s172 + $0xbc] sm:$0xf] %vm1909, %v1812
      %1958 = vst.msk [vmem:[%s172 + $0xc0] sm:$0xf] %vm1909, %v1814
      %1959 = vst.msk [vmem:[%s172 + $0xc4] sm:$0xf] %vm1909, %v1816
      %1960 = vst.msk [vmem:[%s172 + $0xc8] sm:$0xf] %vm1909, %v1818
      %1961 = vst.msk [vmem:[%s172 + $0xcc] sm:$0xf] %vm1909, %v1820
      %1962 = vst.msk [vmem:[%s172 + $0xd0] sm:$0xf] %vm1909, %v1822
      %1963 = vst.msk [vmem:[%s172 + $0xd4] sm:$0xf] %vm1909, %v1824
      %1964 = vst.msk [vmem:[%s172 + $0xd8] sm:$0xf] %vm1909, %v1826
      %1965 = vst.msk [vmem:[%s172 + $0xdc] sm:$0xf] %vm1909, %v1828
      %1966 = vst.msk [vmem:[%s172 + $0xe0] sm:$0xf] %vm1909, %v1830
      %1967 = vst.msk [vmem:[%s172 + $0xe4] sm:$0xf] %vm1909, %v1832
      %1968 = vst.msk [vmem:[%s172 + $0xe8] sm:$0xf] %vm1909, %v1834
      %1969 = vst.msk [vmem:[%s172 + $0xec] sm:$0xf] %vm1909, %v1836
      %1970 = vst.msk [vmem:[%s172 + $0xf0] sm:$0xf] %vm1909, %v1838
      %1971 = vst.msk [vmem:[%s172 + $0xf4] sm:$0xf] %vm1909, %v1840
      %1972 = vst.msk [vmem:[%s172 + $0xf8] sm:$0xf] %vm1909, %v1842
      %1973 = vst.msk [vmem:[%s172 + $0xfc] sm:$0xf] %vm1909, %v1844
      %2038 = vrot.lane.b32.xlu0 %v560, 64
      %v2039 = vpop.permute.xlu0 %2038
      %2040 = vrot.lane.b32.xlu0 %v563, 64
      %v2041 = vpop.permute.xlu0 %2040
      %2042 = vrot.lane.b32.xlu0 %v568, 64
      %v2043 = vpop.permute.xlu0 %2042
      %2044 = vrot.lane.b32.xlu0 %v571, 64
      %v2045 = vpop.permute.xlu0 %2044
      %2046 = vrot.lane.b32.xlu0 %v576, 64
      %v2047 = vpop.permute.xlu0 %2046
      %2048 = vrot.lane.b32.xlu0 %v579, 64
      %v2049 = vpop.permute.xlu0 %2048
      %2050 = vrot.lane.b32.xlu0 %v584, 64
      %v2051 = vpop.permute.xlu0 %2050
      %2052 = vrot.lane.b32.xlu0 %v587, 64
      %v2053 = vpop.permute.xlu0 %2052
      %2054 = vrot.lane.b32.xlu0 %v592, 64
      %v2055 = vpop.permute.xlu0 %2054
      %2056 = vrot.lane.b32.xlu0 %v595, 64
      %v2057 = vpop.permute.xlu0 %2056
      %2058 = vrot.lane.b32.xlu0 %v600, 64
      %v2059 = vpop.permute.xlu0 %2058
      %2060 = vrot.lane.b32.xlu0 %v603, 64
      %v2061 = vpop.permute.xlu0 %2060
      %2062 = vrot.lane.b32.xlu0 %v608, 64
      %v2063 = vpop.permute.xlu0 %2062
      %2064 = vrot.lane.b32.xlu0 %v611, 64
      %v2065 = vpop.permute.xlu0 %2064
      %2066 = vrot.lane.b32.xlu0 %v616, 64
      %v2067 = vpop.permute.xlu0 %2066
      %2068 = vrot.lane.b32.xlu0 %v619, 64
      %v2069 = vpop.permute.xlu0 %2068
      %2070 = vrot.lane.b32.xlu0 %v624, 64
      %v2071 = vpop.permute.xlu0 %2070
      %2072 = vrot.lane.b32.xlu0 %v627, 64
      %v2073 = vpop.permute.xlu0 %2072
      %2074 = vrot.lane.b32.xlu0 %v632, 64
      %v2075 = vpop.permute.xlu0 %2074
      %2076 = vrot.lane.b32.xlu0 %v635, 64
      %v2077 = vpop.permute.xlu0 %2076
      %2078 = vrot.lane.b32.xlu0 %v640, 64
      %v2079 = vpop.permute.xlu0 %2078
      %2080 = vrot.lane.b32.xlu0 %v643, 64
      %v2081 = vpop.permute.xlu0 %2080
      %2082 = vrot.lane.b32.xlu0 %v648, 64
      %v2083 = vpop.permute.xlu0 %2082
      %2084 = vrot.lane.b32.xlu0 %v651, 64
      %v2085 = vpop.permute.xlu0 %2084
      %2086 = vrot.lane.b32.xlu0 %v656, 64
      %v2087 = vpop.permute.xlu0 %2086
      %2088 = vrot.lane.b32.xlu0 %v659, 64
      %v2089 = vpop.permute.xlu0 %2088
      %2090 = vrot.lane.b32.xlu0 %v664, 64
      %v2091 = vpop.permute.xlu0 %2090
      %2092 = vrot.lane.b32.xlu0 %v667, 64
      %v2093 = vpop.permute.xlu0 %2092
      %2094 = vrot.lane.b32.xlu0 %v672, 64
      %v2095 = vpop.permute.xlu0 %2094
      %2096 = vrot.lane.b32.xlu0 %v675, 64
      %v2097 = vpop.permute.xlu0 %2096
      %2098 = vrot.lane.b32.xlu0 %v680, 64
      %v2099 = vpop.permute.xlu0 %2098
      %2100 = vrot.lane.b32.xlu0 %v683, 64
      %v2101 = vpop.permute.xlu0 %2100
      %2102 = vrot.lane.b32.xlu0 %v688, 64
      %v2103 = vpop.permute.xlu0 %2102
      %2104 = vrot.lane.b32.xlu0 %v691, 64
      %v2105 = vpop.permute.xlu0 %2104
      %2106 = vrot.lane.b32.xlu0 %v696, 64
      %v2107 = vpop.permute.xlu0 %2106
      %2108 = vrot.lane.b32.xlu0 %v699, 64
      %v2109 = vpop.permute.xlu0 %2108
      %2110 = vrot.lane.b32.xlu0 %v704, 64
      %v2111 = vpop.permute.xlu0 %2110
      %2112 = vrot.lane.b32.xlu0 %v707, 64
      %v2113 = vpop.permute.xlu0 %2112
      %2114 = vrot.lane.b32.xlu0 %v712, 64
      %v2115 = vpop.permute.xlu0 %2114
      %2116 = vrot.lane.b32.xlu0 %v715, 64
      %v2117 = vpop.permute.xlu0 %2116
      %2118 = vrot.lane.b32.xlu0 %v720, 64
      %v2119 = vpop.permute.xlu0 %2118
      %2120 = vrot.lane.b32.xlu0 %v723, 64
      %v2121 = vpop.permute.xlu0 %2120
      %2122 = vrot.lane.b32.xlu0 %v728, 64
      %v2123 = vpop.permute.xlu0 %2122
      %2124 = vrot.lane.b32.xlu0 %v731, 64
      %v2125 = vpop.permute.xlu0 %2124
      %2126 = vrot.lane.b32.xlu0 %v736, 64
      %v2127 = vpop.permute.xlu0 %2126
      %2128 = vrot.lane.b32.xlu0 %v739, 64
      %v2129 = vpop.permute.xlu0 %2128
      %2130 = vrot.lane.b32.xlu0 %v744, 64
      %v2131 = vpop.permute.xlu0 %2130
      %2132 = vrot.lane.b32.xlu0 %v747, 64
      %v2133 = vpop.permute.xlu0 %2132
      %2134 = vrot.lane.b32.xlu0 %v752, 64
      %v2135 = vpop.permute.xlu0 %2134
      %2136 = vrot.lane.b32.xlu0 %v755, 64
      %v2137 = vpop.permute.xlu0 %2136
      %2138 = vrot.lane.b32.xlu0 %v760, 64
      %v2139 = vpop.permute.xlu0 %2138
      %2140 = vrot.lane.b32.xlu0 %v763, 64
      %v2141 = vpop.permute.xlu0 %2140
      %2142 = vrot.lane.b32.xlu0 %v768, 64
      %v2143 = vpop.permute.xlu0 %2142
      %2144 = vrot.lane.b32.xlu0 %v771, 64
      %v2145 = vpop.permute.xlu0 %2144
      %2146 = vrot.lane.b32.xlu0 %v776, 64
      %v2147 = vpop.permute.xlu0 %2146
      %2148 = vrot.lane.b32.xlu0 %v779, 64
      %v2149 = vpop.permute.xlu0 %2148
      %2150 = vrot.lane.b32.xlu0 %v784, 64
      %v2151 = vpop.permute.xlu0 %2150
      %2152 = vrot.lane.b32.xlu0 %v787, 64
      %v2153 = vpop.permute.xlu0 %2152
      %2154 = vrot.lane.b32.xlu0 %v792, 64
      %v2155 = vpop.permute.xlu0 %2154
      %2156 = vrot.lane.b32.xlu0 %v795, 64
      %v2157 = vpop.permute.xlu0 %2156
      %2158 = vrot.lane.b32.xlu0 %v800, 64
      %v2159 = vpop.permute.xlu0 %2158
      %2160 = vrot.lane.b32.xlu0 %v803, 64
      %v2161 = vpop.permute.xlu0 %2160
      %2162 = vrot.lane.b32.xlu0 %v808, 64
      %v2163 = vpop.permute.xlu0 %2162
      %2164 = vrot.lane.b32.xlu0 %v811, 64
      %v2165 = vpop.permute.xlu0 %2164
      %v2230 = vadd.f32 %v1079, %v2039
      %v2231 = vadd.f32 %v1082, %v2041
      %v2232 = vadd.f32 %v1087, %v2043
      %v2233 = vadd.f32 %v1090, %v2045
      %v2234 = vadd.f32 %v1095, %v2047
      %v2235 = vadd.f32 %v1098, %v2049
      %v2236 = vadd.f32 %v1103, %v2051
      %v2237 = vadd.f32 %v1106, %v2053
      %v2238 = vadd.f32 %v1111, %v2055
      %v2239 = vadd.f32 %v1114, %v2057
      %v2240 = vadd.f32 %v1119, %v2059
      %v2241 = vadd.f32 %v1122, %v2061
      %v2242 = vadd.f32 %v1127, %v2063
      %v2243 = vadd.f32 %v1130, %v2065
      %v2244 = vadd.f32 %v1135, %v2067
      %v2245 = vadd.f32 %v1138, %v2069
      %v2246 = vadd.f32 %v1143, %v2071
      %v2247 = vadd.f32 %v1146, %v2073
      %v2248 = vadd.f32 %v1151, %v2075
      %v2249 = vadd.f32 %v1154, %v2077
      %v2250 = vadd.f32 %v1159, %v2079
      %v2251 = vadd.f32 %v1162, %v2081
      %v2252 = vadd.f32 %v1167, %v2083
      %v2253 = vadd.f32 %v1170, %v2085
      %v2254 = vadd.f32 %v1175, %v2087
      %v2255 = vadd.f32 %v1178, %v2089
      %v2256 = vadd.f32 %v1183, %v2091
      %v2257 = vadd.f32 %v1186, %v2093
      %v2258 = vadd.f32 %v1191, %v2095
      %v2259 = vadd.f32 %v1194, %v2097
      %v2260 = vadd.f32 %v1199, %v2099
      %v2261 = vadd.f32 %v1202, %v2101
      %v2262 = vadd.f32 %v1207, %v2103
      %v2263 = vadd.f32 %v1210, %v2105
      %v2264 = vadd.f32 %v1215, %v2107
      %v2265 = vadd.f32 %v1218, %v2109
      %v2266 = vadd.f32 %v1223, %v2111
      %v2267 = vadd.f32 %v1226, %v2113
      %v2268 = vadd.f32 %v1231, %v2115
      %v2269 = vadd.f32 %v1234, %v2117
      %v2270 = vadd.f32 %v1239, %v2119
      %v2271 = vadd.f32 %v1242, %v2121
      %v2272 = vadd.f32 %v1247, %v2123
      %v2273 = vadd.f32 %v1250, %v2125
      %v2274 = vadd.f32 %v1255, %v2127
      %v2275 = vadd.f32 %v1258, %v2129
      %v2276 = vadd.f32 %v1263, %v2131
      %v2277 = vadd.f32 %v1266, %v2133
      %v2278 = vadd.f32 %v1271, %v2135
      %v2279 = vadd.f32 %v1274, %v2137
      %v2280 = vadd.f32 %v1279, %v2139
      %v2281 = vadd.f32 %v1282, %v2141
      %v2282 = vadd.f32 %v1287, %v2143
      %v2283 = vadd.f32 %v1290, %v2145
      %v2284 = vadd.f32 %v1295, %v2147
      %v2285 = vadd.f32 %v1298, %v2149
      %v2286 = vadd.f32 %v1303, %v2151
      %v2287 = vadd.f32 %v1306, %v2153
      %v2288 = vadd.f32 %v1311, %v2155
      %v2289 = vadd.f32 %v1314, %v2157
      %v2290 = vadd.f32 %v1319, %v2159
      %v2291 = vadd.f32 %v1322, %v2161
      %v2292 = vadd.f32 %v1327, %v2163
      %v2293 = vadd.f32 %v1330, %v2165
      %v2294 = vmax.f32 %v2230, 0.0
      %v2295 = vmax.f32 %v2231, 0.0
      %v2296 = vmax.f32 %v2232, 0.0
      %v2297 = vmax.f32 %v2233, 0.0
      %v2298 = vmax.f32 %v2234, 0.0
      %v2299 = vmax.f32 %v2235, 0.0
      %v2300 = vmax.f32 %v2236, 0.0
      %v2301 = vmax.f32 %v2237, 0.0
      %v2302 = vmax.f32 %v2238, 0.0
      %v2303 = vmax.f32 %v2239, 0.0
      %v2304 = vmax.f32 %v2240, 0.0
      %v2305 = vmax.f32 %v2241, 0.0
      %v2306 = vmax.f32 %v2242, 0.0
      %v2307 = vmax.f32 %v2243, 0.0
      %v2308 = vmax.f32 %v2244, 0.0
      %v2309 = vmax.f32 %v2245, 0.0
      %v2310 = vmax.f32 %v2246, 0.0
      %v2311 = vmax.f32 %v2247, 0.0
      %v2312 = vmax.f32 %v2248, 0.0
      %v2313 = vmax.f32 %v2249, 0.0
      %v2314 = vmax.f32 %v2250, 0.0
      %v2315 = vmax.f32 %v2251, 0.0
      %v2316 = vmax.f32 %v2252, 0.0
      %v2317 = vmax.f32 %v2253, 0.0
      %v2318 = vmax.f32 %v2254, 0.0
      %v2319 = vmax.f32 %v2255, 0.0
      %v2320 = vmax.f32 %v2256, 0.0
      %v2321 = vmax.f32 %v2257, 0.0
      %v2322 = vmax.f32 %v2258, 0.0
      %v2323 = vmax.f32 %v2259, 0.0
      %v2324 = vmax.f32 %v2260, 0.0
      %v2325 = vmax.f32 %v2261, 0.0
      %v2326 = vmax.f32 %v2262, 0.0
      %v2327 = vmax.f32 %v2263, 0.0
      %v2328 = vmax.f32 %v2264, 0.0
      %v2329 = vmax.f32 %v2265, 0.0
      %v2330 = vmax.f32 %v2266, 0.0
      %v2331 = vmax.f32 %v2267, 0.0
      %v2332 = vmax.f32 %v2268, 0.0
      %v2333 = vmax.f32 %v2269, 0.0
      %v2334 = vmax.f32 %v2270, 0.0
      %v2335 = vmax.f32 %v2271, 0.0
      %v2336 = vmax.f32 %v2272, 0.0
      %v2337 = vmax.f32 %v2273, 0.0
      %v2338 = vmax.f32 %v2274, 0.0
      %v2339 = vmax.f32 %v2275, 0.0
      %v2340 = vmax.f32 %v2276, 0.0
      %v2341 = vmax.f32 %v2277, 0.0
      %v2342 = vmax.f32 %v2278, 0.0
      %v2343 = vmax.f32 %v2279, 0.0
      %v2344 = vmax.f32 %v2280, 0.0
      %v2345 = vmax.f32 %v2281, 0.0
      %v2346 = vmax.f32 %v2282, 0.0
      %v2347 = vmax.f32 %v2283, 0.0
      %v2348 = vmax.f32 %v2284, 0.0
      %v2349 = vmax.f32 %v2285, 0.0
      %v2350 = vmax.f32 %v2286, 0.0
      %v2351 = vmax.f32 %v2287, 0.0
      %v2352 = vmax.f32 %v2288, 0.0
      %v2353 = vmax.f32 %v2289, 0.0
      %v2354 = vmax.f32 %v2290, 0.0
      %v2355 = vmax.f32 %v2291, 0.0
      %v2356 = vmax.f32 %v2292, 0.0
      %v2357 = vmax.f32 %v2293, 0.0
      %v2358 = vpack.c.bf16 %v2295, %v2294
      %v2359 = vpack.c.bf16 %v2297, %v2296
      %v2360 = vpack.c.bf16 %v2299, %v2298
      %v2361 = vpack.c.bf16 %v2301, %v2300
      %v2362 = vpack.c.bf16 %v2303, %v2302
      %v2363 = vpack.c.bf16 %v2305, %v2304
      %v2364 = vpack.c.bf16 %v2307, %v2306
      %v2365 = vpack.c.bf16 %v2309, %v2308
      %v2366 = vpack.c.bf16 %v2311, %v2310
      %v2367 = vpack.c.bf16 %v2313, %v2312
      %v2368 = vpack.c.bf16 %v2315, %v2314
      %v2369 = vpack.c.bf16 %v2317, %v2316
      %v2370 = vpack.c.bf16 %v2319, %v2318
      %v2371 = vpack.c.bf16 %v2321, %v2320
      %v2372 = vpack.c.bf16 %v2323, %v2322
      %v2373 = vpack.c.bf16 %v2325, %v2324
      %v2374 = vpack.c.bf16 %v2327, %v2326
      %v2375 = vpack.c.bf16 %v2329, %v2328
      %v2376 = vpack.c.bf16 %v2331, %v2330
      %v2377 = vpack.c.bf16 %v2333, %v2332
      %v2378 = vpack.c.bf16 %v2335, %v2334
      %v2379 = vpack.c.bf16 %v2337, %v2336
      %v2380 = vpack.c.bf16 %v2339, %v2338
      %v2381 = vpack.c.bf16 %v2341, %v2340
      %v2382 = vpack.c.bf16 %v2343, %v2342
      %v2383 = vpack.c.bf16 %v2345, %v2344
      %v2384 = vpack.c.bf16 %v2347, %v2346
      %v2385 = vpack.c.bf16 %v2349, %v2348
      %v2386 = vpack.c.bf16 %v2351, %v2350
      %v2387 = vpack.c.bf16 %v2353, %v2352
      %v2388 = vpack.c.bf16 %v2355, %v2354
      %v2389 = vpack.c.bf16 %v2357, %v2356
      %v2390 = vld [vmem:[%s1 + $0x38] sm:$0xf]
      %v2391 = vld [vmem:[%s1 + $0x3c] sm:$0xf]
      %v2392 = vld [vmem:[%s1 + $0x40] sm:$0xf]
      %v2393 = vld [vmem:[%s1 + $0x44] sm:$0xf]
      %v2394 = vld [vmem:[%s1 + $0x48] sm:$0xf]
      %v2395 = vld [vmem:[%s1 + $0x4c] sm:$0xf]
      %v2396 = vld [vmem:[%s1 + $0x50] sm:$0xf]
      %v2397 = vld [vmem:[%s1 + $0x54] sm:$0xf]
      %v2398 = vld [vmem:[%s2 + $0x2] sm:$0x1]
      %v2399 = vlaneseq
      %v2400 = vshrl.u32 %v2399, 7
      %v2401 = vsub.s32 0, %v2400
      %v2402 = vrot.slane %v2398, %v2401
      %v2411 = vunpack.c.l.b16 %v2390
      %v2412 = vunpack.c.l.b16 %v2391
      %v2413 = vunpack.c.l.b16 %v2392
      %v2414 = vunpack.c.l.b16 %v2393
      %v2415 = vunpack.c.l.b16 %v2394
      %v2416 = vunpack.c.l.b16 %v2395
      %v2417 = vunpack.c.l.b16 %v2396
      %v2418 = vunpack.c.l.b16 %v2397
      %v2419 = vpack.c.b16 %v2412, %v2411
      %v2420 = vpack.c.b16 %v2414, %v2413
      %v2421 = vpack.c.b16 %v2416, %v2415
      %v2422 = vpack.c.b16 %v2418, %v2417
      %v2428 = vsel %vm947, %v2358, 0
      %v2431 = vsel %vm947, %v2359, 0
      %v2434 = vsel %vm947, %v2360, 0
      %v2437 = vsel %vm947, %v2361, 0
      %v2440 = vsel %vm947, %v2362, 0
      %v2443 = vsel %vm947, %v2363, 0
      %v2446 = vsel %vm947, %v2364, 0
      %v2449 = vsel %vm947, %v2365, 0
      %v2452 = vsel %vm947, %v2366, 0
      %v2455 = vsel %vm947, %v2367, 0
      %v2458 = vsel %vm947, %v2368, 0
      %v2461 = vsel %vm947, %v2369, 0
      %v2464 = vsel %vm947, %v2370, 0
      %v2467 = vsel %vm947, %v2371, 0
      %v2470 = vsel %vm947, %v2372, 0
      %v2473 = vsel %vm947, %v2373, 0
      %v2476 = vsel %vm947, %v2374, 0
      %v2479 = vsel %vm947, %v2375, 0
      %v2482 = vsel %vm947, %v2376, 0
      %v2485 = vsel %vm947, %v2377, 0
      %v2488 = vsel %vm947, %v2378, 0
      %v2491 = vsel %vm947, %v2379, 0
      %v2494 = vsel %vm947, %v2380, 0
      %v2497 = vsel %vm947, %v2381, 0
      %v2500 = vsel %vm947, %v2382, 0
      %v2503 = vsel %vm947, %v2383, 0
      %v2506 = vsel %vm947, %v2384, 0
      %v2509 = vsel %vm947, %v2385, 0
      %v2512 = vsel %vm947, %v2386, 0
      %v2515 = vsel %vm947, %v2387, 0
      %v2518 = vsel %vm947, %v2388, 0
      %v2521 = vsel %vm947, %v2389, 0
      %2523 = vmatprep.subr.bf16.mxu0 0
      %2524 = vmatpush1.bf16.msra.mxu0 %v2419
      %2525 = vmatprep.subr.bf16.mxu0 0
      %2526 = vmatpush1.bf16.msra.mxu0 %v2420
      %2527 = vmatprep.subr.bf16.mxu0 0
      %2528 = vmatpush1.bf16.msra.mxu0 %v2421
      %2529 = vmatprep.subr.bf16.mxu0 0
      %2530 = vmatpush1.bf16.msra.mxu0 %v2422
      %2531 = vmatprep.subr.bf16.mxu0 0
      %2532 = vmatpush1.bf16.msra.mxu0 0
      %2533 = vmatprep.subr.bf16.mxu0 0
      %2534 = vmatpush1.bf16.msra.mxu0 0
      %2535 = vmatprep.subr.bf16.mxu0 0
      %2536 = vmatpush1.bf16.msra.mxu0 0
      %2537 = vmatprep.subr.bf16.mxu0 0
      %2538 = vmatpush1.bf16.msra.mxu0 0
      %2539 = vmatprep.subr.bf16.mxu0 0
      %2540 = vmatpush1.bf16.msra.mxu0 0
      %2541 = vmatprep.subr.bf16.mxu0 0
      %2542 = vmatpush1.bf16.msra.mxu0 0
      %2543 = vmatprep.subr.bf16.mxu0 0
      %2544 = vmatpush1.bf16.msra.mxu0 0
      %2545 = vmatprep.subr.bf16.mxu0 0
      %2546 = vmatpush1.bf16.msra.mxu0 0
      %2547 = vmatprep.subr.bf16.mxu0 0
      %2548 = vmatpush1.bf16.msra.mxu0 0
      %2549 = vmatprep.subr.bf16.mxu0 0
      %2550 = vmatpush1.bf16.msra.mxu0 0
      %2551 = vmatprep.subr.bf16.mxu0 0
      %2552 = vmatpush1.bf16.msra.mxu0 0
      %2553 = vmatprep.subr.bf16.mxu0 0
      %2554 = vmatpush1.bf16.msra.mxu0 0
      %2555 = vmatprep.mubr.bf16.mxu0 0
      %2556 = vmatmul.mubr.bf16.gmra.mrb[0].mxu0 %v2428
      %v2557 = vpop.f32.mrb[0].mxu0
      %v2558 = vadd.f32 %v2402, %v2557
      %v2559 = vpop.f32.mrb[0].mxu0
      %v2560 = vpop.f32.mrb[0].mxu0
      %v2561 = vadd.f32 %v2402, %v2560
      %v2562 = vpop.f32.mrb[0].mxu0
      %2563 = vmatprep.mubr.bf16.mxu0 0
      %2564 = vmatmul.mubr.bf16.gmra.mrb[0].mxu0 %v2431
      %v2565 = vpop.f32.mrb[0].mxu0
      %v2566 = vadd.f32 %v2402, %v2565
      %v2567 = vpop.f32.mrb[0].mxu0
      %v2568 = vpop.f32.mrb[0].mxu0
      %v2569 = vadd.f32 %v2402, %v2568
      %v2570 = vpop.f32.mrb[0].mxu0
      %2571 = vmatprep.mubr.bf16.mxu0 0
      %2572 = vmatmul.mubr.bf16.gmra.mrb[0].mxu0 %v2434
      %v2573 = vpop.f32.mrb[0].mxu0
      %v2574 = vadd.f32 %v2402, %v2573
      %v2575 = vpop.f32.mrb[0].mxu0
      %v2576 = vpop.f32.mrb[0].mxu0
      %v2577 = vadd.f32 %v2402, %v2576
      %v2578 = vpop.f32.mrb[0].mxu0
      %2579 = vmatprep.mubr.bf16.mxu0 0
      %2580 = vmatmul.mubr.bf16.gmra.mrb[0].mxu0 %v2437
      %v2581 = vpop.f32.mrb[0].mxu0
      %v2582 = vadd.f32 %v2402, %v2581
      %v2583 = vpop.f32.mrb[0].mxu0
      %v2584 = vpop.f32.mrb[0].mxu0
      %v2585 = vadd.f32 %v2402, %v2584
      %v2586 = vpop.f32.mrb[0].mxu0
      %2587 = vmatprep.mubr.bf16.mxu0 0
      %2588 = vmatmul.mubr.bf16.gmra.mrb[0].mxu0 %v2440
      %v2589 = vpop.f32.mrb[0].mxu0
      %v2590 = vadd.f32 %v2402, %v2589
      %v2591 = vpop.f32.mrb[0].mxu0
      %v2592 = vpop.f32.mrb[0].mxu0
      %v2593 = vadd.f32 %v2402, %v2592
      %v2594 = vpop.f32.mrb[0].mxu0
      %2595 = vmatprep.mubr.bf16.mxu0 0
      %2596 = vmatmul.mubr.bf16.gmra.mrb[0].mxu0 %v2443
      %v2597 = vpop.f32.mrb[0].mxu0
      %v2598 = vadd.f32 %v2402, %v2597
      %v2599 = vpop.f32.mrb[0].mxu0
      %v2600 = vpop.f32.mrb[0].mxu0
      %v2601 = vadd.f32 %v2402, %v2600
      %v2602 = vpop.f32.mrb[0].mxu0
      %2603 = vmatprep.mubr.bf16.mxu0 0
      %2604 = vmatmul.mubr.bf16.gmra.mrb[0].mxu0 %v2446
      %v2605 = vpop.f32.mrb[0].mxu0
      %v2606 = vadd.f32 %v2402, %v2605
      %v2607 = vpop.f32.mrb[0].mxu0
      %v2608 = vpop.f32.mrb[0].mxu0
      %v2609 = vadd.f32 %v2402, %v2608
      %v2610 = vpop.f32.mrb[0].mxu0
      %2611 = vmatprep.mubr.bf16.mxu0 0
      %2612 = vmatmul.mubr.bf16.gmra.mrb[0].mxu0 %v2449
      %v2613 = vpop.f32.mrb[0].mxu0
      %v2614 = vadd.f32 %v2402, %v2613
      %v2615 = vpop.f32.mrb[0].mxu0
      %v2616 = vpop.f32.mrb[0].mxu0
      %v2617 = vadd.f32 %v2402, %v2616
      %v2618 = vpop.f32.mrb[0].mxu0
      %2619 = vmatprep.mubr.bf16.mxu0 0
      %2620 = vmatmul.mubr.bf16.gmra.mrb[0].mxu0 %v2452
      %v2621 = vpop.f32.mrb[0].mxu0
      %v2622 = vadd.f32 %v2402, %v2621
      %v2623 = vpop.f32.mrb[0].mxu0
      %v2624 = vpop.f32.mrb[0].mxu0
      %v2625 = vadd.f32 %v2402, %v2624
      %v2626 = vpop.f32.mrb[0].mxu0
      %2627 = vmatprep.mubr.bf16.mxu0 0
      %2628 = vmatmul.mubr.bf16.gmra.mrb[0].mxu0 %v2455
      %v2629 = vpop.f32.mrb[0].mxu0
      %v2630 = vadd.f32 %v2402, %v2629
      %v2631 = vpop.f32.mrb[0].mxu0
      %v2632 = vpop.f32.mrb[0].mxu0
      %v2633 = vadd.f32 %v2402, %v2632
      %v2634 = vpop.f32.mrb[0].mxu0
      %2635 = vmatprep.mubr.bf16.mxu0 0
      %2636 = vmatmul.mubr.bf16.gmra.mrb[0].mxu0 %v2458
      %v2637 = vpop.f32.mrb[0].mxu0
      %v2638 = vadd.f32 %v2402, %v2637
      %v2639 = vpop.f32.mrb[0].mxu0
      %v2640 = vpop.f32.mrb[0].mxu0
      %v2641 = vadd.f32 %v2402, %v2640
      %v2642 = vpop.f32.mrb[0].mxu0
      %2643 = vmatprep.mubr.bf16.mxu0 0
      %2644 = vmatmul.mubr.bf16.gmra.mrb[0].mxu0 %v2461
      %v2645 = vpop.f32.mrb[0].mxu0
      %v2646 = vadd.f32 %v2402, %v2645
      %v2647 = vpop.f32.mrb[0].mxu0
      %v2648 = vpop.f32.mrb[0].mxu0
      %v2649 = vadd.f32 %v2402, %v2648
      %v2650 = vpop.f32.mrb[0].mxu0
      %2651 = vmatprep.mubr.bf16.mxu0 0
      %2652 = vmatmul.mubr.bf16.gmra.mrb[0].mxu0 %v2464
      %v2653 = vpop.f32.mrb[0].mxu0
      %v2654 = vadd.f32 %v2402, %v2653
      %v2655 = vpop.f32.mrb[0].mxu0
      %v2656 = vpop.f32.mrb[0].mxu0
      %v2657 = vadd.f32 %v2402, %v2656
      %v2658 = vpop.f32.mrb[0].mxu0
      %2659 = vmatprep.mubr.bf16.mxu0 0
      %2660 = vmatmul.mubr.bf16.gmra.mrb[0].mxu0 %v2467
      %v2661 = vpop.f32.mrb[0].mxu0
      %v2662 = vadd.f32 %v2402, %v2661
      %v2663 = vpop.f32.mrb[0].mxu0
      %v2664 = vpop.f32.mrb[0].mxu0
      %v2665 = vadd.f32 %v2402, %v2664
      %v2666 = vpop.f32.mrb[0].mxu0
      %2667 = vmatprep.mubr.bf16.mxu0 0
      %2668 = vmatmul.mubr.bf16.gmra.mrb[0].mxu0 %v2470
      %v2669 = vpop.f32.mrb[0].mxu0
      %v2670 = vadd.f32 %v2402, %v2669
      %v2671 = vpop.f32.mrb[0].mxu0
      %v2672 = vpop.f32.mrb[0].mxu0
      %v2673 = vadd.f32 %v2402, %v2672
      %v2674 = vpop.f32.mrb[0].mxu0
      %2675 = vmatprep.mubr.bf16.mxu0 0
      %2676 = vmatmul.mubr.bf16.gmra.mrb[0].mxu0 %v2473
      %v2677 = vpop.f32.mrb[0].mxu0
      %v2678 = vadd.f32 %v2402, %v2677
      %v2679 = vpop.f32.mrb[0].mxu0
      %v2680 = vpop.f32.mrb[0].mxu0
      %v2681 = vadd.f32 %v2402, %v2680
      %v2682 = vpop.f32.mrb[0].mxu0
      %2683 = vmatprep.mubr.bf16.mxu0 0
      %2684 = vmatmul.mubr.bf16.gmra.mrb[0].mxu0 %v2476
      %v2685 = vpop.f32.mrb[0].mxu0
      %v2686 = vadd.f32 %v2402, %v2685
      %v2687 = vpop.f32.mrb[0].mxu0
      %v2688 = vpop.f32.mrb[0].mxu0
      %v2689 = vadd.f32 %v2402, %v2688
      %v2690 = vpop.f32.mrb[0].mxu0
      %2691 = vmatprep.mubr.bf16.mxu0 0
      %2692 = vmatmul.mubr.bf16.gmra.mrb[0].mxu0 %v2479
      %v2693 = vpop.f32.mrb[0].mxu0
      %v2694 = vadd.f32 %v2402, %v2693
      %v2695 = vpop.f32.mrb[0].mxu0
      %v2696 = vpop.f32.mrb[0].mxu0
      %v2697 = vadd.f32 %v2402, %v2696
      %v2698 = vpop.f32.mrb[0].mxu0
      %2699 = vmatprep.mubr.bf16.mxu0 0
      %2700 = vmatmul.mubr.bf16.gmra.mrb[0].mxu0 %v2482
      %v2701 = vpop.f32.mrb[0].mxu0
      %v2702 = vadd.f32 %v2402, %v2701
      %v2703 = vpop.f32.mrb[0].mxu0
      %v2704 = vpop.f32.mrb[0].mxu0
      %v2705 = vadd.f32 %v2402, %v2704
      %v2706 = vpop.f32.mrb[0].mxu0
      %2707 = vmatprep.mubr.bf16.mxu0 0
      %2708 = vmatmul.mubr.bf16.gmra.mrb[0].mxu0 %v2485
      %v2709 = vpop.f32.mrb[0].mxu0
      %v2710 = vadd.f32 %v2402, %v2709
      %v2711 = vpop.f32.mrb[0].mxu0
      %v2712 = vpop.f32.mrb[0].mxu0
      %v2713 = vadd.f32 %v2402, %v2712
      %v2714 = vpop.f32.mrb[0].mxu0
      %2715 = vmatprep.mubr.bf16.mxu0 0
      %2716 = vmatmul.mubr.bf16.gmra.mrb[0].mxu0 %v2488
      %v2717 = vpop.f32.mrb[0].mxu0
      %v2718 = vadd.f32 %v2402, %v2717
      %v2719 = vpop.f32.mrb[0].mxu0
      %v2720 = vpop.f32.mrb[0].mxu0
      %v2721 = vadd.f32 %v2402, %v2720
      %v2722 = vpop.f32.mrb[0].mxu0
      %2723 = vmatprep.mubr.bf16.mxu0 0
      %2724 = vmatmul.mubr.bf16.gmra.mrb[0].mxu0 %v2491
      %v2725 = vpop.f32.mrb[0].mxu0
      %v2726 = vadd.f32 %v2402, %v2725
      %v2727 = vpop.f32.mrb[0].mxu0
      %v2728 = vpop.f32.mrb[0].mxu0
      %v2729 = vadd.f32 %v2402, %v2728
      %v2730 = vpop.f32.mrb[0].mxu0
      %2731 = vmatprep.mubr.bf16.mxu0 0
      %2732 = vmatmul.mubr.bf16.gmra.mrb[0].mxu0 %v2494
      %v2733 = vpop.f32.mrb[0].mxu0
      %v2734 = vadd.f32 %v2402, %v2733
      %v2735 = vpop.f32.mrb[0].mxu0
      %v2736 = vpop.f32.mrb[0].mxu0
      %v2737 = vadd.f32 %v2402, %v2736
      %v2738 = vpop.f32.mrb[0].mxu0
      %2739 = vmatprep.mubr.bf16.mxu0 0
      %2740 = vmatmul.mubr.bf16.gmra.mrb[0].mxu0 %v2497
      %v2741 = vpop.f32.mrb[0].mxu0
      %v2742 = vadd.f32 %v2402, %v2741
      %v2743 = vpop.f32.mrb[0].mxu0
      %v2744 = vpop.f32.mrb[0].mxu0
      %v2745 = vadd.f32 %v2402, %v2744
      %v2746 = vpop.f32.mrb[0].mxu0
      %2747 = vmatprep.mubr.bf16.mxu0 0
      %2748 = vmatmul.mubr.bf16.gmra.mrb[0].mxu0 %v2500
      %v2749 = vpop.f32.mrb[0].mxu0
      %v2750 = vadd.f32 %v2402, %v2749
      %v2751 = vpop.f32.mrb[0].mxu0
      %v2752 = vpop.f32.mrb[0].mxu0
      %v2753 = vadd.f32 %v2402, %v2752
      %v2754 = vpop.f32.mrb[0].mxu0
      %2755 = vmatprep.mubr.bf16.mxu0 0
      %2756 = vmatmul.mubr.bf16.gmra.mrb[0].mxu0 %v2503
      %v2757 = vpop.f32.mrb[0].mxu0
      %v2758 = vadd.f32 %v2402, %v2757
      %v2759 = vpop.f32.mrb[0].mxu0
      %v2760 = vpop.f32.mrb[0].mxu0
      %v2761 = vadd.f32 %v2402, %v2760
      %v2762 = vpop.f32.mrb[0].mxu0
      %2763 = vmatprep.mubr.bf16.mxu0 0
      %2764 = vmatmul.mubr.bf16.gmra.mrb[0].mxu0 %v2506
      %v2765 = vpop.f32.mrb[0].mxu0
      %v2766 = vadd.f32 %v2402, %v2765
      %v2767 = vpop.f32.mrb[0].mxu0
      %v2768 = vpop.f32.mrb[0].mxu0
      %v2769 = vadd.f32 %v2402, %v2768
      %v2770 = vpop.f32.mrb[0].mxu0
      %2771 = vmatprep.mubr.bf16.mxu0 0
      %2772 = vmatmul.mubr.bf16.gmra.mrb[0].mxu0 %v2509
      %v2773 = vpop.f32.mrb[0].mxu0
      %v2774 = vadd.f32 %v2402, %v2773
      %v2775 = vpop.f32.mrb[0].mxu0
      %v2776 = vpop.f32.mrb[0].mxu0
      %v2777 = vadd.f32 %v2402, %v2776
      %v2778 = vpop.f32.mrb[0].mxu0
      %2779 = vmatprep.mubr.bf16.mxu0 0
      %2780 = vmatmul.mubr.bf16.gmra.mrb[0].mxu0 %v2512
      %v2781 = vpop.f32.mrb[0].mxu0
      %v2782 = vadd.f32 %v2402, %v2781
      %v2783 = vpop.f32.mrb[0].mxu0
      %v2784 = vpop.f32.mrb[0].mxu0
      %v2785 = vadd.f32 %v2402, %v2784
      %v2786 = vpop.f32.mrb[0].mxu0
      %2787 = vmatprep.mubr.bf16.mxu0 0
      %2788 = vmatmul.mubr.bf16.gmra.mrb[0].mxu0 %v2515
      %v2789 = vpop.f32.mrb[0].mxu0
      %v2790 = vadd.f32 %v2402, %v2789
      %v2791 = vpop.f32.mrb[0].mxu0
      %v2792 = vpop.f32.mrb[0].mxu0
      %v2793 = vadd.f32 %v2402, %v2792
      %v2794 = vpop.f32.mrb[0].mxu0
      %2795 = vmatprep.mubr.bf16.mxu0 0
      %2796 = vmatmul.mubr.bf16.gmra.mrb[0].mxu0 %v2518
      %v2797 = vpop.f32.mrb[0].mxu0
      %v2798 = vadd.f32 %v2402, %v2797
      %v2799 = vpop.f32.mrb[0].mxu0
      %v2800 = vpop.f32.mrb[0].mxu0
      %v2801 = vadd.f32 %v2402, %v2800
      %v2802 = vpop.f32.mrb[0].mxu0
      %2803 = vmatprep.mubr.bf16.mxu0 0
      %2804 = vmatmul.mubr.bf16.gmra.mrb[0].mxu0 %v2521
      %v2805 = vpop.f32.mrb[0].mxu0
      %v2806 = vadd.f32 %v2402, %v2805
      %v2807 = vpop.f32.mrb[0].mxu0
      %v2808 = vpop.f32.mrb[0].mxu0
      %v2809 = vadd.f32 %v2402, %v2808
      %v2810 = vpop.f32.mrb[0].mxu0
      %2811 = vdwg.mxu0
      %v2812 = vmax.f32 %v2558, 0.0
      %v2813 = vmax.f32 %v2561, 0.0
      %v2814 = vmax.f32 %v2566, 0.0
      %v2815 = vmax.f32 %v2569, 0.0
      %v2816 = vmax.f32 %v2574, 0.0
      %v2817 = vmax.f32 %v2577, 0.0
      %v2818 = vmax.f32 %v2582, 0.0
      %v2819 = vmax.f32 %v2585, 0.0
      %v2820 = vmax.f32 %v2590, 0.0
      %v2821 = vmax.f32 %v2593, 0.0
      %v2822 = vmax.f32 %v2598, 0.0
      %v2823 = vmax.f32 %v2601, 0.0
      %v2824 = vmax.f32 %v2606, 0.0
      %v2825 = vmax.f32 %v2609, 0.0
      %v2826 = vmax.f32 %v2614, 0.0
      %v2827 = vmax.f32 %v2617, 0.0
      %v2828 = vmax.f32 %v2622, 0.0
      %v2829 = vmax.f32 %v2625, 0.0
      %v2830 = vmax.f32 %v2630, 0.0
      %v2831 = vmax.f32 %v2633, 0.0
      %v2832 = vmax.f32 %v2638, 0.0
      %v2833 = vmax.f32 %v2641, 0.0
      %v2834 = vmax.f32 %v2646, 0.0
      %v2835 = vmax.f32 %v2649, 0.0
      %v2836 = vmax.f32 %v2654, 0.0
      %v2837 = vmax.f32 %v2657, 0.0
      %v2838 = vmax.f32 %v2662, 0.0
      %v2839 = vmax.f32 %v2665, 0.0
      %v2840 = vmax.f32 %v2670, 0.0
      %v2841 = vmax.f32 %v2673, 0.0
      %v2842 = vmax.f32 %v2678, 0.0
      %v2843 = vmax.f32 %v2681, 0.0
      %v2844 = vmax.f32 %v2686, 0.0
      %v2845 = vmax.f32 %v2689, 0.0
      %v2846 = vmax.f32 %v2694, 0.0
      %v2847 = vmax.f32 %v2697, 0.0
      %v2848 = vmax.f32 %v2702, 0.0
      %v2849 = vmax.f32 %v2705, 0.0
      %v2850 = vmax.f32 %v2710, 0.0
      %v2851 = vmax.f32 %v2713, 0.0
      %v2852 = vmax.f32 %v2718, 0.0
      %v2853 = vmax.f32 %v2721, 0.0
      %v2854 = vmax.f32 %v2726, 0.0
      %v2855 = vmax.f32 %v2729, 0.0
      %v2856 = vmax.f32 %v2734, 0.0
      %v2857 = vmax.f32 %v2737, 0.0
      %v2858 = vmax.f32 %v2742, 0.0
      %v2859 = vmax.f32 %v2745, 0.0
      %v2860 = vmax.f32 %v2750, 0.0
      %v2861 = vmax.f32 %v2753, 0.0
      %v2862 = vmax.f32 %v2758, 0.0
      %v2863 = vmax.f32 %v2761, 0.0
      %v2864 = vmax.f32 %v2766, 0.0
      %v2865 = vmax.f32 %v2769, 0.0
      %v2866 = vmax.f32 %v2774, 0.0
      %v2867 = vmax.f32 %v2777, 0.0
      %v2868 = vmax.f32 %v2782, 0.0
      %v2869 = vmax.f32 %v2785, 0.0
      %v2870 = vmax.f32 %v2790, 0.0
      %v2871 = vmax.f32 %v2793, 0.0
      %v2872 = vmax.f32 %v2798, 0.0
      %v2873 = vmax.f32 %v2801, 0.0
      %v2874 = vmax.f32 %v2806, 0.0
      %v2875 = vmax.f32 %v2809, 0.0
      %v2876 = vpack.c.bf16 %v2813, %v2812
      %v2877 = vpack.c.bf16 %v2815, %v2814
      %v2878 = vpack.c.bf16 %v2817, %v2816
      %v2879 = vpack.c.bf16 %v2819, %v2818
      %v2880 = vpack.c.bf16 %v2821, %v2820
      %v2881 = vpack.c.bf16 %v2823, %v2822
      %v2882 = vpack.c.bf16 %v2825, %v2824
      %v2883 = vpack.c.bf16 %v2827, %v2826
      %v2884 = vpack.c.bf16 %v2829, %v2828
      %v2885 = vpack.c.bf16 %v2831, %v2830
      %v2886 = vpack.c.bf16 %v2833, %v2832
      %v2887 = vpack.c.bf16 %v2835, %v2834
      %v2888 = vpack.c.bf16 %v2837, %v2836
      %v2889 = vpack.c.bf16 %v2839, %v2838
      %v2890 = vpack.c.bf16 %v2841, %v2840
      %v2891 = vpack.c.bf16 %v2843, %v2842
      %v2892 = vpack.c.bf16 %v2845, %v2844
      %v2893 = vpack.c.bf16 %v2847, %v2846
      %v2894 = vpack.c.bf16 %v2849, %v2848
      %v2895 = vpack.c.bf16 %v2851, %v2850
      %v2896 = vpack.c.bf16 %v2853, %v2852
      %v2897 = vpack.c.bf16 %v2855, %v2854
      %v2898 = vpack.c.bf16 %v2857, %v2856
      %v2899 = vpack.c.bf16 %v2859, %v2858
      %v2900 = vpack.c.bf16 %v2861, %v2860
      %v2901 = vpack.c.bf16 %v2863, %v2862
      %v2902 = vpack.c.bf16 %v2865, %v2864
      %v2903 = vpack.c.bf16 %v2867, %v2866
      %v2904 = vpack.c.bf16 %v2869, %v2868
      %v2905 = vpack.c.bf16 %v2871, %v2870
      %v2906 = vpack.c.bf16 %v2873, %v2872
      %v2907 = vpack.c.bf16 %v2875, %v2874
      %v2908 = vld [vmem:[%s1 + $0x58] sm:$0xf]
      %v2909 = vld [vmem:[%s1 + $0x5c] sm:$0xf]
      %v2910 = vld [vmem:[%s1 + $0x60] sm:$0xf]
      %v2911 = vld [vmem:[%s1 + $0x64] sm:$0xf]
      %v2912 = vld [vmem:[%s1 + $0x68] sm:$0xf]
      %v2913 = vld [vmem:[%s1 + $0x6c] sm:$0xf]
      %v2914 = vld [vmem:[%s1 + $0x70] sm:$0xf]
      %v2915 = vld [vmem:[%s1 + $0x74] sm:$0xf]
      %v2916 = vld [vmem:[%s2 + $0x3] sm:$0x1]
      %v2917 = vlaneseq
      %v2918 = vshrl.u32 %v2917, 7
      %v2919 = vsub.s32 0, %v2918
      %v2920 = vrot.slane %v2916, %v2919
      %v2929 = vunpack.c.l.b16 %v2908
      %v2930 = vunpack.c.l.b16 %v2909
      %v2931 = vunpack.c.l.b16 %v2910
      %v2932 = vunpack.c.l.b16 %v2911
      %v2933 = vunpack.c.l.b16 %v2912
      %v2934 = vunpack.c.l.b16 %v2913
      %v2935 = vunpack.c.l.b16 %v2914
      %v2936 = vunpack.c.l.b16 %v2915
      %v2937 = vpack.c.b16 %v2930, %v2929
      %v2938 = vpack.c.b16 %v2932, %v2931
      %v2939 = vpack.c.b16 %v2934, %v2933
      %v2940 = vpack.c.b16 %v2936, %v2935
      %v2946 = vsel %vm947, %v2876, 0
      %v2949 = vsel %vm947, %v2877, 0
      %v2952 = vsel %vm947, %v2878, 0
      %v2955 = vsel %vm947, %v2879, 0
      %v2958 = vsel %vm947, %v2880, 0
      %v2961 = vsel %vm947, %v2881, 0
      %v2964 = vsel %vm947, %v2882, 0
      %v2967 = vsel %vm947, %v2883, 0
      %v2970 = vsel %vm947, %v2884, 0
      %v2973 = vsel %vm947, %v2885, 0
      %v2976 = vsel %vm947, %v2886, 0
      %v2979 = vsel %vm947, %v2887, 0
      %v2982 = vsel %vm947, %v2888, 0
      %v2985 = vsel %vm947, %v2889, 0
      %v2988 = vsel %vm947, %v2890, 0
      %v2991 = vsel %vm947, %v2891, 0
      %v2994 = vsel %vm947, %v2892, 0
      %v2997 = vsel %vm947, %v2893, 0
      %v3000 = vsel %vm947, %v2894, 0
      %v3003 = vsel %vm947, %v2895, 0
      %v3006 = vsel %vm947, %v2896, 0
      %v3009 = vsel %vm947, %v2897, 0
      %v3012 = vsel %vm947, %v2898, 0
      %v3015 = vsel %vm947, %v2899, 0
      %v3018 = vsel %vm947, %v2900, 0
      %v3021 = vsel %vm947, %v2901, 0
      %v3024 = vsel %vm947, %v2902, 0
      %v3027 = vsel %vm947, %v2903, 0
      %v3030 = vsel %vm947, %v2904, 0
      %v3033 = vsel %vm947, %v2905, 0
      %v3036 = vsel %vm947, %v2906, 0
      %v3039 = vsel %vm947, %v2907, 0
      %3041 = vmatprep.subr.bf16.mxu0 0
      %3042 = vmatpush1.bf16.msra.mxu0 %v2937
      %3043 = vmatprep.subr.bf16.mxu0 0
      %3044 = vmatpush1.bf16.msra.mxu0 %v2938
      %3045 = vmatprep.subr.bf16.mxu0 0
      %3046 = vmatpush1.bf16.msra.mxu0 %v2939
      %3047 = vmatprep.subr.bf16.mxu0 0
      %3048 = vmatpush1.bf16.msra.mxu0 %v2940
      %3049 = vmatprep.subr.bf16.mxu0 0
      %3050 = vmatpush1.bf16.msra.mxu0 0
      %3051 = vmatprep.subr.bf16.mxu0 0
      %3052 = vmatpush1.bf16.msra.mxu0 0
      %3053 = vmatprep.subr.bf16.mxu0 0
      %3054 = vmatpush1.bf16.msra.mxu0 0
      %3055 = vmatprep.subr.bf16.mxu0 0
      %3056 = vmatpush1.bf16.msra.mxu0 0
      %3057 = vmatprep.subr.bf16.mxu0 0
      %3058 = vmatpush1.bf16.msra.mxu0 0
      %3059 = vmatprep.subr.bf16.mxu0 0
      %3060 = vmatpush1.bf16.msra.mxu0 0
      %3061 = vmatprep.subr.bf16.mxu0 0
      %3062 = vmatpush1.bf16.msra.mxu0 0
      %3063 = vmatprep.subr.bf16.mxu0 0
      %3064 = vmatpush1.bf16.msra.mxu0 0
      %3065 = vmatprep.subr.bf16.mxu0 0
      %3066 = vmatpush1.bf16.msra.mxu0 0
      %3067 = vmatprep.subr.bf16.mxu0 0
      %3068 = vmatpush1.bf16.msra.mxu0 0
      %3069 = vmatprep.subr.bf16.mxu0 0
      %3070 = vmatpush1.bf16.msra.mxu0 0
      %3071 = vmatprep.subr.bf16.mxu0 0
      %3072 = vmatpush1.bf16.msra.mxu0 0
      %3073 = vmatprep.mubr.bf16.mxu0 0
      %3074 = vmatmul.mubr.bf16.gmra.mrb[0].mxu0 %v2946
      %v3075 = vpop.f32.mrb[0].mxu0
      %v3076 = vadd.f32 %v2920, %v3075
      %v3077 = vpop.f32.mrb[0].mxu0
      %v3078 = vpop.f32.mrb[0].mxu0
      %v3079 = vadd.f32 %v2920, %v3078
      %v3080 = vpop.f32.mrb[0].mxu0
      %3081 = vmatprep.mubr.bf16.mxu0 0
      %3082 = vmatmul.mubr.bf16.gmra.mrb[0].mxu0 %v2949
      %v3083 = vpop.f32.mrb[0].mxu0
      %v3084 = vadd.f32 %v2920, %v3083
      %v3085 = vpop.f32.mrb[0].mxu0
      %v3086 = vpop.f32.mrb[0].mxu0
      %v3087 = vadd.f32 %v2920, %v3086
      %v3088 = vpop.f32.mrb[0].mxu0
      %3089 = vmatprep.mubr.bf16.mxu0 0
      %3090 = vmatmul.mubr.bf16.gmra.mrb[0].mxu0 %v2952
      %v3091 = vpop.f32.mrb[0].mxu0
      %v3092 = vadd.f32 %v2920, %v3091
      %v3093 = vpop.f32.mrb[0].mxu0
      %v3094 = vpop.f32.mrb[0].mxu0
      %v3095 = vadd.f32 %v2920, %v3094
      %v3096 = vpop.f32.mrb[0].mxu0
      %3097 = vmatprep.mubr.bf16.mxu0 0
      %3098 = vmatmul.mubr.bf16.gmra.mrb[0].mxu0 %v2955
      %v3099 = vpop.f32.mrb[0].mxu0
      %v3100 = vadd.f32 %v2920, %v3099
      %v3101 = vpop.f32.mrb[0].mxu0
      %v3102 = vpop.f32.mrb[0].mxu0
      %v3103 = vadd.f32 %v2920, %v3102
      %v3104 = vpop.f32.mrb[0].mxu0
      %3105 = vmatprep.mubr.bf16.mxu0 0
      %3106 = vmatmul.mubr.bf16.gmra.mrb[0].mxu0 %v2958
      %v3107 = vpop.f32.mrb[0].mxu0
      %v3108 = vadd.f32 %v2920, %v3107
      %v3109 = vpop.f32.mrb[0].mxu0
      %v3110 = vpop.f32.mrb[0].mxu0
      %v3111 = vadd.f32 %v2920, %v3110
      %v3112 = vpop.f32.mrb[0].mxu0
      %3113 = vmatprep.mubr.bf16.mxu0 0
      %3114 = vmatmul.mubr.bf16.gmra.mrb[0].mxu0 %v2961
      %v3115 = vpop.f32.mrb[0].mxu0
      %v3116 = vadd.f32 %v2920, %v3115
      %v3117 = vpop.f32.mrb[0].mxu0
      %v3118 = vpop.f32.mrb[0].mxu0
      %v3119 = vadd.f32 %v2920, %v3118
      %v3120 = vpop.f32.mrb[0].mxu0
      %3121 = vmatprep.mubr.bf16.mxu0 0
      %3122 = vmatmul.mubr.bf16.gmra.mrb[0].mxu0 %v2964
      %v3123 = vpop.f32.mrb[0].mxu0
      %v3124 = vadd.f32 %v2920, %v3123
      %v3125 = vpop.f32.mrb[0].mxu0
      %v3126 = vpop.f32.mrb[0].mxu0
      %v3127 = vadd.f32 %v2920, %v3126
      %v3128 = vpop.f32.mrb[0].mxu0
      %3129 = vmatprep.mubr.bf16.mxu0 0
      %3130 = vmatmul.mubr.bf16.gmra.mrb[0].mxu0 %v2967
      %v3131 = vpop.f32.mrb[0].mxu0
      %v3132 = vadd.f32 %v2920, %v3131
      %v3133 = vpop.f32.mrb[0].mxu0
      %v3134 = vpop.f32.mrb[0].mxu0
      %v3135 = vadd.f32 %v2920, %v3134
      %v3136 = vpop.f32.mrb[0].mxu0
      %3137 = vmatprep.mubr.bf16.mxu0 0
      %3138 = vmatmul.mubr.bf16.gmra.mrb[0].mxu0 %v2970
      %v3139 = vpop.f32.mrb[0].mxu0
      %v3140 = vadd.f32 %v2920, %v3139
      %v3141 = vpop.f32.mrb[0].mxu0
      %v3142 = vpop.f32.mrb[0].mxu0
      %v3143 = vadd.f32 %v2920, %v3142
      %v3144 = vpop.f32.mrb[0].mxu0
      %3145 = vmatprep.mubr.bf16.mxu0 0
      %3146 = vmatmul.mubr.bf16.gmra.mrb[0].mxu0 %v2973
      %v3147 = vpop.f32.mrb[0].mxu0
      %v3148 = vadd.f32 %v2920, %v3147
      %v3149 = vpop.f32.mrb[0].mxu0
      %v3150 = vpop.f32.mrb[0].mxu0
      %v3151 = vadd.f32 %v2920, %v3150
      %v3152 = vpop.f32.mrb[0].mxu0
      %3153 = vmatprep.mubr.bf16.mxu0 0
      %3154 = vmatmul.mubr.bf16.gmra.mrb[0].mxu0 %v2976
      %v3155 = vpop.f32.mrb[0].mxu0
      %v3156 = vadd.f32 %v2920, %v3155
      %v3157 = vpop.f32.mrb[0].mxu0
      %v3158 = vpop.f32.mrb[0].mxu0
      %v3159 = vadd.f32 %v2920, %v3158
      %v3160 = vpop.f32.mrb[0].mxu0
      %3161 = vmatprep.mubr.bf16.mxu0 0
      %3162 = vmatmul.mubr.bf16.gmra.mrb[0].mxu0 %v2979
      %v3163 = vpop.f32.mrb[0].mxu0
      %v3164 = vadd.f32 %v2920, %v3163
      %v3165 = vpop.f32.mrb[0].mxu0
      %v3166 = vpop.f32.mrb[0].mxu0
      %v3167 = vadd.f32 %v2920, %v3166
      %v3168 = vpop.f32.mrb[0].mxu0
      %3169 = vmatprep.mubr.bf16.mxu0 0
      %3170 = vmatmul.mubr.bf16.gmra.mrb[0].mxu0 %v2982
      %v3171 = vpop.f32.mrb[0].mxu0
      %v3172 = vadd.f32 %v2920, %v3171
      %v3173 = vpop.f32.mrb[0].mxu0
      %v3174 = vpop.f32.mrb[0].mxu0
      %v3175 = vadd.f32 %v2920, %v3174
      %v3176 = vpop.f32.mrb[0].mxu0
      %3177 = vmatprep.mubr.bf16.mxu0 0
      %3178 = vmatmul.mubr.bf16.gmra.mrb[0].mxu0 %v2985
      %v3179 = vpop.f32.mrb[0].mxu0
      %v3180 = vadd.f32 %v2920, %v3179
      %v3181 = vpop.f32.mrb[0].mxu0
      %v3182 = vpop.f32.mrb[0].mxu0
      %v3183 = vadd.f32 %v2920, %v3182
      %v3184 = vpop.f32.mrb[0].mxu0
      %3185 = vmatprep.mubr.bf16.mxu0 0
      %3186 = vmatmul.mubr.bf16.gmra.mrb[0].mxu0 %v2988
      %v3187 = vpop.f32.mrb[0].mxu0
      %v3188 = vadd.f32 %v2920, %v3187
      %v3189 = vpop.f32.mrb[0].mxu0
      %v3190 = vpop.f32.mrb[0].mxu0
      %v3191 = vadd.f32 %v2920, %v3190
      %v3192 = vpop.f32.mrb[0].mxu0
      %3193 = vmatprep.mubr.bf16.mxu0 0
      %3194 = vmatmul.mubr.bf16.gmra.mrb[0].mxu0 %v2991
      %v3195 = vpop.f32.mrb[0].mxu0
      %v3196 = vadd.f32 %v2920, %v3195
      %v3197 = vpop.f32.mrb[0].mxu0
      %v3198 = vpop.f32.mrb[0].mxu0
      %v3199 = vadd.f32 %v2920, %v3198
      %v3200 = vpop.f32.mrb[0].mxu0
      %3201 = vmatprep.mubr.bf16.mxu0 0
      %3202 = vmatmul.mubr.bf16.gmra.mrb[0].mxu0 %v2994
      %v3203 = vpop.f32.mrb[0].mxu0
      %v3204 = vadd.f32 %v2920, %v3203
      %v3205 = vpop.f32.mrb[0].mxu0
      %v3206 = vpop.f32.mrb[0].mxu0
      %v3207 = vadd.f32 %v2920, %v3206
      %v3208 = vpop.f32.mrb[0].mxu0
      %3209 = vmatprep.mubr.bf16.mxu0 0
      %3210 = vmatmul.mubr.bf16.gmra.mrb[0].mxu0 %v2997
      %v3211 = vpop.f32.mrb[0].mxu0
      %v3212 = vadd.f32 %v2920, %v3211
      %v3213 = vpop.f32.mrb[0].mxu0
      %v3214 = vpop.f32.mrb[0].mxu0
      %v3215 = vadd.f32 %v2920, %v3214
      %v3216 = vpop.f32.mrb[0].mxu0
      %3217 = vmatprep.mubr.bf16.mxu0 0
      %3218 = vmatmul.mubr.bf16.gmra.mrb[0].mxu0 %v3000
      %v3219 = vpop.f32.mrb[0].mxu0
      %v3220 = vadd.f32 %v2920, %v3219
      %v3221 = vpop.f32.mrb[0].mxu0
      %v3222 = vpop.f32.mrb[0].mxu0
      %v3223 = vadd.f32 %v2920, %v3222
      %v3224 = vpop.f32.mrb[0].mxu0
      %3225 = vmatprep.mubr.bf16.mxu0 0
      %3226 = vmatmul.mubr.bf16.gmra.mrb[0].mxu0 %v3003
      %v3227 = vpop.f32.mrb[0].mxu0
      %v3228 = vadd.f32 %v2920, %v3227
      %v3229 = vpop.f32.mrb[0].mxu0
      %v3230 = vpop.f32.mrb[0].mxu0
      %v3231 = vadd.f32 %v2920, %v3230
      %v3232 = vpop.f32.mrb[0].mxu0
      %3233 = vmatprep.mubr.bf16.mxu0 0
      %3234 = vmatmul.mubr.bf16.gmra.mrb[0].mxu0 %v3006
      %v3235 = vpop.f32.mrb[0].mxu0
      %v3236 = vadd.f32 %v2920, %v3235
      %v3237 = vpop.f32.mrb[0].mxu0
      %v3238 = vpop.f32.mrb[0].mxu0
      %v3239 = vadd.f32 %v2920, %v3238
      %v3240 = vpop.f32.mrb[0].mxu0
      %3241 = vmatprep.mubr.bf16.mxu0 0
      %3242 = vmatmul.mubr.bf16.gmra.mrb[0].mxu0 %v3009
      %v3243 = vpop.f32.mrb[0].mxu0
      %v3244 = vadd.f32 %v2920, %v3243
      %v3245 = vpop.f32.mrb[0].mxu0
      %v3246 = vpop.f32.mrb[0].mxu0
      %v3247 = vadd.f32 %v2920, %v3246
      %v3248 = vpop.f32.mrb[0].mxu0
      %3249 = vmatprep.mubr.bf16.mxu0 0
      %3250 = vmatmul.mubr.bf16.gmra.mrb[0].mxu0 %v3012
      %v3251 = vpop.f32.mrb[0].mxu0
      %v3252 = vadd.f32 %v2920, %v3251
      %v3253 = vpop.f32.mrb[0].mxu0
      %v3254 = vpop.f32.mrb[0].mxu0
      %v3255 = vadd.f32 %v2920, %v3254
      %v3256 = vpop.f32.mrb[0].mxu0
      %3257 = vmatprep.mubr.bf16.mxu0 0
      %3258 = vmatmul.mubr.bf16.gmra.mrb[0].mxu0 %v3015
      %v3259 = vpop.f32.mrb[0].mxu0
      %v3260 = vadd.f32 %v2920, %v3259
      %v3261 = vpop.f32.mrb[0].mxu0
      %v3262 = vpop.f32.mrb[0].mxu0
      %v3263 = vadd.f32 %v2920, %v3262
      %v3264 = vpop.f32.mrb[0].mxu0
      %3265 = vmatprep.mubr.bf16.mxu0 0
      %3266 = vmatmul.mubr.bf16.gmra.mrb[0].mxu0 %v3018
      %v3267 = vpop.f32.mrb[0].mxu0
      %v3268 = vadd.f32 %v2920, %v3267
      %v3269 = vpop.f32.mrb[0].mxu0
      %v3270 = vpop.f32.mrb[0].mxu0
      %v3271 = vadd.f32 %v2920, %v3270
      %v3272 = vpop.f32.mrb[0].mxu0
      %3273 = vmatprep.mubr.bf16.mxu0 0
      %3274 = vmatmul.mubr.bf16.gmra.mrb[0].mxu0 %v3021
      %v3275 = vpop.f32.mrb[0].mxu0
      %v3276 = vadd.f32 %v2920, %v3275
      %v3277 = vpop.f32.mrb[0].mxu0
      %v3278 = vpop.f32.mrb[0].mxu0
      %v3279 = vadd.f32 %v2920, %v3278
      %v3280 = vpop.f32.mrb[0].mxu0
      %3281 = vmatprep.mubr.bf16.mxu0 0
      %3282 = vmatmul.mubr.bf16.gmra.mrb[0].mxu0 %v3024
      %v3283 = vpop.f32.mrb[0].mxu0
      %v3284 = vadd.f32 %v2920, %v3283
      %v3285 = vpop.f32.mrb[0].mxu0
      %v3286 = vpop.f32.mrb[0].mxu0
      %v3287 = vadd.f32 %v2920, %v3286
      %v3288 = vpop.f32.mrb[0].mxu0
      %3289 = vmatprep.mubr.bf16.mxu0 0
      %3290 = vmatmul.mubr.bf16.gmra.mrb[0].mxu0 %v3027
      %v3291 = vpop.f32.mrb[0].mxu0
      %v3292 = vadd.f32 %v2920, %v3291
      %v3293 = vpop.f32.mrb[0].mxu0
      %v3294 = vpop.f32.mrb[0].mxu0
      %v3295 = vadd.f32 %v2920, %v3294
      %v3296 = vpop.f32.mrb[0].mxu0
      %3297 = vmatprep.mubr.bf16.mxu0 0
      %3298 = vmatmul.mubr.bf16.gmra.mrb[0].mxu0 %v3030
      %v3299 = vpop.f32.mrb[0].mxu0
      %v3300 = vadd.f32 %v2920, %v3299
      %v3301 = vpop.f32.mrb[0].mxu0
      %v3302 = vpop.f32.mrb[0].mxu0
      %v3303 = vadd.f32 %v2920, %v3302
      %v3304 = vpop.f32.mrb[0].mxu0
      %3305 = vmatprep.mubr.bf16.mxu0 0
      %3306 = vmatmul.mubr.bf16.gmra.mrb[0].mxu0 %v3033
      %v3307 = vpop.f32.mrb[0].mxu0
      %v3308 = vadd.f32 %v2920, %v3307
      %v3309 = vpop.f32.mrb[0].mxu0
      %v3310 = vpop.f32.mrb[0].mxu0
      %v3311 = vadd.f32 %v2920, %v3310
      %v3312 = vpop.f32.mrb[0].mxu0
      %3313 = vmatprep.mubr.bf16.mxu0 0
      %3314 = vmatmul.mubr.bf16.gmra.mrb[0].mxu0 %v3036
      %v3315 = vpop.f32.mrb[0].mxu0
      %v3316 = vadd.f32 %v2920, %v3315
      %v3317 = vpop.f32.mrb[0].mxu0
      %v3318 = vpop.f32.mrb[0].mxu0
      %v3319 = vadd.f32 %v2920, %v3318
      %v3320 = vpop.f32.mrb[0].mxu0
      %3321 = vmatprep.mubr.bf16.mxu0 0
      %3322 = vmatmul.mubr.bf16.gmra.mrb[0].mxu0 %v3039
      %v3323 = vpop.f32.mrb[0].mxu0
      %v3324 = vadd.f32 %v2920, %v3323
      %v3325 = vpop.f32.mrb[0].mxu0
      %v3326 = vpop.f32.mrb[0].mxu0
      %v3327 = vadd.f32 %v2920, %v3326
      %v3328 = vpop.f32.mrb[0].mxu0
      %3329 = vdwg.mxu0
      %v3330 = vsub.f32 0.0, %v3076
      %v3331 = vsub.f32 0.0, %v3079
      %v3332 = vsub.f32 0.0, %v3084
      %v3333 = vsub.f32 0.0, %v3087
      %v3334 = vsub.f32 0.0, %v3092
      %v3335 = vsub.f32 0.0, %v3095
      %v3336 = vsub.f32 0.0, %v3100
      %v3337 = vsub.f32 0.0, %v3103
      %v3338 = vsub.f32 0.0, %v3108
      %v3339 = vsub.f32 0.0, %v3111
      %v3340 = vsub.f32 0.0, %v3116
      %v3341 = vsub.f32 0.0, %v3119
      %v3342 = vsub.f32 0.0, %v3124
      %v3343 = vsub.f32 0.0, %v3127
      %v3344 = vsub.f32 0.0, %v3132
      %v3345 = vsub.f32 0.0, %v3135
      %v3346 = vsub.f32 0.0, %v3140
      %v3347 = vsub.f32 0.0, %v3143
      %v3348 = vsub.f32 0.0, %v3148
      %v3349 = vsub.f32 0.0, %v3151
      %v3350 = vsub.f32 0.0, %v3156
      %v3351 = vsub.f32 0.0, %v3159
      %v3352 = vsub.f32 0.0, %v3164
      %v3353 = vsub.f32 0.0, %v3167
      %v3354 = vsub.f32 0.0, %v3172
      %v3355 = vsub.f32 0.0, %v3175
      %v3356 = vsub.f32 0.0, %v3180
      %v3357 = vsub.f32 0.0, %v3183
      %v3358 = vsub.f32 0.0, %v3188
      %v3359 = vsub.f32 0.0, %v3191
      %v3360 = vsub.f32 0.0, %v3196
      %v3361 = vsub.f32 0.0, %v3199
      %v3362 = vsub.f32 0.0, %v3204
      %v3363 = vsub.f32 0.0, %v3207
      %v3364 = vsub.f32 0.0, %v3212
      %v3365 = vsub.f32 0.0, %v3215
      %v3366 = vsub.f32 0.0, %v3220
      %v3367 = vsub.f32 0.0, %v3223
      %v3368 = vsub.f32 0.0, %v3228
      %v3369 = vsub.f32 0.0, %v3231
      %v3370 = vsub.f32 0.0, %v3236
      %v3371 = vsub.f32 0.0, %v3239
      %v3372 = vsub.f32 0.0, %v3244
      %v3373 = vsub.f32 0.0, %v3247
      %v3374 = vsub.f32 0.0, %v3252
      %v3375 = vsub.f32 0.0, %v3255
      %v3376 = vsub.f32 0.0, %v3260
      %v3377 = vsub.f32 0.0, %v3263
      %v3378 = vsub.f32 0.0, %v3268
      %v3379 = vsub.f32 0.0, %v3271
      %v3380 = vsub.f32 0.0, %v3276
      %v3381 = vsub.f32 0.0, %v3279
      %v3382 = vsub.f32 0.0, %v3284
      %v3383 = vsub.f32 0.0, %v3287
      %v3384 = vsub.f32 0.0, %v3292
      %v3385 = vsub.f32 0.0, %v3295
      %v3386 = vsub.f32 0.0, %v3300
      %v3387 = vsub.f32 0.0, %v3303
      %v3388 = vsub.f32 0.0, %v3308
      %v3389 = vsub.f32 0.0, %v3311
      %v3390 = vsub.f32 0.0, %v3316
      %v3391 = vsub.f32 0.0, %v3319
      %v3392 = vsub.f32 0.0, %v3324
      %v3393 = vsub.f32 0.0, %v3327
      %v3394 = vmul.f32 %v3330, 1.442695
      %v3395 = vpow.pop %v3394
      %v3396 = vmul.f32 %v3331, 1.442695
      %v3397 = vpow.pop %v3396
      %v3398 = vmul.f32 %v3332, 1.442695
      %v3399 = vpow.pop %v3398
      %v3400 = vmul.f32 %v3333, 1.442695
      %v3401 = vpow.pop %v3400
      %v3402 = vmul.f32 %v3334, 1.442695
      %v3403 = vpow.pop %v3402
      %v3404 = vmul.f32 %v3335, 1.442695
      %v3405 = vpow.pop %v3404
      %v3406 = vmul.f32 %v3336, 1.442695
      %v3407 = vpow.pop %v3406
      %v3408 = vmul.f32 %v3337, 1.442695
      %v3409 = vpow.pop %v3408
      %v3410 = vmul.f32 %v3338, 1.442695
      %v3411 = vpow.pop %v3410
      %v3412 = vmul.f32 %v3339, 1.442695
      %v3413 = vpow.pop %v3412
      %v3414 = vmul.f32 %v3340, 1.442695
      %v3415 = vpow.pop %v3414
      %v3416 = vmul.f32 %v3341, 1.442695
      %v3417 = vpow.pop %v3416
      %v3418 = vmul.f32 %v3342, 1.442695
      %v3419 = vpow.pop %v3418
      %v3420 = vmul.f32 %v3343, 1.442695
      %v3421 = vpow.pop %v3420
      %v3422 = vmul.f32 %v3344, 1.442695
      %v3423 = vpow.pop %v3422
      %v3424 = vmul.f32 %v3345, 1.442695
      %v3425 = vpow.pop %v3424
      %v3426 = vmul.f32 %v3346, 1.442695
      %v3427 = vpow.pop %v3426
      %v3428 = vmul.f32 %v3347, 1.442695
      %v3429 = vpow.pop %v3428
      %v3430 = vmul.f32 %v3348, 1.442695
      %v3431 = vpow.pop %v3430
      %v3432 = vmul.f32 %v3349, 1.442695
      %v3433 = vpow.pop %v3432
      %v3434 = vmul.f32 %v3350, 1.442695
      %v3435 = vpow.pop %v3434
      %v3436 = vmul.f32 %v3351, 1.442695
      %v3437 = vpow.pop %v3436
      %v3438 = vmul.f32 %v3352, 1.442695
      %v3439 = vpow.pop %v3438
      %v3440 = vmul.f32 %v3353, 1.442695
      %v3441 = vpow.pop %v3440
      %v3442 = vmul.f32 %v3354, 1.442695
      %v3443 = vpow.pop %v3442
      %v3444 = vmul.f32 %v3355, 1.442695
      %v3445 = vpow.pop %v3444
      %v3446 = vmul.f32 %v3356, 1.442695
      %v3447 = vpow.pop %v3446
      %v3448 = vmul.f32 %v3357, 1.442695
      %v3449 = vpow.pop %v3448
      %v3450 = vmul.f32 %v3358, 1.442695
      %v3451 = vpow.pop %v3450
      %v3452 = vmul.f32 %v3359, 1.442695
      %v3453 = vpow.pop %v3452
      %v3454 = vmul.f32 %v3360, 1.442695
      %v3455 = vpow.pop %v3454
      %v3456 = vmul.f32 %v3361, 1.442695
      %v3457 = vpow.pop %v3456
      %v3458 = vmul.f32 %v3362, 1.442695
      %v3459 = vpow.pop %v3458
      %v3460 = vmul.f32 %v3363, 1.442695
      %v3461 = vpow.pop %v3460
      %v3462 = vmul.f32 %v3364, 1.442695
      %v3463 = vpow.pop %v3462
      %v3464 = vmul.f32 %v3365, 1.442695
      %v3465 = vpow.pop %v3464
      %v3466 = vmul.f32 %v3366, 1.442695
      %v3467 = vpow.pop %v3466
      %v3468 = vmul.f32 %v3367, 1.442695
      %v3469 = vpow.pop %v3468
      %v3470 = vmul.f32 %v3368, 1.442695
      %v3471 = vpow.pop %v3470
      %v3472 = vmul.f32 %v3369, 1.442695
      %v3473 = vpow.pop %v3472
      %v3474 = vmul.f32 %v3370, 1.442695
      %v3475 = vpow.pop %v3474
      %v3476 = vmul.f32 %v3371, 1.442695
      %v3477 = vpow.pop %v3476
      %v3478 = vmul.f32 %v3372, 1.442695
      %v3479 = vpow.pop %v3478
      %v3480 = vmul.f32 %v3373, 1.442695
      %v3481 = vpow.pop %v3480
      %v3482 = vmul.f32 %v3374, 1.442695
      %v3483 = vpow.pop %v3482
      %v3484 = vmul.f32 %v3375, 1.442695
      %v3485 = vpow.pop %v3484
      %v3486 = vmul.f32 %v3376, 1.442695
      %v3487 = vpow.pop %v3486
      %v3488 = vmul.f32 %v3377, 1.442695
      %v3489 = vpow.pop %v3488
      %v3490 = vmul.f32 %v3378, 1.442695
      %v3491 = vpow.pop %v3490
      %v3492 = vmul.f32 %v3379, 1.442695
      %v3493 = vpow.pop %v3492
      %v3494 = vmul.f32 %v3380, 1.442695
      %v3495 = vpow.pop %v3494
      %v3496 = vmul.f32 %v3381, 1.442695
      %v3497 = vpow.pop %v3496
      %v3498 = vmul.f32 %v3382, 1.442695
      %v3499 = vpow.pop %v3498
      %v3500 = vmul.f32 %v3383, 1.442695
      %v3501 = vpow.pop %v3500
      %v3502 = vmul.f32 %v3384, 1.442695
      %v3503 = vpow.pop %v3502
      %v3504 = vmul.f32 %v3385, 1.442695
      %v3505 = vpow.pop %v3504
      %v3506 = vmul.f32 %v3386, 1.442695
      %v3507 = vpow.pop %v3506
      %v3508 = vmul.f32 %v3387, 1.442695
      %v3509 = vpow.pop %v3508
      %v3510 = vmul.f32 %v3388, 1.442695
      %v3511 = vpow.pop %v3510
      %v3512 = vmul.f32 %v3389, 1.442695
      %v3513 = vpow.pop %v3512
      %v3514 = vmul.f32 %v3390, 1.442695
      %v3515 = vpow.pop %v3514
      %v3516 = vmul.f32 %v3391, 1.442695
      %v3517 = vpow.pop %v3516
      %v3518 = vmul.f32 %v3392, 1.442695
      %v3519 = vpow.pop %v3518
      %v3520 = vmul.f32 %v3393, 1.442695
      %v3521 = vpow.pop %v3520
      %v3522 = vadd.f32 %v3395, 1.0
      %v3523 = vadd.f32 %v3397, 1.0
      %v3524 = vadd.f32 %v3399, 1.0
      %v3525 = vadd.f32 %v3401, 1.0
      %v3526 = vadd.f32 %v3403, 1.0
      %v3527 = vadd.f32 %v3405, 1.0
      %v3528 = vadd.f32 %v3407, 1.0
      %v3529 = vadd.f32 %v3409, 1.0
      %v3530 = vadd.f32 %v3411, 1.0
      %v3531 = vadd.f32 %v3413, 1.0
      %v3532 = vadd.f32 %v3415, 1.0
      %v3533 = vadd.f32 %v3417, 1.0
      %v3534 = vadd.f32 %v3419, 1.0
      %v3535 = vadd.f32 %v3421, 1.0
      %v3536 = vadd.f32 %v3423, 1.0
      %v3537 = vadd.f32 %v3425, 1.0
      %v3538 = vadd.f32 %v3427, 1.0
      %v3539 = vadd.f32 %v3429, 1.0
      %v3540 = vadd.f32 %v3431, 1.0
      %v3541 = vadd.f32 %v3433, 1.0
      %v3542 = vadd.f32 %v3435, 1.0
      %v3543 = vadd.f32 %v3437, 1.0
      %v3544 = vadd.f32 %v3439, 1.0
      %v3545 = vadd.f32 %v3441, 1.0
      %v3546 = vadd.f32 %v3443, 1.0
      %v3547 = vadd.f32 %v3445, 1.0
      %v3548 = vadd.f32 %v3447, 1.0
      %v3549 = vadd.f32 %v3449, 1.0
      %v3550 = vadd.f32 %v3451, 1.0
      %v3551 = vadd.f32 %v3453, 1.0
      %v3552 = vadd.f32 %v3455, 1.0
      %v3553 = vadd.f32 %v3457, 1.0
      %v3554 = vadd.f32 %v3459, 1.0
      %v3555 = vadd.f32 %v3461, 1.0
      %v3556 = vadd.f32 %v3463, 1.0
      %v3557 = vadd.f32 %v3465, 1.0
      %v3558 = vadd.f32 %v3467, 1.0
      %v3559 = vadd.f32 %v3469, 1.0
      %v3560 = vadd.f32 %v3471, 1.0
      %v3561 = vadd.f32 %v3473, 1.0
      %v3562 = vadd.f32 %v3475, 1.0
      %v3563 = vadd.f32 %v3477, 1.0
      %v3564 = vadd.f32 %v3479, 1.0
      %v3565 = vadd.f32 %v3481, 1.0
      %v3566 = vadd.f32 %v3483, 1.0
      %v3567 = vadd.f32 %v3485, 1.0
      %v3568 = vadd.f32 %v3487, 1.0
      %v3569 = vadd.f32 %v3489, 1.0
      %v3570 = vadd.f32 %v3491, 1.0
      %v3571 = vadd.f32 %v3493, 1.0
      %v3572 = vadd.f32 %v3495, 1.0
      %v3573 = vadd.f32 %v3497, 1.0
      %v3574 = vadd.f32 %v3499, 1.0
      %v3575 = vadd.f32 %v3501, 1.0
      %v3576 = vadd.f32 %v3503, 1.0
      %v3577 = vadd.f32 %v3505, 1.0
      %v3578 = vadd.f32 %v3507, 1.0
      %v3579 = vadd.f32 %v3509, 1.0
      %v3580 = vadd.f32 %v3511, 1.0
      %v3581 = vadd.f32 %v3513, 1.0
      %v3582 = vadd.f32 %v3515, 1.0
      %v3583 = vadd.f32 %v3517, 1.0
      %v3584 = vadd.f32 %v3519, 1.0
      %v3585 = vadd.f32 %v3521, 1.0
      %v3586 = vrcp.pop %v3522
      %v3587 = vrcp.pop %v3523
      %v3588 = vrcp.pop %v3524
      %v3589 = vrcp.pop %v3525
      %v3590 = vrcp.pop %v3526
      %v3591 = vrcp.pop %v3527
      %v3592 = vrcp.pop %v3528
      %v3593 = vrcp.pop %v3529
      %v3594 = vrcp.pop %v3530
      %v3595 = vrcp.pop %v3531
      %v3596 = vrcp.pop %v3532
      %v3597 = vrcp.pop %v3533
      %v3598 = vrcp.pop %v3534
      %v3599 = vrcp.pop %v3535
      %v3600 = vrcp.pop %v3536
      %v3601 = vrcp.pop %v3537
      %v3602 = vrcp.pop %v3538
      %v3603 = vrcp.pop %v3539
      %v3604 = vrcp.pop %v3540
      %v3605 = vrcp.pop %v3541
      %v3606 = vrcp.pop %v3542
      %v3607 = vrcp.pop %v3543
      %v3608 = vrcp.pop %v3544
      %v3609 = vrcp.pop %v3545
      %v3610 = vrcp.pop %v3546
      %v3611 = vrcp.pop %v3547
      %v3612 = vrcp.pop %v3548
      %v3613 = vrcp.pop %v3549
      %v3614 = vrcp.pop %v3550
      %v3615 = vrcp.pop %v3551
      %v3616 = vrcp.pop %v3552
      %v3617 = vrcp.pop %v3553
      %v3618 = vrcp.pop %v3554
      %v3619 = vrcp.pop %v3555
      %v3620 = vrcp.pop %v3556
      %v3621 = vrcp.pop %v3557
      %v3622 = vrcp.pop %v3558
      %v3623 = vrcp.pop %v3559
      %v3624 = vrcp.pop %v3560
      %v3625 = vrcp.pop %v3561
      %v3626 = vrcp.pop %v3562
      %v3627 = vrcp.pop %v3563
      %v3628 = vrcp.pop %v3564
      %v3629 = vrcp.pop %v3565
      %v3630 = vrcp.pop %v3566
      %v3631 = vrcp.pop %v3567
      %v3632 = vrcp.pop %v3568
      %v3633 = vrcp.pop %v3569
      %v3634 = vrcp.pop %v3570
      %v3635 = vrcp.pop %v3571
      %v3636 = vrcp.pop %v3572
      %v3637 = vrcp.pop %v3573
      %v3638 = vrcp.pop %v3574
      %v3639 = vrcp.pop %v3575
      %v3640 = vrcp.pop %v3576
      %v3641 = vrcp.pop %v3577
      %v3642 = vrcp.pop %v3578
      %v3643 = vrcp.pop %v3579
      %v3644 = vrcp.pop %v3580
      %v3645 = vrcp.pop %v3581
      %v3646 = vrcp.pop %v3582
      %v3647 = vrcp.pop %v3583
      %v3648 = vrcp.pop %v3584
      %v3649 = vrcp.pop %v3585
      %v3650 = vpack.c.bf16 %v3587, %v3586
      %v3651 = vpack.c.bf16 %v3589, %v3588
      %v3652 = vpack.c.bf16 %v3591, %v3590
      %v3653 = vpack.c.bf16 %v3593, %v3592
      %v3654 = vpack.c.bf16 %v3595, %v3594
      %v3655 = vpack.c.bf16 %v3597, %v3596
      %v3656 = vpack.c.bf16 %v3599, %v3598
      %v3657 = vpack.c.bf16 %v3601, %v3600
      %v3658 = vpack.c.bf16 %v3603, %v3602
      %v3659 = vpack.c.bf16 %v3605, %v3604
      %v3660 = vpack.c.bf16 %v3607, %v3606
      %v3661 = vpack.c.bf16 %v3609, %v3608
      %v3662 = vpack.c.bf16 %v3611, %v3610
      %v3663 = vpack.c.bf16 %v3613, %v3612
      %v3664 = vpack.c.bf16 %v3615, %v3614
      %v3665 = vpack.c.bf16 %v3617, %v3616
      %v3666 = vpack.c.bf16 %v3619, %v3618
      %v3667 = vpack.c.bf16 %v3621, %v3620
      %v3668 = vpack.c.bf16 %v3623, %v3622
      %v3669 = vpack.c.bf16 %v3625, %v3624
      %v3670 = vpack.c.bf16 %v3627, %v3626
      %v3671 = vpack.c.bf16 %v3629, %v3628
      %v3672 = vpack.c.bf16 %v3631, %v3630
      %v3673 = vpack.c.bf16 %v3633, %v3632
      %v3674 = vpack.c.bf16 %v3635, %v3634
      %v3675 = vpack.c.bf16 %v3637, %v3636
      %v3676 = vpack.c.bf16 %v3639, %v3638
      %v3677 = vpack.c.bf16 %v3641, %v3640
      %v3678 = vpack.c.bf16 %v3643, %v3642
      %v3679 = vpack.c.bf16 %v3645, %v3644
      %v3680 = vpack.c.bf16 %v3647, %v3646
      %v3681 = vpack.c.bf16 %v3649, %v3648
      %v3714 = vunpack.c.l.b16 %v3650
      %v3715 = vunpack.c.h.b16 %v3650
      %v3716 = vunpack.c.l.b16 %v3651
      %v3717 = vunpack.c.h.b16 %v3651
      %v3718 = vunpack.c.l.b16 %v3652
      %v3719 = vunpack.c.h.b16 %v3652
      %v3720 = vunpack.c.l.b16 %v3653
      %v3721 = vunpack.c.h.b16 %v3653
      %v3722 = vunpack.c.l.b16 %v3654
      %v3723 = vunpack.c.h.b16 %v3654
      %v3724 = vunpack.c.l.b16 %v3655
      %v3725 = vunpack.c.h.b16 %v3655
      %v3726 = vunpack.c.l.b16 %v3656
      %v3727 = vunpack.c.h.b16 %v3656
      %v3728 = vunpack.c.l.b16 %v3657
      %v3729 = vunpack.c.h.b16 %v3657
      %v3730 = vunpack.c.l.b16 %v3658
      %v3731 = vunpack.c.h.b16 %v3658
      %v3732 = vunpack.c.l.b16 %v3659
      %v3733 = vunpack.c.h.b16 %v3659
      %v3734 = vunpack.c.l.b16 %v3660
      %v3735 = vunpack.c.h.b16 %v3660
      %v3736 = vunpack.c.l.b16 %v3661
      %v3737 = vunpack.c.h.b16 %v3661
      %v3738 = vunpack.c.l.b16 %v3662
      %v3739 = vunpack.c.h.b16 %v3662
      %v3740 = vunpack.c.l.b16 %v3663
      %v3741 = vunpack.c.h.b16 %v3663
      %v3742 = vunpack.c.l.b16 %v3664
      %v3743 = vunpack.c.h.b16 %v3664
      %v3744 = vunpack.c.l.b16 %v3665
      %v3745 = vunpack.c.h.b16 %v3665
      %v3746 = vunpack.c.l.b16 %v3666
      %v3747 = vunpack.c.h.b16 %v3666
      %v3748 = vunpack.c.l.b16 %v3667
      %v3749 = vunpack.c.h.b16 %v3667
      %v3750 = vunpack.c.l.b16 %v3668
      %v3751 = vunpack.c.h.b16 %v3668
      %v3752 = vunpack.c.l.b16 %v3669
      %v3753 = vunpack.c.h.b16 %v3669
      %v3754 = vunpack.c.l.b16 %v3670
      %v3755 = vunpack.c.h.b16 %v3670
      %v3756 = vunpack.c.l.b16 %v3671
      %v3757 = vunpack.c.h.b16 %v3671
      %v3758 = vunpack.c.l.b16 %v3672
      %v3759 = vunpack.c.h.b16 %v3672
      %v3760 = vunpack.c.l.b16 %v3673
      %v3761 = vunpack.c.h.b16 %v3673
      %v3762 = vunpack.c.l.b16 %v3674
      %v3763 = vunpack.c.h.b16 %v3674
      %v3764 = vunpack.c.l.b16 %v3675
      %v3765 = vunpack.c.h.b16 %v3675
      %v3766 = vunpack.c.l.b16 %v3676
      %v3767 = vunpack.c.h.b16 %v3676
      %v3768 = vunpack.c.l.b16 %v3677
      %v3769 = vunpack.c.h.b16 %v3677
      %v3770 = vunpack.c.l.b16 %v3678
      %v3771 = vunpack.c.h.b16 %v3678
      %v3772 = vunpack.c.l.b16 %v3679
      %v3773 = vunpack.c.h.b16 %v3679
      %v3774 = vunpack.c.l.b16 %v3680
      %v3775 = vunpack.c.h.b16 %v3680
      %v3776 = vunpack.c.l.b16 %v3681
      %v3777 = vunpack.c.h.b16 %v3681
      %v3778 = vpack.c.b16 %v3714, %v3714
      %v3779 = vpack.c.b16 %v3715, %v3715
      %v3780 = vpack.c.b16 %v3716, %v3716
      %v3781 = vpack.c.b16 %v3717, %v3717
      %v3782 = vpack.c.b16 %v3718, %v3718
      %v3783 = vpack.c.b16 %v3719, %v3719
      %v3784 = vpack.c.b16 %v3720, %v3720
      %v3785 = vpack.c.b16 %v3721, %v3721
      %v3786 = vpack.c.b16 %v3722, %v3722
      %v3787 = vpack.c.b16 %v3723, %v3723
      %v3788 = vpack.c.b16 %v3724, %v3724
      %v3789 = vpack.c.b16 %v3725, %v3725
      %v3790 = vpack.c.b16 %v3726, %v3726
      %v3791 = vpack.c.b16 %v3727, %v3727
      %v3792 = vpack.c.b16 %v3728, %v3728
      %v3793 = vpack.c.b16 %v3729, %v3729
      %v3794 = vpack.c.b16 %v3730, %v3730
      %v3795 = vpack.c.b16 %v3731, %v3731
      %v3796 = vpack.c.b16 %v3732, %v3732
      %v3797 = vpack.c.b16 %v3733, %v3733
      %v3798 = vpack.c.b16 %v3734, %v3734
      %v3799 = vpack.c.b16 %v3735, %v3735
      %v3800 = vpack.c.b16 %v3736, %v3736
      %v3801 = vpack.c.b16 %v3737, %v3737
      %v3802 = vpack.c.b16 %v3738, %v3738
      %v3803 = vpack.c.b16 %v3739, %v3739
      %v3804 = vpack.c.b16 %v3740, %v3740
      %v3805 = vpack.c.b16 %v3741, %v3741
      %v3806 = vpack.c.b16 %v3742, %v3742
      %v3807 = vpack.c.b16 %v3743, %v3743
      %v3808 = vpack.c.b16 %v3744, %v3744
      %v3809 = vpack.c.b16 %v3745, %v3745
      %v3810 = vpack.c.b16 %v3746, %v3746
      %v3811 = vpack.c.b16 %v3747, %v3747
      %v3812 = vpack.c.b16 %v3748, %v3748
      %v3813 = vpack.c.b16 %v3749, %v3749
      %v3814 = vpack.c.b16 %v3750, %v3750
      %v3815 = vpack.c.b16 %v3751, %v3751
      %v3816 = vpack.c.b16 %v3752, %v3752
      %v3817 = vpack.c.b16 %v3753, %v3753
      %v3818 = vpack.c.b16 %v3754, %v3754
      %v3819 = vpack.c.b16 %v3755, %v3755
      %v3820 = vpack.c.b16 %v3756, %v3756
      %v3821 = vpack.c.b16 %v3757, %v3757
      %v3822 = vpack.c.b16 %v3758, %v3758
      %v3823 = vpack.c.b16 %v3759, %v3759
      %v3824 = vpack.c.b16 %v3760, %v3760
      %v3825 = vpack.c.b16 %v3761, %v3761
      %v3826 = vpack.c.b16 %v3762, %v3762
      %v3827 = vpack.c.b16 %v3763, %v3763
      %v3828 = vpack.c.b16 %v3764, %v3764
      %v3829 = vpack.c.b16 %v3765, %v3765
      %v3830 = vpack.c.b16 %v3766, %v3766
      %v3831 = vpack.c.b16 %v3767, %v3767
      %v3832 = vpack.c.b16 %v3768, %v3768
      %v3833 = vpack.c.b16 %v3769, %v3769
      %v3834 = vpack.c.b16 %v3770, %v3770
      %v3835 = vpack.c.b16 %v3771, %v3771
      %v3836 = vpack.c.b16 %v3772, %v3772
      %v3837 = vpack.c.b16 %v3773, %v3773
      %v3838 = vpack.c.b16 %v3774, %v3774
      %v3839 = vpack.c.b16 %v3775, %v3775
      %v3840 = vpack.c.b16 %v3776, %v3776
      %v3841 = vpack.c.b16 %v3777, %v3777
      %vm3906 = vcmask 19456
      %3907 = vst.msk [vmem:[%s172] sm:$0xf] %vm3906, %v3778
      %3908 = vst.msk [vmem:[%s172 + $0x4] sm:$0xf] %vm3906, %v3779
      %3909 = vst.msk [vmem:[%s172 + $0x8] sm:$0xf] %vm3906, %v3780
      %3910 = vst.msk [vmem:[%s172 + $0xc] sm:$0xf] %vm3906, %v3781
      %3911 = vst.msk [vmem:[%s172 + $0x10] sm:$0xf] %vm3906, %v3782
      %3912 = vst.msk [vmem:[%s172 + $0x14] sm:$0xf] %vm3906, %v3783
      %3913 = vst.msk [vmem:[%s172 + $0x18] sm:$0xf] %vm3906, %v3784
      %3914 = vst.msk [vmem:[%s172 + $0x1c] sm:$0xf] %vm3906, %v3785
      %3915 = vst.msk [vmem:[%s172 + $0x20] sm:$0xf] %vm3906, %v3786
      %3916 = vst.msk [vmem:[%s172 + $0x24] sm:$0xf] %vm3906, %v3787
      %3917 = vst.msk [vmem:[%s172 + $0x28] sm:$0xf] %vm3906, %v3788
      %3918 = vst.msk [vmem:[%s172 + $0x2c] sm:$0xf] %vm3906, %v3789
      %3919 = vst.msk [vmem:[%s172 + $0x30] sm:$0xf] %vm3906, %v3790
      %3920 = vst.msk [vmem:[%s172 + $0x34] sm:$0xf] %vm3906, %v3791
      %3921 = vst.msk [vmem:[%s172 + $0x38] sm:$0xf] %vm3906, %v3792
      %3922 = vst.msk [vmem:[%s172 + $0x3c] sm:$0xf] %vm3906, %v3793
      %3923 = vst.msk [vmem:[%s172 + $0x40] sm:$0xf] %vm3906, %v3794
      %3924 = vst.msk [vmem:[%s172 + $0x44] sm:$0xf] %vm3906, %v3795
      %3925 = vst.msk [vmem:[%s172 + $0x48] sm:$0xf] %vm3906, %v3796
      %3926 = vst.msk [vmem:[%s172 + $0x4c] sm:$0xf] %vm3906, %v3797
      %3927 = vst.msk [vmem:[%s172 + $0x50] sm:$0xf] %vm3906, %v3798
      %3928 = vst.msk [vmem:[%s172 + $0x54] sm:$0xf] %vm3906, %v3799
      %3929 = vst.msk [vmem:[%s172 + $0x58] sm:$0xf] %vm3906, %v3800
      %3930 = vst.msk [vmem:[%s172 + $0x5c] sm:$0xf] %vm3906, %v3801
      %3931 = vst.msk [vmem:[%s172 + $0x60] sm:$0xf] %vm3906, %v3802
      %3932 = vst.msk [vmem:[%s172 + $0x64] sm:$0xf] %vm3906, %v3803
      %3933 = vst.msk [vmem:[%s172 + $0x68] sm:$0xf] %vm3906, %v3804
      %3934 = vst.msk [vmem:[%s172 + $0x6c] sm:$0xf] %vm3906, %v3805
      %3935 = vst.msk [vmem:[%s172 + $0x70] sm:$0xf] %vm3906, %v3806
      %3936 = vst.msk [vmem:[%s172 + $0x74] sm:$0xf] %vm3906, %v3807
      %3937 = vst.msk [vmem:[%s172 + $0x78] sm:$0xf] %vm3906, %v3808
      %3938 = vst.msk [vmem:[%s172 + $0x7c] sm:$0xf] %vm3906, %v3809
      %3939 = vst.msk [vmem:[%s172 + $0x80] sm:$0xf] %vm3906, %v3810
      %3940 = vst.msk [vmem:[%s172 + $0x84] sm:$0xf] %vm3906, %v3811
      %3941 = vst.msk [vmem:[%s172 + $0x88] sm:$0xf] %vm3906, %v3812
      %3942 = vst.msk [vmem:[%s172 + $0x8c] sm:$0xf] %vm3906, %v3813
      %3943 = vst.msk [vmem:[%s172 + $0x90] sm:$0xf] %vm3906, %v3814
      %3944 = vst.msk [vmem:[%s172 + $0x94] sm:$0xf] %vm3906, %v3815
      %3945 = vst.msk [vmem:[%s172 + $0x98] sm:$0xf] %vm3906, %v3816
      %3946 = vst.msk [vmem:[%s172 + $0x9c] sm:$0xf] %vm3906, %v3817
      %3947 = vst.msk [vmem:[%s172 + $0xa0] sm:$0xf] %vm3906, %v3818
      %3948 = vst.msk [vmem:[%s172 + $0xa4] sm:$0xf] %vm3906, %v3819
      %3949 = vst.msk [vmem:[%s172 + $0xa8] sm:$0xf] %vm3906, %v3820
      %3950 = vst.msk [vmem:[%s172 + $0xac] sm:$0xf] %vm3906, %v3821
      %3951 = vst.msk [vmem:[%s172 + $0xb0] sm:$0xf] %vm3906, %v3822
      %3952 = vst.msk [vmem:[%s172 + $0xb4] sm:$0xf] %vm3906, %v3823
      %3953 = vst.msk [vmem:[%s172 + $0xb8] sm:$0xf] %vm3906, %v3824
      %3954 = vst.msk [vmem:[%s172 + $0xbc] sm:$0xf] %vm3906, %v3825
      %3955 = vst.msk [vmem:[%s172 + $0xc0] sm:$0xf] %vm3906, %v3826
      %3956 = vst.msk [vmem:[%s172 + $0xc4] sm:$0xf] %vm3906, %v3827
      %3957 = vst.msk [vmem:[%s172 + $0xc8] sm:$0xf] %vm3906, %v3828
      %3958 = vst.msk [vmem:[%s172 + $0xcc] sm:$0xf] %vm3906, %v3829
      %3959 = vst.msk [vmem:[%s172 + $0xd0] sm:$0xf] %vm3906, %v3830
      %3960 = vst.msk [vmem:[%s172 + $0xd4] sm:$0xf] %vm3906, %v3831
      %3961 = vst.msk [vmem:[%s172 + $0xd8] sm:$0xf] %vm3906, %v3832
      %3962 = vst.msk [vmem:[%s172 + $0xdc] sm:$0xf] %vm3906, %v3833
      %3963 = vst.msk [vmem:[%s172 + $0xe0] sm:$0xf] %vm3906, %v3834
      %3964 = vst.msk [vmem:[%s172 + $0xe4] sm:$0xf] %vm3906, %v3835
      %3965 = vst.msk [vmem:[%s172 + $0xe8] sm:$0xf] %vm3906, %v3836
      %3966 = vst.msk [vmem:[%s172 + $0xec] sm:$0xf] %vm3906, %v3837
      %3967 = vst.msk [vmem:[%s172 + $0xf0] sm:$0xf] %vm3906, %v3838
      %3968 = vst.msk [vmem:[%s172 + $0xf4] sm:$0xf] %vm3906, %v3839
      %3969 = vst.msk [vmem:[%s172 + $0xf8] sm:$0xf] %vm3906, %v3840
      %3970 = vst.msk [vmem:[%s172 + $0xfc] sm:$0xf] %vm3906, %v3841
      %s3971 = smul.u32 64, %s14
      %p3972 = scmp.lt.s32.totalorder %s3971, 127
      %s3973 = scalar_select %p3972, %s3971, 127
      %s3974 = smul.addr %s3973, 4
      %s3975 = scalar_lea.vmem %s3, %s3974
      // Predicated region
      $region33: #{ngp_forward.1} parent=31 // pred_check
        %p3976 = pneg %p100
      $region34: #{ngp_forward.1} parent=31 // pred_check_branch
        %3978 = sbr.rel (%p3976) target = $region36
      $region35: #{ngp_forward.1} parent=31 // pred_region
        %s3979 = smul.u32 64, %s14
      $region36: #{ngp_forward.1} parent=31 // pred_fallthru
        _
    $region32: #{ngp_forward.1} parent=5 // pred_fallthru
      _
    %p3980 = scmp.le.s32.totalorder 2, %s9
    // Predicated region
    $region37: #{ngp_forward.1} parent=5 // pred_check
      %p3981 = pneg %p3980
    $region38: #{ngp_forward.1} parent=5 // pred_check_branch
      %3983 = sbr.rel (%p3981) target = $region40
    $region39: #{ngp_forward.1} parent=5 // pred_region
      %s3984 = ssub.s32 %s9, 2
      // Predicated region
      $region41: #{ngp_forward.1} parent=39 // pred_check
        %p3985 = pneg %p106
      $region42: #{ngp_forward.1} parent=39 // pred_check_branch
        %3987 = sbr.rel (%p3985) target = $region44
      $region43: #{ngp_forward.1} parent=39 // pred_region
        %s3988 = smul.u32 64, %s15
        %p3989 = scmp.lt.s32.totalorder %s3988, 127
        %s3990 = scalar_select %p3989, %s3988, 127
        %s3991 = smul.addr %s3990, 4
        %s3992 = scalar_lea.vmem %s3, %s3991
      $region44: #{ngp_forward.1} parent=39 // pred_fallthru
        _
    $region40: #{ngp_forward.1} parent=5 // pred_fallthru
      _
  $region6: #{ngp_forward.1} parent=0 // loop_footer
    %s13 = sadd.s32 1, %s9
  $region7: #{ngp_forward.1} parent=0 // loop_footer_branch
    %8 = sbr.rel target = $region3
  $region8: #{ngp_forward.1} parent=0 // loop_exit
    _

</llo_original>
